<compile_context>
chip_gen: v6e
topology: v6e:2x2x1
jax: 0.10.0
libtpu: 0.0.40
codegen_flags: <defaults>
</compile_context>

<pallas_src>
import jax
import jax.numpy as jnp
from jax.experimental import pallas as pl
from jax.experimental.pallas import tpu as pltpu

CONFIGS = {'veh_hidden': 16, 'act_hidden': 64}
OBS_SHAPE = {'veh_x': 8}
NUM_ACTIONS = 5
NUM_OUT = NUM_ACTIONS + 1          # 5 log-probs + 1 value
D_FUSE0 = 2 * CONFIGS['veh_hidden']   # 32  (actor|critic phi_veh)
D_FUSE1 = 2 * CONFIGS['act_hidden']   # 128 (actor|critic hidden)


# ------------------------------ Pallas kernel --------------------------------
def mlp_ac_kernel(idx_ref, vxt_ref, w0t_ref, w1t_ref, w2t_ref, w3t_ref,
                  bias_ref, out_ref):
    num_veh = vxt_ref.shape[1]          # V (vehicles)
    bn = idx_ref.shape[1]               # decisions in this block

    # ---- fused actor+critic MLP over the V vehicle rows (feature-major) ----
    # Weights were pre-transposed + block-diagonal packed host-side, so every
    # dot below is a plain (no-transpose) matmul and actor/critic share one
    # lane-dense 128-wide MXU pass per layer.  Recomputing this per grid block
    # costs ~1 MXU pass — negligible.
    b0 = bias_ref[0:D_FUSE0, 0:1]           # (32, 1)
    b1 = bias_ref[:, 1:2]                   # (128, 1)
    b2 = bias_ref[:, 2:3]                   # (128, 1)
    b3 = bias_ref[0:NUM_OUT, 3:4]           # (6, 1)

    t0 = jnp.dot(w0t_ref[...], vxt_ref[...],
                 preferred_element_type=jnp.float32) + b0                 # (32, V)
    t1 = jnp.tanh(jnp.dot(w1t_ref[...], t0,
                          preferred_element_type=jnp.float32) + b1)       # (128, V)
    t2 = jnp.tanh(jnp.dot(w2t_ref[...], t1,
                          preferred_element_type=jnp.float32) + b2)       # (128, V)
    t3 = jnp.dot(w3t_ref[...], t2,
                 preferred_element_type=jnp.float32) + b3                 # (6, V)

    logits_t = t3[0:NUM_ACTIONS, :]                                       # (5, V)
    value_t = t3[NUM_ACTIONS:NUM_OUT, :]                                  # (1, V)

    # Stable log-softmax over the action axis (sublanes).
    m = jnp.max(logits_t, axis=0, keepdims=True)
    z = logits_t - m
    lse = jnp.log(jnp.sum(jnp.exp(z), axis=0, keepdims=True))
    table_t = jnp.concatenate([z - lse, value_t], axis=0)                 # (6, V)

    # ---- gather is the LAST step: one column of the table per decision ----
    # out_T[c, n] = table_t[c, idx[n]] via a one-hot matmul (V=8, so the
    # one-hot trick is cheaper than any DMA gather; see review note about
    # switching to scalar-prefetch + take if V grows past ~32).
    # NOTE: an index outside [0, V) yields an all-zero column (PyTorch would
    # raise); indices are assumed in-range, as in the original module.
    idx = idx_ref[...]                                                    # (1, BN)
    onehot_t = (jax.lax.broadcasted_iota(jnp.int32, (num_veh, bn), 0)
                == idx).astype(jnp.float32)                               # (V, BN)
    out_ref[...] = jnp.dot(table_t, onehot_t,
                           preferred_element_type=jnp.float32)            # (6, BN)


# --------------------------- host-side weight packing -------------------------
def _block_diag2(a, b):
    ra, ca = a.shape
    rb, cb = b.shape
    out = jnp.zeros((ra + rb, ca + cb), jnp.float32)
    out = out.at[:ra, :ca].set(a)
    out = out.at[ra:, ca:].set(b)
    return out


def pack_params(params):
    """Fuse actor & critic into block-diagonal lane-dense layers, pre-transpose
    for the feature-major kernel, and pack all biases into one (128, 4) array."""
    f32 = jnp.float32
    w0 = jnp.concatenate([params['wpa'], params['wpc']], axis=1).astype(f32)   # (8, 32)
    w1 = _block_diag2(params['wa1'], params['wc1'])                            # (32, 128)
    w2 = _block_diag2(params['wa2'], params['wc2'])                            # (128, 128)
    w3 = _block_diag2(params['wd'], params['wc3'])                             # (128, 6)

    b0 = jnp.concatenate([params['bpa'], params['bpc']], axis=1).reshape(-1)   # (32,)
    b1 = jnp.concatenate([params['ba1'], params['bc1']], axis=1).reshape(-1)   # (128,)
    b2 = jnp.concatenate([params['ba2'], params['bc2']], axis=1).reshape(-1)   # (128,)
    b3 = jnp.concatenate([params['bd'], params['bc3']], axis=1).reshape(-1)    # (6,)
    bias = jnp.zeros((D_FUSE1, 4), f32)
    bias = (bias.at[:D_FUSE0, 0].set(b0)
                .at[:, 1].set(b1)
                .at[:, 2].set(b2)
                .at[:NUM_OUT, 3].set(b3))

    # Transposed (feature-major) weights: (32,8), (128,32), (128,128), (6,128).
    return w0.T, w1.T, w2.T, w3.T, bias


# ------------------------------ wrapper ---------------------------------------
def mlp_ac_forward_pallas(params, vehicles_x, recv_idx, *, block_n=512):
    """Returns (log_probs (N,5), value (N,1)) for MLPACModel."""
    n = int(recv_idx.shape[0])

    # Blocks: multiple of 256 (v6e/v7x MXU row tile), big enough to amortise the
    # ~0.35us per-grid-step overhead, but no bigger than needed.
    block_n = max(256, min((block_n // 256) * 256, pl.cdiv(n, 256) * 256))
    n_blocks = pl.cdiv(n, block_n)
    # v7x megacore: if a single oversized block would idle the 2nd TensorCore
    # and there are enough rows for two blocks, split the work.
    if n_blocks == 1 and n > 256:
        block_n = max(256, pl.cdiv(pl.cdiv(n, 2), 256) * 256)
        n_blocks = pl.cdiv(n, block_n)
    n_pad = n_blocks * block_n

    # Padded tail rows reuse index 0; their outputs are computed then sliced off.
    idx_row = jnp.pad(recv_idx.astype(jnp.int32), (0, n_pad - n)).reshape(1, n_pad)
    vxt = vehicles_x.astype(jnp.float32).T                      # (8, V)
    w0t, w1t, w2t, w3t, bias = pack_params(params)

    def const(arr):   # VMEM-resident across the grid (constant block index)
        return pl.BlockSpec(arr.shape, lambda i: (0, 0))

    out_t = pl.pallas_call(
        mlp_ac_kernel,
        grid=(n_blocks,),
        in_specs=[pl.BlockSpec((1, block_n), lambda i: (0, i)),   # receiver idx
                  const(vxt), const(w0t), const(w1t), const(w2t), const(w3t),
                  const(bias)],
        out_specs=pl.BlockSpec((NUM_OUT, block_n), lambda i: (0, i)),
        out_shape=jax.ShapeDtypeStruct((NUM_OUT, n_pad), jnp.float32),
        compiler_params=pltpu.CompilerParams(
            dimension_semantics=("parallel",)),     # shards blocks across TCs on v7x
    )(idx_row, vxt, w0t, w1t, w2t, w3t, bias)

    logp = out_t[:NUM_ACTIONS, :n].T       # (N, 5)
    value = out_t[NUM_ACTIONS:NUM_OUT, :n].T   # (N, 1)
    return logp, value


# --------------------------- parameter init -----------------------------------
def init_params(key):
    d_vx = OBS_SHAPE['veh_x']          # 8
    d_vh = CONFIGS['veh_hidden']       # 16
    d_ah = CONFIGS['act_hidden']       # 64
    gain = 2.0 ** 0.5

    def lin(k, din, dout, g):
        w = jax.nn.initializers.orthogonal(g)(k, (din, dout), jnp.float32)
        b = jnp.zeros((1, dout), jnp.float32)
        return w, b

    ks = jax.random.split(key, 8)
    wpa, bpa = lin(ks[0], d_vx, d_vh, gain)          # actor phi_veh
    wa1, ba1 = lin(ks[1], d_vh, d_ah, gain)          # actor_linear[0]
    wa2, ba2 = lin(ks[2], d_ah, d_ah, gain)          # actor_linear[2]
    wd, bd = lin(ks[3], d_ah, NUM_ACTIONS, 0.01)     # Categorical head (gain 0.01)
    wpc, bpc = lin(ks[4], d_vx, d_vh, gain)          # critic phi_veh
    wc1, bc1 = lin(ks[5], d_vh, d_ah, gain)          # critic_linear[0]
    wc2, bc2 = lin(ks[6], d_ah, d_ah, gain)          # critic_linear[2]
    wc3, bc3 = lin(ks[7], d_ah, 1, gain)             # critic_linear[4]
    return dict(wpa=wpa, bpa=bpa, wa1=wa1, ba1=ba1, wa2=wa2, ba2=ba2,
                wd=wd, bd=bd, wpc=wpc, bpc=bpc, wc1=wc1, bc1=bc1,
                wc2=wc2, bc2=bc2, wc3=wc3, bc3=bc3)


# --------------------------- pure-JAX reference --------------------------------
def mlp_ac_ref(params, vehicles_x, recv_idx):
    x = vehicles_x[recv_idx]
    va = x @ params['wpa'] + params['bpa']
    ha = jnp.tanh(va @ params['wa1'] + params['ba1'])
    fa = jnp.tanh(ha @ params['wa2'] + params['ba2'])
    logits = fa @ params['wd'] + params['bd']
    logp = jax.nn.log_softmax(logits, axis=-1)
    vc = x @ params['wpc'] + params['bpc']
    h1 = jnp.tanh(vc @ params['wc1'] + params['bc1'])
    h2 = jnp.tanh(h1 @ params['wc2'] + params['bc2'])
    value = h2 @ params['wc3'] + params['bc3']
    return logp, value


# ---------------------------------- main ---------------------------------------
if __name__ == "__main__":
    jax.config.update("jax_default_matmul_precision", "float32")

    key = jax.random.PRNGKey(0)
    kp, kv, ki = jax.random.split(key, 3)

    NUM_VEH = 8
    N_DECISIONS = 100          # len(req2veh_receiver_start_index)

    params = init_params(kp)
    vehicles_x = jax.random.normal(kv, (NUM_VEH, OBS_SHAPE['veh_x']), jnp.float32)
    recv_idx = jax.random.randint(ki, (N_DECISIONS,), 0, NUM_VEH)

    logp, value = mlp_ac_forward_pallas(params, vehicles_x, recv_idx)
    logp = jax.block_until_ready(logp)
    value = jax.block_until_ready(value)

    logp_ref, value_ref = mlp_ac_ref(params, vehicles_x, recv_idx)

    assert logp.shape == (N_DECISIONS, NUM_ACTIONS)
    assert value.shape == (N_DECISIONS, 1)
    err_lp = float(jnp.max(jnp.abs(logp - logp_ref)))
    err_v = float(jnp.max(jnp.abs(value - value_ref)))
    assert err_lp < 5e-3, err_lp
    assert err_v < 5e-3, err_v

    # MLPACModel.act(deterministic=True) / evaluate_actions glue from kernel outputs.
    # TODO(synk): stochastic dist.sample() (deterministic=False) is left to
    # host-side jax.random.categorical on the returned log-probs.
    action = jnp.argmax(logp, axis=1)
    action_log_probs = jnp.take_along_axis(logp, action[:, None], axis=1)
    dist_entropy = -jnp.mean(jnp.sum(jnp.exp(logp) * logp, axis=1))
    jax.block_until_ready((action, action_log_probs, dist_entropy))

    print("KERNEL_OK")
</pallas_src>

<mosaic_0001>
module attributes {stable_mosaic.version = 11 : i64} {
  func.func @mlp_ac_kernel(%arg0: i32, %arg1: memref<1x256xi32, #tpu.memory_space<vmem>>, %arg2: memref<8x8xf32, #tpu.memory_space<vmem>>, %arg3: memref<32x8xf32, #tpu.memory_space<vmem>>, %arg4: memref<128x32xf32, #tpu.memory_space<vmem>>, %arg5: memref<128x128xf32, #tpu.memory_space<vmem>>, %arg6: memref<6x128xf32, #tpu.memory_space<vmem>>, %arg7: memref<128x4xf32, #tpu.memory_space<vmem>>, %arg8: memref<6x256xf32, #tpu.memory_space<vmem>>) attributes {dimension_semantics = [#tpu.dimension_semantics<parallel>], iteration_bounds = array<i64: 1>, scalar_prefetch = 0 : i64, scratch_operands = 0 : i64, tpu.core_type = #tpu.core_type<tc>, window_params = [{transform_indices = @transform_0, window_bounds = array<i64: 1, 256>}, {pipeline_mode = #tpu.pipeline_mode<synchronous>, transform_indices = @transform_1, window_bounds = array<i64: 8, 8>}, {pipeline_mode = #tpu.pipeline_mode<synchronous>, transform_indices = @transform_2, window_bounds = array<i64: 32, 8>}, {pipeline_mode = #tpu.pipeline_mode<synchronous>, transform_indices = @transform_3, window_bounds = array<i64: 128, 32>}, {pipeline_mode = #tpu.pipeline_mode<synchronous>, transform_indices = @transform_4, window_bounds = array<i64: 128, 128>}, {pipeline_mode = #tpu.pipeline_mode<synchronous>, transform_indices = @transform_5, window_bounds = array<i64: 6, 128>}, {pipeline_mode = #tpu.pipeline_mode<synchronous>, transform_indices = @transform_6, window_bounds = array<i64: 128, 4>}, {transform_indices = @transform_7, window_bounds = array<i64: 6, 256>}]} {
    %c0 = arith.constant 0 : index
    %c0_0 = arith.constant 0 : index
    %0 = vector.load %arg7[%c0, %c0_0] : memref<128x4xf32, #tpu.memory_space<vmem>>, vector<32x1xf32>
    %c0_1 = arith.constant 0 : index
    %c1 = arith.constant 1 : index
    %1 = vector.load %arg7[%c0_1, %c1] : memref<128x4xf32, #tpu.memory_space<vmem>>, vector<128x1xf32>
    %c0_2 = arith.constant 0 : index
    %c2 = arith.constant 2 : index
    %2 = vector.load %arg7[%c0_2, %c2] : memref<128x4xf32, #tpu.memory_space<vmem>>, vector<128x1xf32>
    %c0_3 = arith.constant 0 : index
    %c3 = arith.constant 3 : index
    %3 = vector.load %arg7[%c0_3, %c3] : memref<128x4xf32, #tpu.memory_space<vmem>>, vector<6x1xf32>
    %c0_4 = arith.constant 0 : index
    %c0_5 = arith.constant 0 : index
    %4 = vector.load %arg3[%c0_4, %c0_5] : memref<32x8xf32, #tpu.memory_space<vmem>>, vector<32x8xf32>
    %c0_6 = arith.constant 0 : index
    %c0_7 = arith.constant 0 : index
    %5 = vector.load %arg2[%c0_6, %c0_7] : memref<8x8xf32, #tpu.memory_space<vmem>>, vector<8x8xf32>
    %cst = arith.constant dense<0.000000e+00> : vector<32x8xf32>
    %6 = tpu.matmul %4, %5, %cst {dimension_numbers = #tpu.dot_dimension_numbers<[1], [0], [0], [1], [0, 0, 1, 1], [], []>, precision = #tpu.contract_precision<fp32>} : vector<32x8xf32>, vector<8x8xf32>, vector<32x8xf32> -> vector<32x8xf32>
    %7 = vector.broadcast %0 : vector<32x1xf32> to vector<32x8xf32>
    %8 = arith.addf %6, %7 : vector<32x8xf32>
    %c0_8 = arith.constant 0 : index
    %c0_9 = arith.constant 0 : index
    %9 = vector.load %arg4[%c0_8, %c0_9] : memref<128x32xf32, #tpu.memory_space<vmem>>, vector<128x32xf32>
    %cst_10 = arith.constant dense<0.000000e+00> : vector<128x8xf32>
    %10 = tpu.matmul %9, %8, %cst_10 {dimension_numbers = #tpu.dot_dimension_numbers<[1], [0], [0], [1], [0, 0, 1, 1], [], []>, precision = #tpu.contract_precision<fp32>} : vector<128x32xf32>, vector<32x8xf32>, vector<128x8xf32> -> vector<128x8xf32>
    %11 = vector.broadcast %1 : vector<128x1xf32> to vector<128x8xf32>
    %12 = arith.addf %10, %11 : vector<128x8xf32>
    %13 = math.tanh %12 : vector<128x8xf32>
    %c0_11 = arith.constant 0 : index
    %c0_12 = arith.constant 0 : index
    %14 = vector.load %arg5[%c0_11, %c0_12] : memref<128x128xf32, #tpu.memory_space<vmem>>, vector<128x128xf32>
    %cst_13 = arith.constant dense<0.000000e+00> : vector<128x8xf32>
    %15 = tpu.matmul %14, %13, %cst_13 {dimension_numbers = #tpu.dot_dimension_numbers<[1], [0], [0], [1], [0, 0, 1, 1], [], []>, precision = #tpu.contract_precision<fp32>} : vector<128x128xf32>, vector<128x8xf32>, vector<128x8xf32> -> vector<128x8xf32>
    %16 = vector.broadcast %2 : vector<128x1xf32> to vector<128x8xf32>
    %17 = arith.addf %15, %16 : vector<128x8xf32>
    %18 = math.tanh %17 : vector<128x8xf32>
    %c0_14 = arith.constant 0 : index
    %c0_15 = arith.constant 0 : index
    %19 = vector.load %arg6[%c0_14, %c0_15] : memref<6x128xf32, #tpu.memory_space<vmem>>, vector<6x128xf32>
    %cst_16 = arith.constant dense<0.000000e+00> : vector<6x8xf32>
    %20 = tpu.matmul %19, %18, %cst_16 {dimension_numbers = #tpu.dot_dimension_numbers<[1], [0], [0], [1], [0, 0, 1, 1], [], []>, precision = #tpu.contract_precision<fp32>} : vector<6x128xf32>, vector<128x8xf32>, vector<6x8xf32> -> vector<6x8xf32>
    %21 = vector.broadcast %3 : vector<6x1xf32> to vector<6x8xf32>
    %22 = arith.addf %20, %21 : vector<6x8xf32>
    %23 = vector.extract_strided_slice %22 {offsets = [0, 0], sizes = [5, 8], strides = [1, 1]} : vector<6x8xf32> to vector<5x8xf32>
    %24 = vector.extract_strided_slice %22 {offsets = [5, 0], sizes = [1, 8], strides = [1, 1]} : vector<6x8xf32> to vector<1x8xf32>
    %cst_17 = arith.constant dense<0xFF800000> : vector<8xf32>
    %25 = vector.multi_reduction <maximumf>, %23, %cst_17 [0] : vector<5x8xf32> to vector<8xf32>
    %26 = vector.shape_cast %25 : vector<8xf32> to vector<1x8xf32>
    %27 = vector.broadcast %26 : vector<1x8xf32> to vector<5x8xf32>
    %28 = arith.subf %23, %27 : vector<5x8xf32>
    %29 = math.exp %28 : vector<5x8xf32>
    %cst_18 = arith.constant dense<0.000000e+00> : vector<8xf32>
    %30 = vector.multi_reduction <add>, %29, %cst_18 [0] : vector<5x8xf32> to vector<8xf32>
    %31 = vector.shape_cast %30 : vector<8xf32> to vector<1x8xf32>
    %32 = math.log %31 : vector<1x8xf32>
    %33 = vector.broadcast %32 : vector<1x8xf32> to vector<5x8xf32>
    %34 = arith.subf %28, %33 : vector<5x8xf32>
    %35 = tpu.concatenate %34, %24 in 0 : vector<5x8xf32>, vector<1x8xf32> -> vector<6x8xf32>
    %c0_19 = arith.constant 0 : index
    %c0_20 = arith.constant 0 : index
    %36 = vector.load %arg1[%c0_19, %c0_20] : memref<1x256xi32, #tpu.memory_space<vmem>>, vector<1x256xi32>
    %37 = tpu.iota {dimensions = array<i32: 0>} : vector<8x256xi32>
    %38 = vector.broadcast %36 : vector<1x256xi32> to vector<8x256xi32>
    %39 = arith.cmpi eq, %37, %38 : vector<8x256xi32>
    %40 = arith.extui %39 : vector<8x256xi1> to vector<8x256xi32>
    %41 = arith.sitofp %40 : vector<8x256xi32> to vector<8x256xf32>
    %cst_21 = arith.constant dense<0.000000e+00> : vector<6x256xf32>
    %42 = tpu.matmul %35, %41, %cst_21 {dimension_numbers = #tpu.dot_dimension_numbers<[1], [0], [0], [1], [0, 0, 1, 1], [], []>, precision = #tpu.contract_precision<fp32>} : vector<6x8xf32>, vector<8x256xf32>, vector<6x256xf32> -> vector<6x256xf32>
    %c0_22 = arith.constant 0 : index
    %c0_23 = arith.constant 0 : index
    %43 = vector.load %arg8[%c0_22, %c0_23] : memref<6x256xf32, #tpu.memory_space<vmem>>, vector<6x256xf32>
    tpu.vector_store %arg8[%c0_22, %c0_23], %42 {strides = array<i32>} : memref<6x256xf32, #tpu.memory_space<vmem>>, vector<6x256xf32>,
    return
  }
  func.func @transform_0(%arg0: i32) -> (i32, i32) {
    %c0_i32 = arith.constant 0 : i32
    %c0_i32_0 = arith.constant 0 : i32
    return %c0_i32, %arg0 : i32, i32
  }
  func.func @transform_1(%arg0: i32) -> (i32, i32) {
    %c0_i32 = arith.constant 0 : i32
    %c0_i32_0 = arith.constant 0 : i32
    %c0_i32_1 = arith.constant 0 : i32
    return %c0_i32, %c0_i32_0 : i32, i32
  }
  func.func @transform_2(%arg0: i32) -> (i32, i32) {
    %c0_i32 = arith.constant 0 : i32
    %c0_i32_0 = arith.constant 0 : i32
    %c0_i32_1 = arith.constant 0 : i32
    return %c0_i32, %c0_i32_0 : i32, i32
  }
  func.func @transform_3(%arg0: i32) -> (i32, i32) {
    %c0_i32 = arith.constant 0 : i32
    %c0_i32_0 = arith.constant 0 : i32
    %c0_i32_1 = arith.constant 0 : i32
    return %c0_i32, %c0_i32_0 : i32, i32
  }
  func.func @transform_4(%arg0: i32) -> (i32, i32) {
    %c0_i32 = arith.constant 0 : i32
    %c0_i32_0 = arith.constant 0 : i32
    %c0_i32_1 = arith.constant 0 : i32
    return %c0_i32, %c0_i32_0 : i32, i32
  }
  func.func @transform_5(%arg0: i32) -> (i32, i32) {
    %c0_i32 = arith.constant 0 : i32
    %c0_i32_0 = arith.constant 0 : i32
    %c0_i32_1 = arith.constant 0 : i32
    return %c0_i32, %c0_i32_0 : i32, i32
  }
  func.func @transform_6(%arg0: i32) -> (i32, i32) {
    %c0_i32 = arith.constant 0 : i32
    %c0_i32_0 = arith.constant 0 : i32
    %c0_i32_1 = arith.constant 0 : i32
    return %c0_i32, %c0_i32_0 : i32, i32
  }
  func.func @transform_7(%arg0: i32) -> (i32, i32) {
    %c0_i32 = arith.constant 0 : i32
    %c0_i32_0 = arith.constant 0 : i32
    return %c0_i32, %arg0 : i32, i32
  }
}

</mosaic_0001>

<llo_original>
// kernel: tpu_custom_call.1
$region0: #{tpu_custom_call.1}
  #allocation0 [shape = 'u32[]', space=smem, size = 0x4, offset = 0x4, fixed_abs, tag = 'smem constant byte address 0x4 - core index']
  #allocation1 [shape = 'u32[144,128]{1,0:T(1,128)}', space=vmem, size = 0x12000, scoped, tag = 'internal scratch']
  %s0 = inlined_call_operand.vmem [shape: s32[1,256], index: 0, kind: input, shape index: {}]
  %s1 = inlined_call_operand.vmem [shape: f32[8,8], index: 1, kind: input, shape index: {}]
  %s2 = inlined_call_operand.vmem [shape: f32[32,8], index: 2, kind: input, shape index: {}]
  %s3 = inlined_call_operand.vmem [shape: f32[128,32], index: 3, kind: input, shape index: {}]
  %s4 = inlined_call_operand.vmem [shape: f32[128,128], index: 4, kind: input, shape index: {}]
  %s5 = inlined_call_operand.vmem [shape: f32[6,128], index: 5, kind: input, shape index: {}]
  %s6 = inlined_call_operand.vmem [shape: f32[128,4], index: 6, kind: input, shape index: {}]
  %s7 = inlined_call_operand.hbm [shape: f32[6,256], index: 7, kind: output, shape index: {}]
  %s8 = sld [smem:[#allocation0]]
  $region38: #{tpu_custom_call.1} parent=0
    _
  %s10 = ssub.s32 1, %s8
  %s11 = scalar_select 0, %s10, %s8
  $region1: #{tpu_custom_call.1} parent=0
    #allocation2 [shape = 'u8[8192]{0}', space=vmem, size = 0x2000, scoped, tag = 'output window, operand 0, single buffered']
    #allocation3 [shape = 's32[1]{0}', space=sflag, size = 0x4, scoped, tag = 'scoped memory for tpu_custom_call.1']
    %12 = vsyncpa [#allocation3], 0
    // Predicated region
    $region2: #{tpu_custom_call.1} parent=1 // pred_check
      _
    $region3: #{tpu_custom_call.1} parent=1 // pred_check_branch
      %14 = sbr.rel (0) target = $region5
    $region4: #{tpu_custom_call.1} parent=1 // pred_region
      _
    $region5: #{tpu_custom_call.1} parent=1 // pred_fallthru
      _
    // Predicated region
    $region6: #{tpu_custom_call.1} parent=1 // pred_check
      _
    $region7: #{tpu_custom_call.1} parent=1 // pred_check_branch
      %16 = sbr.rel (0) target = $region9
    $region8: #{tpu_custom_call.1} parent=1 // pred_region
      _
    $region9: #{tpu_custom_call.1} parent=1 // pred_fallthru
      _
    // Predicated region
    $region10: #{tpu_custom_call.1} parent=1 // pred_check
      _
    $region11: #{tpu_custom_call.1} parent=1 // pred_check_branch
      %18 = sbr.rel (0) target = $region13
    $region12: #{tpu_custom_call.1} parent=1 // pred_region
      _
    $region13: #{tpu_custom_call.1} parent=1 // pred_fallthru
      _
    // Predicated region
    $region14: #{tpu_custom_call.1} parent=1 // pred_check
      _
    $region15: #{tpu_custom_call.1} parent=1 // pred_check_branch
      %20 = sbr.rel (0) target = $region17
    $region16: #{tpu_custom_call.1} parent=1 // pred_region
      _
    $region17: #{tpu_custom_call.1} parent=1 // pred_fallthru
      _
    // Predicated region
    $region18: #{tpu_custom_call.1} parent=1 // pred_check
      _
    $region19: #{tpu_custom_call.1} parent=1 // pred_check_branch
      %22 = sbr.rel (0) target = $region21
    $region20: #{tpu_custom_call.1} parent=1 // pred_region
      _
    $region21: #{tpu_custom_call.1} parent=1 // pred_fallthru
      _
    // Predicated region
    $region22: #{tpu_custom_call.1} parent=1 // pred_check
      _
    $region23: #{tpu_custom_call.1} parent=1 // pred_check_branch
      %24 = sbr.rel (0) target = $region25
    $region24: #{tpu_custom_call.1} parent=1 // pred_region
      _
    $region25: #{tpu_custom_call.1} parent=1 // pred_fallthru
      _
    // Predicated region
    $region26: #{tpu_custom_call.1} parent=1 // pred_check
      _
    $region27: #{tpu_custom_call.1} parent=1 // pred_check_branch
      %26 = sbr.rel (0) target = $region29
    $region28: #{tpu_custom_call.1} parent=1 // pred_region
      _
    $region29: #{tpu_custom_call.1} parent=1 // pred_fallthru
      _
    %v27 = vld [vmem:[%s6] sm:$0xff]
    %v28 = vld [vmem:[%s6 + $0x8] sm:$0xff]
    %v29 = vld [vmem:[%s6 + $0x10] sm:$0xff]
    %v30 = vld [vmem:[%s6 + $0x18] sm:$0xff]
    %v31 = vld [vmem:[%s6 + $0x20] sm:$0xff]
    %v32 = vld [vmem:[%s6 + $0x28] sm:$0xff]
    %v33 = vld [vmem:[%s6 + $0x30] sm:$0xff]
    %v34 = vld [vmem:[%s6 + $0x38] sm:$0xff]
    %v35 = vld [vmem:[%s6 + $0x40] sm:$0xff]
    %v36 = vld [vmem:[%s6 + $0x48] sm:$0xff]
    %v37 = vld [vmem:[%s6 + $0x50] sm:$0xff]
    %v38 = vld [vmem:[%s6 + $0x58] sm:$0xff]
    %v39 = vld [vmem:[%s6 + $0x60] sm:$0xff]
    %v40 = vld [vmem:[%s6 + $0x68] sm:$0xff]
    %v41 = vld [vmem:[%s6 + $0x70] sm:$0xff]
    %v42 = vld [vmem:[%s6 + $0x78] sm:$0xff]
    %v43 = vld [vmem:[%s6] sm:$0x3f]
    %v44 = vld [vmem:[%s2] sm:$0xff]
    %v45 = vld [vmem:[%s2 + $0x8] sm:$0xff]
    %v46 = vld [vmem:[%s2 + $0x10] sm:$0xff]
    %v47 = vld [vmem:[%s2 + $0x18] sm:$0xff]
    %v48 = vld [vmem:[%s1] sm:$0xff]
    %50 = vset.pattern.permute.xlu0 0
    %51 = vperm.xlu0 %50, %v27
    %v52 = vpop.permute.xlu0 %51
    %55 = vset.pattern.permute.xlu0 0
    %56 = vperm.xlu0 %55, %v28
    %v57 = vpop.permute.xlu0 %56
    %60 = vset.pattern.permute.xlu0 0
    %61 = vperm.xlu0 %60, %v29
    %v62 = vpop.permute.xlu0 %61
    %65 = vset.pattern.permute.xlu0 0
    %66 = vperm.xlu0 %65, %v30
    %v67 = vpop.permute.xlu0 %66
    %vm69 = vcmask 64512
    %v71 = vsel %vm69, %v44, 0
    %v74 = vsel %vm69, %v45, 0
    %v77 = vsel %vm69, %v46, 0
    %v80 = vsel %vm69, %v47, 0
    %82 = vmatprep.subr.mxu0 0.0
    %83 = vmatpush1.msra.mxu0 0.0
    %84 = vmatprep.subr.mxu0 0.0
    %85 = vmatpush1.msra.mxu0 0.0
    %86 = vmatprep.subr.mxu0 0.0
    %87 = vmatpush1.msra.mxu0 0.0
    %88 = vmatprep.subr.mxu0 0.0
    %89 = vmatpush1.msra.mxu0 0.0
    %90 = vmatprep.subr.mxu0 0.0
    %91 = vmatpush1.msra.mxu0 0.0
    %92 = vmatprep.subr.mxu0 0.0
    %93 = vmatpush1.msra.mxu0 0.0
    %94 = vmatprep.subr.mxu0 0.0
    %95 = vmatpush1.msra.mxu0 0.0
    %96 = vmatprep.subr.mxu0 0.0
    %97 = vmatpush1.msra.mxu0 0.0
    %98 = vmatprep.subr.mxu0 0.0
    %99 = vmatpush1.msra.mxu0 0.0
    %100 = vmatprep.subr.mxu0 0.0
    %101 = vmatpush1.msra.mxu0 0.0
    %102 = vmatprep.subr.mxu0 0.0
    %103 = vmatpush1.msra.mxu0 0.0
    %104 = vmatprep.subr.mxu0 0.0
    %105 = vmatpush1.msra.mxu0 0.0
    %106 = vmatprep.subr.mxu0 0.0
    %107 = vmatpush1.msra.mxu0 0.0
    %108 = vmatprep.subr.mxu0 0.0
    %109 = vmatpush1.msra.mxu0 0.0
    %110 = vmatprep.subr.mxu0 0.0
    %111 = vmatpush1.msra.mxu0 0.0
    %112 = vmatprep.subr.mxu0 0.0
    %v113 = vand.u32 %v48, 4294901760
    %114 = vmatpush1.msra.mxu0 %v113
    %115 = vmatprep.subr.mxu0 0.0
    %116 = vmatpush2.msra.mxu0 0.0
    %117 = vmatprep.subr.mxu0 0.0
    %118 = vmatpush2.msra.mxu0 0.0
    %119 = vmatprep.subr.mxu0 0.0
    %120 = vmatpush2.msra.mxu0 0.0
    %121 = vmatprep.subr.mxu0 0.0
    %122 = vmatpush2.msra.mxu0 0.0
    %123 = vmatprep.subr.mxu0 0.0
    %124 = vmatpush2.msra.mxu0 0.0
    %125 = vmatprep.subr.mxu0 0.0
    %126 = vmatpush2.msra.mxu0 0.0
    %127 = vmatprep.subr.mxu0 0.0
    %128 = vmatpush2.msra.mxu0 0.0
    %129 = vmatprep.subr.mxu0 0.0
    %130 = vmatpush2.msra.mxu0 0.0
    %131 = vmatprep.subr.mxu0 0.0
    %132 = vmatpush2.msra.mxu0 0.0
    %133 = vmatprep.subr.mxu0 0.0
    %134 = vmatpush2.msra.mxu0 0.0
    %135 = vmatprep.subr.mxu0 0.0
    %136 = vmatpush2.msra.mxu0 0.0
    %137 = vmatprep.subr.mxu0 0.0
    %138 = vmatpush2.msra.mxu0 0.0
    %139 = vmatprep.subr.mxu0 0.0
    %140 = vmatpush2.msra.mxu0 0.0
    %141 = vmatprep.subr.mxu0 0.0
    %142 = vmatpush2.msra.mxu0 0.0
    %143 = vmatprep.subr.mxu0 0.0
    %144 = vmatpush2.msra.mxu0 0.0
    %145 = vmatprep.subr.mxu0 0.0
    %146 = vmatpush2.msra.mxu0 0.0
    %147 = vmatprep.mubr.f32.mxu0 0.0
    %v148 = vand.u32 %v71, 4294901760
    %v149 = vsub.f32 %v71, %v148
    %v150 = vand.u32 %v149, 4294901760
    %v151 = vsub.f32 %v149, %v150
    %v152 = vand.u32 %v151, 4294901760
    %153 = vmatmul.mubr.f32.gmra.mxu0 %v152
    %v154 = vpop.f32.mrf.mxu0
    %v155 = vadd.f32 %v52, %v154
    %v156 = vpop.f32.mrf.mxu0
    %157 = vmatprep.mubr.f32.mxu0 0.0
    %v158 = vand.u32 %v74, 4294901760
    %v159 = vsub.f32 %v74, %v158
    %v160 = vand.u32 %v159, 4294901760
    %v161 = vsub.f32 %v159, %v160
    %v162 = vand.u32 %v161, 4294901760
    %163 = vmatmul.mubr.f32.gmra.mxu0 %v162
    %v164 = vpop.f32.mrf.mxu0
    %v165 = vadd.f32 %v57, %v164
    %v166 = vpop.f32.mrf.mxu0
    %167 = vmatprep.mubr.f32.mxu0 0.0
    %v168 = vand.u32 %v77, 4294901760
    %v169 = vsub.f32 %v77, %v168
    %v170 = vand.u32 %v169, 4294901760
    %v171 = vsub.f32 %v169, %v170
    %v172 = vand.u32 %v171, 4294901760
    %173 = vmatmul.mubr.f32.gmra.mxu0 %v172
    %v174 = vpop.f32.mrf.mxu0
    %v175 = vadd.f32 %v62, %v174
    %v176 = vpop.f32.mrf.mxu0
    %177 = vmatprep.mubr.f32.mxu0 0.0
    %v178 = vand.u32 %v80, 4294901760
    %v179 = vsub.f32 %v80, %v178
    %v180 = vand.u32 %v179, 4294901760
    %v181 = vsub.f32 %v179, %v180
    %v182 = vand.u32 %v181, 4294901760
    %183 = vmatmul.mubr.f32.gmra.mxu0 %v182
    %v184 = vpop.f32.mrf.mxu0
    %v185 = vadd.f32 %v67, %v184
    %v186 = vpop.f32.mrf.mxu0
    %187 = vdwg.mxu0
    %188 = vmatprep.subr.mxu0 0.0
    %189 = vmatpush1.msra.mxu0 0.0
    %190 = vmatprep.subr.mxu0 0.0
    %191 = vmatpush1.msra.mxu0 0.0
    %192 = vmatprep.subr.mxu0 0.0
    %193 = vmatpush1.msra.mxu0 0.0
    %194 = vmatprep.subr.mxu0 0.0
    %195 = vmatpush1.msra.mxu0 0.0
    %196 = vmatprep.subr.mxu0 0.0
    %197 = vmatpush1.msra.mxu0 0.0
    %198 = vmatprep.subr.mxu0 0.0
    %199 = vmatpush1.msra.mxu0 0.0
    %200 = vmatprep.subr.mxu0 0.0
    %201 = vmatpush1.msra.mxu0 0.0
    %202 = vmatprep.subr.mxu0 0.0
    %203 = vmatpush1.msra.mxu0 0.0
    %204 = vmatprep.subr.mxu0 0.0
    %205 = vmatpush1.msra.mxu0 0.0
    %206 = vmatprep.subr.mxu0 0.0
    %207 = vmatpush1.msra.mxu0 0.0
    %208 = vmatprep.subr.mxu0 0.0
    %209 = vmatpush1.msra.mxu0 0.0
    %210 = vmatprep.subr.mxu0 0.0
    %211 = vmatpush1.msra.mxu0 0.0
    %212 = vmatprep.subr.mxu0 0.0
    %213 = vmatpush1.msra.mxu0 0.0
    %214 = vmatprep.subr.mxu0 0.0
    %215 = vmatpush1.msra.mxu0 0.0
    %216 = vmatprep.subr.mxu0 0.0
    %217 = vmatpush1.msra.mxu0 0.0
    %218 = vmatprep.subr.mxu0 0.0
    %v219 = vand.u32 %v48, 4294901760
    %v220 = vsub.f32 %v48, %v219
    %v221 = vand.u32 %v220, 4294901760
    %v222 = vsub.f32 %v220, %v221
    %v223 = vand.u32 %v222, 4294901760
    %224 = vmatpush1.msra.mxu0 %v223
    %225 = vmatprep.subr.mxu0 0.0
    %226 = vmatpush2.msra.mxu0 0.0
    %227 = vmatprep.subr.mxu0 0.0
    %228 = vmatpush2.msra.mxu0 0.0
    %229 = vmatprep.subr.mxu0 0.0
    %230 = vmatpush2.msra.mxu0 0.0
    %231 = vmatprep.subr.mxu0 0.0
    %232 = vmatpush2.msra.mxu0 0.0
    %233 = vmatprep.subr.mxu0 0.0
    %234 = vmatpush2.msra.mxu0 0.0
    %235 = vmatprep.subr.mxu0 0.0
    %236 = vmatpush2.msra.mxu0 0.0
    %237 = vmatprep.subr.mxu0 0.0
    %238 = vmatpush2.msra.mxu0 0.0
    %239 = vmatprep.subr.mxu0 0.0
    %240 = vmatpush2.msra.mxu0 0.0
    %241 = vmatprep.subr.mxu0 0.0
    %242 = vmatpush2.msra.mxu0 0.0
    %243 = vmatprep.subr.mxu0 0.0
    %244 = vmatpush2.msra.mxu0 0.0
    %245 = vmatprep.subr.mxu0 0.0
    %246 = vmatpush2.msra.mxu0 0.0
    %247 = vmatprep.subr.mxu0 0.0
    %248 = vmatpush2.msra.mxu0 0.0
    %249 = vmatprep.subr.mxu0 0.0
    %250 = vmatpush2.msra.mxu0 0.0
    %251 = vmatprep.subr.mxu0 0.0
    %252 = vmatpush2.msra.mxu0 0.0
    %253 = vmatprep.subr.mxu0 0.0
    %254 = vmatpush2.msra.mxu0 0.0
    %255 = vmatprep.subr.mxu0 0.0
    %256 = vmatpush2.msra.mxu0 0.0
    %257 = vmatprep.mubr.f32.mxu0 0.0
    %v258 = vand.u32 %v71, 4294901760
    %259 = vmatmul.mubr.f32.gmra.mxu0 %v258
    %v260 = vpop.f32.mrf.mxu0
    %v261 = vadd.f32 %v155, %v260
    %v262 = vpop.f32.mrf.mxu0
    %263 = vmatprep.mubr.f32.mxu0 0.0
    %v264 = vand.u32 %v74, 4294901760
    %265 = vmatmul.mubr.f32.gmra.mxu0 %v264
    %v266 = vpop.f32.mrf.mxu0
    %v267 = vadd.f32 %v165, %v266
    %v268 = vpop.f32.mrf.mxu0
    %269 = vmatprep.mubr.f32.mxu0 0.0
    %v270 = vand.u32 %v77, 4294901760
    %271 = vmatmul.mubr.f32.gmra.mxu0 %v270
    %v272 = vpop.f32.mrf.mxu0
    %v273 = vadd.f32 %v175, %v272
    %v274 = vpop.f32.mrf.mxu0
    %275 = vmatprep.mubr.f32.mxu0 0.0
    %v276 = vand.u32 %v80, 4294901760
    %277 = vmatmul.mubr.f32.gmra.mxu0 %v276
    %v278 = vpop.f32.mrf.mxu0
    %v279 = vadd.f32 %v185, %v278
    %v280 = vpop.f32.mrf.mxu0
    %281 = vdwg.mxu0
    %282 = vmatprep.subr.mxu0 0.0
    %283 = vmatpush1.msra.mxu0 0.0
    %284 = vmatprep.subr.mxu0 0.0
    %285 = vmatpush1.msra.mxu0 0.0
    %286 = vmatprep.subr.mxu0 0.0
    %287 = vmatpush1.msra.mxu0 0.0
    %288 = vmatprep.subr.mxu0 0.0
    %289 = vmatpush1.msra.mxu0 0.0
    %290 = vmatprep.subr.mxu0 0.0
    %291 = vmatpush1.msra.mxu0 0.0
    %292 = vmatprep.subr.mxu0 0.0
    %293 = vmatpush1.msra.mxu0 0.0
    %294 = vmatprep.subr.mxu0 0.0
    %295 = vmatpush1.msra.mxu0 0.0
    %296 = vmatprep.subr.mxu0 0.0
    %297 = vmatpush1.msra.mxu0 0.0
    %298 = vmatprep.subr.mxu0 0.0
    %299 = vmatpush1.msra.mxu0 0.0
    %300 = vmatprep.subr.mxu0 0.0
    %301 = vmatpush1.msra.mxu0 0.0
    %302 = vmatprep.subr.mxu0 0.0
    %303 = vmatpush1.msra.mxu0 0.0
    %304 = vmatprep.subr.mxu0 0.0
    %305 = vmatpush1.msra.mxu0 0.0
    %306 = vmatprep.subr.mxu0 0.0
    %307 = vmatpush1.msra.mxu0 0.0
    %308 = vmatprep.subr.mxu0 0.0
    %309 = vmatpush1.msra.mxu0 0.0
    %310 = vmatprep.subr.mxu0 0.0
    %311 = vmatpush1.msra.mxu0 0.0
    %312 = vmatprep.subr.mxu0 0.0
    %v313 = vand.u32 %v48, 4294901760
    %v314 = vsub.f32 %v48, %v313
    %315 = vmatpush1.msra.mxu0 %v314
    %316 = vmatprep.subr.mxu0 0.0
    %317 = vmatpush2.msra.mxu0 0.0
    %318 = vmatprep.subr.mxu0 0.0
    %319 = vmatpush2.msra.mxu0 0.0
    %320 = vmatprep.subr.mxu0 0.0
    %321 = vmatpush2.msra.mxu0 0.0
    %322 = vmatprep.subr.mxu0 0.0
    %323 = vmatpush2.msra.mxu0 0.0
    %324 = vmatprep.subr.mxu0 0.0
    %325 = vmatpush2.msra.mxu0 0.0
    %326 = vmatprep.subr.mxu0 0.0
    %327 = vmatpush2.msra.mxu0 0.0
    %328 = vmatprep.subr.mxu0 0.0
    %329 = vmatpush2.msra.mxu0 0.0
    %330 = vmatprep.subr.mxu0 0.0
    %331 = vmatpush2.msra.mxu0 0.0
    %332 = vmatprep.subr.mxu0 0.0
    %333 = vmatpush2.msra.mxu0 0.0
    %334 = vmatprep.subr.mxu0 0.0
    %335 = vmatpush2.msra.mxu0 0.0
    %336 = vmatprep.subr.mxu0 0.0
    %337 = vmatpush2.msra.mxu0 0.0
    %338 = vmatprep.subr.mxu0 0.0
    %339 = vmatpush2.msra.mxu0 0.0
    %340 = vmatprep.subr.mxu0 0.0
    %341 = vmatpush2.msra.mxu0 0.0
    %342 = vmatprep.subr.mxu0 0.0
    %343 = vmatpush2.msra.mxu0 0.0
    %344 = vmatprep.subr.mxu0 0.0
    %345 = vmatpush2.msra.mxu0 0.0
    %346 = vmatprep.subr.mxu0 0.0
    %347 = vmatpush2.msra.mxu0 0.0
    %348 = vmatprep.mubr.f32.mxu0 0.0
    %v349 = vand.u32 %v71, 4294901760
    %v350 = vsub.f32 %v71, %v349
    %351 = vmatmul.mubr.f32.gmra.mxu0 %v350
    %v352 = vpop.f32.mrf.mxu0
    %v353 = vadd.f32 %v261, %v352
    %v354 = vpop.f32.mrf.mxu0
    %355 = vmatprep.mubr.f32.mxu0 0.0
    %v356 = vand.u32 %v74, 4294901760
    %v357 = vsub.f32 %v74, %v356
    %358 = vmatmul.mubr.f32.gmra.mxu0 %v357
    %v359 = vpop.f32.mrf.mxu0
    %v360 = vadd.f32 %v267, %v359
    %v361 = vpop.f32.mrf.mxu0
    %362 = vmatprep.mubr.f32.mxu0 0.0
    %v363 = vand.u32 %v77, 4294901760
    %v364 = vsub.f32 %v77, %v363
    %365 = vmatmul.mubr.f32.gmra.mxu0 %v364
    %v366 = vpop.f32.mrf.mxu0
    %v367 = vadd.f32 %v273, %v366
    %v368 = vpop.f32.mrf.mxu0
    %369 = vmatprep.mubr.f32.mxu0 0.0
    %v370 = vand.u32 %v80, 4294901760
    %v371 = vsub.f32 %v80, %v370
    %372 = vmatmul.mubr.f32.gmra.mxu0 %v371
    %v373 = vpop.f32.mrf.mxu0
    %v374 = vadd.f32 %v279, %v373
    %v375 = vpop.f32.mrf.mxu0
    %376 = vdwg.mxu0
    %377 = vmatprep.subr.mxu0 0.0
    %378 = vmatpush1.msra.mxu0 0.0
    %379 = vmatprep.subr.mxu0 0.0
    %380 = vmatpush1.msra.mxu0 0.0
    %381 = vmatprep.subr.mxu0 0.0
    %382 = vmatpush1.msra.mxu0 0.0
    %383 = vmatprep.subr.mxu0 0.0
    %384 = vmatpush1.msra.mxu0 0.0
    %385 = vmatprep.subr.mxu0 0.0
    %386 = vmatpush1.msra.mxu0 0.0
    %387 = vmatprep.subr.mxu0 0.0
    %388 = vmatpush1.msra.mxu0 0.0
    %389 = vmatprep.subr.mxu0 0.0
    %390 = vmatpush1.msra.mxu0 0.0
    %391 = vmatprep.subr.mxu0 0.0
    %392 = vmatpush1.msra.mxu0 0.0
    %393 = vmatprep.subr.mxu0 0.0
    %394 = vmatpush1.msra.mxu0 0.0
    %395 = vmatprep.subr.mxu0 0.0
    %396 = vmatpush1.msra.mxu0 0.0
    %397 = vmatprep.subr.mxu0 0.0
    %398 = vmatpush1.msra.mxu0 0.0
    %399 = vmatprep.subr.mxu0 0.0
    %400 = vmatpush1.msra.mxu0 0.0
    %401 = vmatprep.subr.mxu0 0.0
    %402 = vmatpush1.msra.mxu0 0.0
    %403 = vmatprep.subr.mxu0 0.0
    %404 = vmatpush1.msra.mxu0 0.0
    %405 = vmatprep.subr.mxu0 0.0
    %406 = vmatpush1.msra.mxu0 0.0
    %407 = vmatprep.subr.mxu0 0.0
    %v408 = vand.u32 %v48, 4294901760
    %409 = vmatpush1.msra.mxu0 %v408
    %410 = vmatprep.subr.mxu0 0.0
    %411 = vmatpush2.msra.mxu0 0.0
    %412 = vmatprep.subr.mxu0 0.0
    %413 = vmatpush2.msra.mxu0 0.0
    %414 = vmatprep.subr.mxu0 0.0
    %415 = vmatpush2.msra.mxu0 0.0
    %416 = vmatprep.subr.mxu0 0.0
    %417 = vmatpush2.msra.mxu0 0.0
    %418 = vmatprep.subr.mxu0 0.0
    %419 = vmatpush2.msra.mxu0 0.0
    %420 = vmatprep.subr.mxu0 0.0
    %421 = vmatpush2.msra.mxu0 0.0
    %422 = vmatprep.subr.mxu0 0.0
    %423 = vmatpush2.msra.mxu0 0.0
    %424 = vmatprep.subr.mxu0 0.0
    %425 = vmatpush2.msra.mxu0 0.0
    %426 = vmatprep.subr.mxu0 0.0
    %427 = vmatpush2.msra.mxu0 0.0
    %428 = vmatprep.subr.mxu0 0.0
    %429 = vmatpush2.msra.mxu0 0.0
    %430 = vmatprep.subr.mxu0 0.0
    %431 = vmatpush2.msra.mxu0 0.0
    %432 = vmatprep.subr.mxu0 0.0
    %433 = vmatpush2.msra.mxu0 0.0
    %434 = vmatprep.subr.mxu0 0.0
    %435 = vmatpush2.msra.mxu0 0.0
    %436 = vmatprep.subr.mxu0 0.0
    %437 = vmatpush2.msra.mxu0 0.0
    %438 = vmatprep.subr.mxu0 0.0
    %439 = vmatpush2.msra.mxu0 0.0
    %440 = vmatprep.subr.mxu0 0.0
    %441 = vmatpush2.msra.mxu0 0.0
    %442 = vmatprep.mubr.f32.mxu0 0.0
    %v443 = vand.u32 %v71, 4294901760
    %v444 = vsub.f32 %v71, %v443
    %v445 = vand.u32 %v444, 4294901760
    %446 = vmatmul.mubr.f32.gmra.mxu0 %v445
    %v447 = vpop.f32.mrf.mxu0
    %v448 = vadd.f32 %v353, %v447
    %v449 = vpop.f32.mrf.mxu0
    %450 = vmatprep.mubr.f32.mxu0 0.0
    %v451 = vand.u32 %v74, 4294901760
    %v452 = vsub.f32 %v74, %v451
    %v453 = vand.u32 %v452, 4294901760
    %454 = vmatmul.mubr.f32.gmra.mxu0 %v453
    %v455 = vpop.f32.mrf.mxu0
    %v456 = vadd.f32 %v360, %v455
    %v457 = vpop.f32.mrf.mxu0
    %458 = vmatprep.mubr.f32.mxu0 0.0
    %v459 = vand.u32 %v77, 4294901760
    %v460 = vsub.f32 %v77, %v459
    %v461 = vand.u32 %v460, 4294901760
    %462 = vmatmul.mubr.f32.gmra.mxu0 %v461
    %v463 = vpop.f32.mrf.mxu0
    %v464 = vadd.f32 %v367, %v463
    %v465 = vpop.f32.mrf.mxu0
    %466 = vmatprep.mubr.f32.mxu0 0.0
    %v467 = vand.u32 %v80, 4294901760
    %v468 = vsub.f32 %v80, %v467
    %v469 = vand.u32 %v468, 4294901760
    %470 = vmatmul.mubr.f32.gmra.mxu0 %v469
    %v471 = vpop.f32.mrf.mxu0
    %v472 = vadd.f32 %v374, %v471
    %v473 = vpop.f32.mrf.mxu0
    %474 = vdwg.mxu0
    %475 = vmatprep.subr.mxu0 0.0
    %476 = vmatpush1.msra.mxu0 0.0
    %477 = vmatprep.subr.mxu0 0.0
    %478 = vmatpush1.msra.mxu0 0.0
    %479 = vmatprep.subr.mxu0 0.0
    %480 = vmatpush1.msra.mxu0 0.0
    %481 = vmatprep.subr.mxu0 0.0
    %482 = vmatpush1.msra.mxu0 0.0
    %483 = vmatprep.subr.mxu0 0.0
    %484 = vmatpush1.msra.mxu0 0.0
    %485 = vmatprep.subr.mxu0 0.0
    %486 = vmatpush1.msra.mxu0 0.0
    %487 = vmatprep.subr.mxu0 0.0
    %488 = vmatpush1.msra.mxu0 0.0
    %489 = vmatprep.subr.mxu0 0.0
    %490 = vmatpush1.msra.mxu0 0.0
    %491 = vmatprep.subr.mxu0 0.0
    %492 = vmatpush1.msra.mxu0 0.0
    %493 = vmatprep.subr.mxu0 0.0
    %494 = vmatpush1.msra.mxu0 0.0
    %495 = vmatprep.subr.mxu0 0.0
    %496 = vmatpush1.msra.mxu0 0.0
    %497 = vmatprep.subr.mxu0 0.0
    %498 = vmatpush1.msra.mxu0 0.0
    %499 = vmatprep.subr.mxu0 0.0
    %500 = vmatpush1.msra.mxu0 0.0
    %501 = vmatprep.subr.mxu0 0.0
    %502 = vmatpush1.msra.mxu0 0.0
    %503 = vmatprep.subr.mxu0 0.0
    %504 = vmatpush1.msra.mxu0 0.0
    %505 = vmatprep.subr.mxu0 0.0
    %v506 = vand.u32 %v48, 4294901760
    %v507 = vsub.f32 %v48, %v506
    %v508 = vand.u32 %v507, 4294901760
    %509 = vmatpush1.msra.mxu0 %v508
    %510 = vmatprep.subr.mxu0 0.0
    %511 = vmatpush2.msra.mxu0 0.0
    %512 = vmatprep.subr.mxu0 0.0
    %513 = vmatpush2.msra.mxu0 0.0
    %514 = vmatprep.subr.mxu0 0.0
    %515 = vmatpush2.msra.mxu0 0.0
    %516 = vmatprep.subr.mxu0 0.0
    %517 = vmatpush2.msra.mxu0 0.0
    %518 = vmatprep.subr.mxu0 0.0
    %519 = vmatpush2.msra.mxu0 0.0
    %520 = vmatprep.subr.mxu0 0.0
    %521 = vmatpush2.msra.mxu0 0.0
    %522 = vmatprep.subr.mxu0 0.0
    %523 = vmatpush2.msra.mxu0 0.0
    %524 = vmatprep.subr.mxu0 0.0
    %525 = vmatpush2.msra.mxu0 0.0
    %526 = vmatprep.subr.mxu0 0.0
    %527 = vmatpush2.msra.mxu0 0.0
    %528 = vmatprep.subr.mxu0 0.0
    %529 = vmatpush2.msra.mxu0 0.0
    %530 = vmatprep.subr.mxu0 0.0
    %531 = vmatpush2.msra.mxu0 0.0
    %532 = vmatprep.subr.mxu0 0.0
    %533 = vmatpush2.msra.mxu0 0.0
    %534 = vmatprep.subr.mxu0 0.0
    %535 = vmatpush2.msra.mxu0 0.0
    %536 = vmatprep.subr.mxu0 0.0
    %537 = vmatpush2.msra.mxu0 0.0
    %538 = vmatprep.subr.mxu0 0.0
    %539 = vmatpush2.msra.mxu0 0.0
    %540 = vmatprep.subr.mxu0 0.0
    %541 = vmatpush2.msra.mxu0 0.0
    %542 = vmatprep.mubr.f32.mxu0 0.0
    %v543 = vand.u32 %v71, 4294901760
    %544 = vmatmul.mubr.f32.gmra.mxu0 %v543
    %v545 = vpop.f32.mrf.mxu0
    %v546 = vadd.f32 %v448, %v545
    %v547 = vpop.f32.mrf.mxu0
    %548 = vmatprep.mubr.f32.mxu0 0.0
    %v549 = vand.u32 %v74, 4294901760
    %550 = vmatmul.mubr.f32.gmra.mxu0 %v549
    %v551 = vpop.f32.mrf.mxu0
    %v552 = vadd.f32 %v456, %v551
    %v553 = vpop.f32.mrf.mxu0
    %554 = vmatprep.mubr.f32.mxu0 0.0
    %v555 = vand.u32 %v77, 4294901760
    %556 = vmatmul.mubr.f32.gmra.mxu0 %v555
    %v557 = vpop.f32.mrf.mxu0
    %v558 = vadd.f32 %v464, %v557
    %v559 = vpop.f32.mrf.mxu0
    %560 = vmatprep.mubr.f32.mxu0 0.0
    %v561 = vand.u32 %v80, 4294901760
    %562 = vmatmul.mubr.f32.gmra.mxu0 %v561
    %v563 = vpop.f32.mrf.mxu0
    %v564 = vadd.f32 %v472, %v563
    %v565 = vpop.f32.mrf.mxu0
    %566 = vdwg.mxu0
    %567 = vmatprep.subr.mxu0 0.0
    %568 = vmatpush1.msra.mxu0 0.0
    %569 = vmatprep.subr.mxu0 0.0
    %570 = vmatpush1.msra.mxu0 0.0
    %571 = vmatprep.subr.mxu0 0.0
    %572 = vmatpush1.msra.mxu0 0.0
    %573 = vmatprep.subr.mxu0 0.0
    %574 = vmatpush1.msra.mxu0 0.0
    %575 = vmatprep.subr.mxu0 0.0
    %576 = vmatpush1.msra.mxu0 0.0
    %577 = vmatprep.subr.mxu0 0.0
    %578 = vmatpush1.msra.mxu0 0.0
    %579 = vmatprep.subr.mxu0 0.0
    %580 = vmatpush1.msra.mxu0 0.0
    %581 = vmatprep.subr.mxu0 0.0
    %582 = vmatpush1.msra.mxu0 0.0
    %583 = vmatprep.subr.mxu0 0.0
    %584 = vmatpush1.msra.mxu0 0.0
    %585 = vmatprep.subr.mxu0 0.0
    %586 = vmatpush1.msra.mxu0 0.0
    %587 = vmatprep.subr.mxu0 0.0
    %588 = vmatpush1.msra.mxu0 0.0
    %589 = vmatprep.subr.mxu0 0.0
    %590 = vmatpush1.msra.mxu0 0.0
    %591 = vmatprep.subr.mxu0 0.0
    %592 = vmatpush1.msra.mxu0 0.0
    %593 = vmatprep.subr.mxu0 0.0
    %594 = vmatpush1.msra.mxu0 0.0
    %595 = vmatprep.subr.mxu0 0.0
    %596 = vmatpush1.msra.mxu0 0.0
    %597 = vmatprep.subr.mxu0 0.0
    %v598 = vand.u32 %v48, 4294901760
    %599 = vmatpush1.msra.mxu0 %v598
    %600 = vmatprep.subr.mxu0 0.0
    %601 = vmatpush2.msra.mxu0 0.0
    %602 = vmatprep.subr.mxu0 0.0
    %603 = vmatpush2.msra.mxu0 0.0
    %604 = vmatprep.subr.mxu0 0.0
    %605 = vmatpush2.msra.mxu0 0.0
    %606 = vmatprep.subr.mxu0 0.0
    %607 = vmatpush2.msra.mxu0 0.0
    %608 = vmatprep.subr.mxu0 0.0
    %609 = vmatpush2.msra.mxu0 0.0
    %610 = vmatprep.subr.mxu0 0.0
    %611 = vmatpush2.msra.mxu0 0.0
    %612 = vmatprep.subr.mxu0 0.0
    %613 = vmatpush2.msra.mxu0 0.0
    %614 = vmatprep.subr.mxu0 0.0
    %615 = vmatpush2.msra.mxu0 0.0
    %616 = vmatprep.subr.mxu0 0.0
    %617 = vmatpush2.msra.mxu0 0.0
    %618 = vmatprep.subr.mxu0 0.0
    %619 = vmatpush2.msra.mxu0 0.0
    %620 = vmatprep.subr.mxu0 0.0
    %621 = vmatpush2.msra.mxu0 0.0
    %622 = vmatprep.subr.mxu0 0.0
    %623 = vmatpush2.msra.mxu0 0.0
    %624 = vmatprep.subr.mxu0 0.0
    %625 = vmatpush2.msra.mxu0 0.0
    %626 = vmatprep.subr.mxu0 0.0
    %627 = vmatpush2.msra.mxu0 0.0
    %628 = vmatprep.subr.mxu0 0.0
    %629 = vmatpush2.msra.mxu0 0.0
    %630 = vmatprep.subr.mxu0 0.0
    %631 = vmatpush2.msra.mxu0 0.0
    %632 = vmatprep.mubr.f32.mxu0 0.0
    %v633 = vand.u32 %v71, 4294901760
    %634 = vmatmul.mubr.f32.gmra.mxu0 %v633
    %v635 = vpop.f32.mrf.mxu0
    %v636 = vadd.f32 %v546, %v635
    %v637 = vpop.f32.mrf.mxu0
    %638 = vmatprep.mubr.f32.mxu0 0.0
    %v639 = vand.u32 %v74, 4294901760
    %640 = vmatmul.mubr.f32.gmra.mxu0 %v639
    %v641 = vpop.f32.mrf.mxu0
    %v642 = vadd.f32 %v552, %v641
    %v643 = vpop.f32.mrf.mxu0
    %644 = vmatprep.mubr.f32.mxu0 0.0
    %v645 = vand.u32 %v77, 4294901760
    %646 = vmatmul.mubr.f32.gmra.mxu0 %v645
    %v647 = vpop.f32.mrf.mxu0
    %v648 = vadd.f32 %v558, %v647
    %v649 = vpop.f32.mrf.mxu0
    %650 = vmatprep.mubr.f32.mxu0 0.0
    %v651 = vand.u32 %v80, 4294901760
    %652 = vmatmul.mubr.f32.gmra.mxu0 %v651
    %v653 = vpop.f32.mrf.mxu0
    %v654 = vadd.f32 %v564, %v653
    %v655 = vpop.f32.mrf.mxu0
    %656 = vdwg.mxu0
    %v657 = vld [vmem:[%s3] sm:$0xff]
    %v658 = vld [vmem:[%s3 + $0x8] sm:$0xff]
    %v659 = vld [vmem:[%s3 + $0x10] sm:$0xff]
    %v660 = vld [vmem:[%s3 + $0x18] sm:$0xff]
    %v661 = vld [vmem:[%s3 + $0x20] sm:$0xff]
    %v662 = vld [vmem:[%s3 + $0x28] sm:$0xff]
    %v663 = vld [vmem:[%s3 + $0x30] sm:$0xff]
    %v664 = vld [vmem:[%s3 + $0x38] sm:$0xff]
    %v665 = vld [vmem:[%s3 + $0x40] sm:$0xff]
    %v666 = vld [vmem:[%s3 + $0x48] sm:$0xff]
    %v667 = vld [vmem:[%s3 + $0x50] sm:$0xff]
    %v668 = vld [vmem:[%s3 + $0x58] sm:$0xff]
    %v669 = vld [vmem:[%s3 + $0x60] sm:$0xff]
    %v670 = vld [vmem:[%s3 + $0x68] sm:$0xff]
    %v671 = vld [vmem:[%s3 + $0x70] sm:$0xff]
    %v672 = vld [vmem:[%s3 + $0x78] sm:$0xff]
    %673 = vset.pattern.permute.xlu0 1
    %674 = vperm.xlu0 %673, %v27
    %v675 = vpop.permute.xlu0 %674
    %677 = vset.pattern.permute.xlu0 1
    %678 = vperm.xlu0 %677, %v28
    %v679 = vpop.permute.xlu0 %678
    %681 = vset.pattern.permute.xlu0 1
    %682 = vperm.xlu0 %681, %v29
    %v683 = vpop.permute.xlu0 %682
    %685 = vset.pattern.permute.xlu0 1
    %686 = vperm.xlu0 %685, %v30
    %v687 = vpop.permute.xlu0 %686
    %690 = vset.pattern.permute.xlu0 1
    %691 = vperm.xlu0 %690, %v31
    %v692 = vpop.permute.xlu0 %691
    %695 = vset.pattern.permute.xlu0 1
    %696 = vperm.xlu0 %695, %v32
    %v697 = vpop.permute.xlu0 %696
    %700 = vset.pattern.permute.xlu0 1
    %701 = vperm.xlu0 %700, %v33
    %v702 = vpop.permute.xlu0 %701
    %705 = vset.pattern.permute.xlu0 1
    %706 = vperm.xlu0 %705, %v34
    %v707 = vpop.permute.xlu0 %706
    %710 = vset.pattern.permute.xlu0 1
    %711 = vperm.xlu0 %710, %v35
    %v712 = vpop.permute.xlu0 %711
    %715 = vset.pattern.permute.xlu0 1
    %716 = vperm.xlu0 %715, %v36
    %v717 = vpop.permute.xlu0 %716
    %720 = vset.pattern.permute.xlu0 1
    %721 = vperm.xlu0 %720, %v37
    %v722 = vpop.permute.xlu0 %721
    %725 = vset.pattern.permute.xlu0 1
    %726 = vperm.xlu0 %725, %v38
    %v727 = vpop.permute.xlu0 %726
    %730 = vset.pattern.permute.xlu0 1
    %731 = vperm.xlu0 %730, %v39
    %v732 = vpop.permute.xlu0 %731
    %735 = vset.pattern.permute.xlu0 1
    %736 = vperm.xlu0 %735, %v40
    %v737 = vpop.permute.xlu0 %736
    %740 = vset.pattern.permute.xlu0 1
    %741 = vperm.xlu0 %740, %v41
    %v742 = vpop.permute.xlu0 %741
    %745 = vset.pattern.permute.xlu0 1
    %746 = vperm.xlu0 %745, %v42
    %v747 = vpop.permute.xlu0 %746
    %vm749 = vcmask 261120
    %v751 = vsel %vm749, %v657, 0
    %v754 = vsel %vm749, %v658, 0
    %v757 = vsel %vm749, %v659, 0
    %v760 = vsel %vm749, %v660, 0
    %v763 = vsel %vm749, %v661, 0
    %v766 = vsel %vm749, %v662, 0
    %v769 = vsel %vm749, %v663, 0
    %v772 = vsel %vm749, %v664, 0
    %v775 = vsel %vm749, %v665, 0
    %v778 = vsel %vm749, %v666, 0
    %v781 = vsel %vm749, %v667, 0
    %v784 = vsel %vm749, %v668, 0
    %v787 = vsel %vm749, %v669, 0
    %v790 = vsel %vm749, %v670, 0
    %v793 = vsel %vm749, %v671, 0
    %v796 = vsel %vm749, %v672, 0
    %798 = vmatprep.subr.mxu0 0.0
    %799 = vmatpush1.msra.mxu0 0.0
    %800 = vmatprep.subr.mxu0 0.0
    %801 = vmatpush1.msra.mxu0 0.0
    %802 = vmatprep.subr.mxu0 0.0
    %803 = vmatpush1.msra.mxu0 0.0
    %804 = vmatprep.subr.mxu0 0.0
    %805 = vmatpush1.msra.mxu0 0.0
    %806 = vmatprep.subr.mxu0 0.0
    %807 = vmatpush1.msra.mxu0 0.0
    %808 = vmatprep.subr.mxu0 0.0
    %809 = vmatpush1.msra.mxu0 0.0
    %810 = vmatprep.subr.mxu0 0.0
    %811 = vmatpush1.msra.mxu0 0.0
    %812 = vmatprep.subr.mxu0 0.0
    %813 = vmatpush1.msra.mxu0 0.0
    %814 = vmatprep.subr.mxu0 0.0
    %815 = vmatpush1.msra.mxu0 0.0
    %816 = vmatprep.subr.mxu0 0.0
    %817 = vmatpush1.msra.mxu0 0.0
    %818 = vmatprep.subr.mxu0 0.0
    %819 = vmatpush1.msra.mxu0 0.0
    %820 = vmatprep.subr.mxu0 0.0
    %821 = vmatpush1.msra.mxu0 0.0
    %822 = vmatprep.subr.mxu0 0.0
    %v823 = vand.u32 %v654, 4294901760
    %824 = vmatpush1.msra.mxu0 %v823
    %825 = vmatprep.subr.mxu0 0.0
    %v826 = vand.u32 %v648, 4294901760
    %827 = vmatpush1.msra.mxu0 %v826
    %828 = vmatprep.subr.mxu0 0.0
    %v829 = vand.u32 %v642, 4294901760
    %830 = vmatpush1.msra.mxu0 %v829
    %831 = vmatprep.subr.mxu0 0.0
    %v832 = vand.u32 %v636, 4294901760
    %833 = vmatpush1.msra.mxu0 %v832
    %834 = vmatprep.subr.mxu0 0.0
    %835 = vmatpush2.msra.mxu0 0.0
    %836 = vmatprep.subr.mxu0 0.0
    %837 = vmatpush2.msra.mxu0 0.0
    %838 = vmatprep.subr.mxu0 0.0
    %839 = vmatpush2.msra.mxu0 0.0
    %840 = vmatprep.subr.mxu0 0.0
    %841 = vmatpush2.msra.mxu0 0.0
    %842 = vmatprep.subr.mxu0 0.0
    %843 = vmatpush2.msra.mxu0 0.0
    %844 = vmatprep.subr.mxu0 0.0
    %845 = vmatpush2.msra.mxu0 0.0
    %846 = vmatprep.subr.mxu0 0.0
    %847 = vmatpush2.msra.mxu0 0.0
    %848 = vmatprep.subr.mxu0 0.0
    %849 = vmatpush2.msra.mxu0 0.0
    %850 = vmatprep.subr.mxu0 0.0
    %851 = vmatpush2.msra.mxu0 0.0
    %852 = vmatprep.subr.mxu0 0.0
    %853 = vmatpush2.msra.mxu0 0.0
    %854 = vmatprep.subr.mxu0 0.0
    %855 = vmatpush2.msra.mxu0 0.0
    %856 = vmatprep.subr.mxu0 0.0
    %857 = vmatpush2.msra.mxu0 0.0
    %858 = vmatprep.subr.mxu0 0.0
    %859 = vmatpush2.msra.mxu0 0.0
    %860 = vmatprep.subr.mxu0 0.0
    %861 = vmatpush2.msra.mxu0 0.0
    %862 = vmatprep.subr.mxu0 0.0
    %863 = vmatpush2.msra.mxu0 0.0
    %864 = vmatprep.subr.mxu0 0.0
    %865 = vmatpush2.msra.mxu0 0.0
    %866 = vmatprep.mubr.f32.mxu0 0.0
    %v867 = vand.u32 %v751, 4294901760
    %v868 = vsub.f32 %v751, %v867
    %v869 = vand.u32 %v868, 4294901760
    %v870 = vsub.f32 %v868, %v869
    %v871 = vand.u32 %v870, 4294901760
    %872 = vmatmul.mubr.f32.gmra.mxu0 %v871
    %v873 = vpop.f32.mrf.mxu0
    %v874 = vadd.f32 %v675, %v873
    %v875 = vpop.f32.mrf.mxu0
    %876 = vmatprep.mubr.f32.mxu0 0.0
    %v877 = vand.u32 %v754, 4294901760
    %v878 = vsub.f32 %v754, %v877
    %v879 = vand.u32 %v878, 4294901760
    %v880 = vsub.f32 %v878, %v879
    %v881 = vand.u32 %v880, 4294901760
    %882 = vmatmul.mubr.f32.gmra.mxu0 %v881
    %v883 = vpop.f32.mrf.mxu0
    %v884 = vadd.f32 %v679, %v883
    %v885 = vpop.f32.mrf.mxu0
    %886 = vmatprep.mubr.f32.mxu0 0.0
    %v887 = vand.u32 %v757, 4294901760
    %v888 = vsub.f32 %v757, %v887
    %v889 = vand.u32 %v888, 4294901760
    %v890 = vsub.f32 %v888, %v889
    %v891 = vand.u32 %v890, 4294901760
    %892 = vmatmul.mubr.f32.gmra.mxu0 %v891
    %v893 = vpop.f32.mrf.mxu0
    %v894 = vadd.f32 %v683, %v893
    %v895 = vpop.f32.mrf.mxu0
    %896 = vmatprep.mubr.f32.mxu0 0.0
    %v897 = vand.u32 %v760, 4294901760
    %v898 = vsub.f32 %v760, %v897
    %v899 = vand.u32 %v898, 4294901760
    %v900 = vsub.f32 %v898, %v899
    %v901 = vand.u32 %v900, 4294901760
    %902 = vmatmul.mubr.f32.gmra.mxu0 %v901
    %v903 = vpop.f32.mrf.mxu0
    %v904 = vadd.f32 %v687, %v903
    %v905 = vpop.f32.mrf.mxu0
    %906 = vmatprep.mubr.f32.mxu0 0.0
    %v907 = vand.u32 %v763, 4294901760
    %v908 = vsub.f32 %v763, %v907
    %v909 = vand.u32 %v908, 4294901760
    %v910 = vsub.f32 %v908, %v909
    %v911 = vand.u32 %v910, 4294901760
    %912 = vmatmul.mubr.f32.gmra.mxu0 %v911
    %v913 = vpop.f32.mrf.mxu0
    %v914 = vadd.f32 %v692, %v913
    %v915 = vpop.f32.mrf.mxu0
    %916 = vmatprep.mubr.f32.mxu0 0.0
    %v917 = vand.u32 %v766, 4294901760
    %v918 = vsub.f32 %v766, %v917
    %v919 = vand.u32 %v918, 4294901760
    %v920 = vsub.f32 %v918, %v919
    %v921 = vand.u32 %v920, 4294901760
    %922 = vmatmul.mubr.f32.gmra.mxu0 %v921
    %v923 = vpop.f32.mrf.mxu0
    %v924 = vadd.f32 %v697, %v923
    %v925 = vpop.f32.mrf.mxu0
    %926 = vmatprep.mubr.f32.mxu0 0.0
    %v927 = vand.u32 %v769, 4294901760
    %v928 = vsub.f32 %v769, %v927
    %v929 = vand.u32 %v928, 4294901760
    %v930 = vsub.f32 %v928, %v929
    %v931 = vand.u32 %v930, 4294901760
    %932 = vmatmul.mubr.f32.gmra.mxu0 %v931
    %v933 = vpop.f32.mrf.mxu0
    %v934 = vadd.f32 %v702, %v933
    %v935 = vpop.f32.mrf.mxu0
    %936 = vmatprep.mubr.f32.mxu0 0.0
    %v937 = vand.u32 %v772, 4294901760
    %v938 = vsub.f32 %v772, %v937
    %v939 = vand.u32 %v938, 4294901760
    %v940 = vsub.f32 %v938, %v939
    %v941 = vand.u32 %v940, 4294901760
    %942 = vmatmul.mubr.f32.gmra.mxu0 %v941
    %v943 = vpop.f32.mrf.mxu0
    %v944 = vadd.f32 %v707, %v943
    %v945 = vpop.f32.mrf.mxu0
    %946 = vmatprep.mubr.f32.mxu0 0.0
    %v947 = vand.u32 %v775, 4294901760
    %v948 = vsub.f32 %v775, %v947
    %v949 = vand.u32 %v948, 4294901760
    %v950 = vsub.f32 %v948, %v949
    %v951 = vand.u32 %v950, 4294901760
    %952 = vmatmul.mubr.f32.gmra.mxu0 %v951
    %v953 = vpop.f32.mrf.mxu0
    %v954 = vadd.f32 %v712, %v953
    %v955 = vpop.f32.mrf.mxu0
    %956 = vmatprep.mubr.f32.mxu0 0.0
    %v957 = vand.u32 %v778, 4294901760
    %v958 = vsub.f32 %v778, %v957
    %v959 = vand.u32 %v958, 4294901760
    %v960 = vsub.f32 %v958, %v959
    %v961 = vand.u32 %v960, 4294901760
    %962 = vmatmul.mubr.f32.gmra.mxu0 %v961
    %v963 = vpop.f32.mrf.mxu0
    %v964 = vadd.f32 %v717, %v963
    %v965 = vpop.f32.mrf.mxu0
    %966 = vmatprep.mubr.f32.mxu0 0.0
    %v967 = vand.u32 %v781, 4294901760
    %v968 = vsub.f32 %v781, %v967
    %v969 = vand.u32 %v968, 4294901760
    %v970 = vsub.f32 %v968, %v969
    %v971 = vand.u32 %v970, 4294901760
    %972 = vmatmul.mubr.f32.gmra.mxu0 %v971
    %v973 = vpop.f32.mrf.mxu0
    %v974 = vadd.f32 %v722, %v973
    %v975 = vpop.f32.mrf.mxu0
    %976 = vmatprep.mubr.f32.mxu0 0.0
    %v977 = vand.u32 %v784, 4294901760
    %v978 = vsub.f32 %v784, %v977
    %v979 = vand.u32 %v978, 4294901760
    %v980 = vsub.f32 %v978, %v979
    %v981 = vand.u32 %v980, 4294901760
    %982 = vmatmul.mubr.f32.gmra.mxu0 %v981
    %v983 = vpop.f32.mrf.mxu0
    %v984 = vadd.f32 %v727, %v983
    %v985 = vpop.f32.mrf.mxu0
    %986 = vmatprep.mubr.f32.mxu0 0.0
    %v987 = vand.u32 %v787, 4294901760
    %v988 = vsub.f32 %v787, %v987
    %v989 = vand.u32 %v988, 4294901760
    %v990 = vsub.f32 %v988, %v989
    %v991 = vand.u32 %v990, 4294901760
    %992 = vmatmul.mubr.f32.gmra.mxu0 %v991
    %v993 = vpop.f32.mrf.mxu0
    %v994 = vadd.f32 %v732, %v993
    %v995 = vpop.f32.mrf.mxu0
    %996 = vmatprep.mubr.f32.mxu0 0.0
    %v997 = vand.u32 %v790, 4294901760
    %v998 = vsub.f32 %v790, %v997
    %v999 = vand.u32 %v998, 4294901760
    %v1000 = vsub.f32 %v998, %v999
    %v1001 = vand.u32 %v1000, 4294901760
    %1002 = vmatmul.mubr.f32.gmra.mxu0 %v1001
    %v1003 = vpop.f32.mrf.mxu0
    %v1004 = vadd.f32 %v737, %v1003
    %v1005 = vpop.f32.mrf.mxu0
    %1006 = vmatprep.mubr.f32.mxu0 0.0
    %v1007 = vand.u32 %v793, 4294901760
    %v1008 = vsub.f32 %v793, %v1007
    %v1009 = vand.u32 %v1008, 4294901760
    %v1010 = vsub.f32 %v1008, %v1009
    %v1011 = vand.u32 %v1010, 4294901760
    %1012 = vmatmul.mubr.f32.gmra.mxu0 %v1011
    %v1013 = vpop.f32.mrf.mxu0
    %v1014 = vadd.f32 %v742, %v1013
    %v1015 = vpop.f32.mrf.mxu0
    %1016 = vmatprep.mubr.f32.mxu0 0.0
    %v1017 = vand.u32 %v796, 4294901760
    %v1018 = vsub.f32 %v796, %v1017
    %v1019 = vand.u32 %v1018, 4294901760
    %v1020 = vsub.f32 %v1018, %v1019
    %v1021 = vand.u32 %v1020, 4294901760
    %1022 = vmatmul.mubr.f32.gmra.mxu0 %v1021
    %v1023 = vpop.f32.mrf.mxu0
    %v1024 = vadd.f32 %v747, %v1023
    %v1025 = vpop.f32.mrf.mxu0
    %1026 = vdwg.mxu0
    %1027 = vmatprep.subr.mxu0 0.0
    %1028 = vmatpush1.msra.mxu0 0.0
    %1029 = vmatprep.subr.mxu0 0.0
    %1030 = vmatpush1.msra.mxu0 0.0
    %1031 = vmatprep.subr.mxu0 0.0
    %1032 = vmatpush1.msra.mxu0 0.0
    %1033 = vmatprep.subr.mxu0 0.0
    %1034 = vmatpush1.msra.mxu0 0.0
    %1035 = vmatprep.subr.mxu0 0.0
    %1036 = vmatpush1.msra.mxu0 0.0
    %1037 = vmatprep.subr.mxu0 0.0
    %1038 = vmatpush1.msra.mxu0 0.0
    %1039 = vmatprep.subr.mxu0 0.0
    %1040 = vmatpush1.msra.mxu0 0.0
    %1041 = vmatprep.subr.mxu0 0.0
    %1042 = vmatpush1.msra.mxu0 0.0
    %1043 = vmatprep.subr.mxu0 0.0
    %1044 = vmatpush1.msra.mxu0 0.0
    %1045 = vmatprep.subr.mxu0 0.0
    %1046 = vmatpush1.msra.mxu0 0.0
    %1047 = vmatprep.subr.mxu0 0.0
    %1048 = vmatpush1.msra.mxu0 0.0
    %1049 = vmatprep.subr.mxu0 0.0
    %1050 = vmatpush1.msra.mxu0 0.0
    %1051 = vmatprep.subr.mxu0 0.0
    %v1052 = vand.u32 %v654, 4294901760
    %v1053 = vsub.f32 %v654, %v1052
    %v1054 = vand.u32 %v1053, 4294901760
    %v1055 = vsub.f32 %v1053, %v1054
    %v1056 = vand.u32 %v1055, 4294901760
    %1057 = vmatpush1.msra.mxu0 %v1056
    %1058 = vmatprep.subr.mxu0 0.0
    %v1059 = vand.u32 %v648, 4294901760
    %v1060 = vsub.f32 %v648, %v1059
    %v1061 = vand.u32 %v1060, 4294901760
    %v1062 = vsub.f32 %v1060, %v1061
    %v1063 = vand.u32 %v1062, 4294901760
    %1064 = vmatpush1.msra.mxu0 %v1063
    %1065 = vmatprep.subr.mxu0 0.0
    %v1066 = vand.u32 %v642, 4294901760
    %v1067 = vsub.f32 %v642, %v1066
    %v1068 = vand.u32 %v1067, 4294901760
    %v1069 = vsub.f32 %v1067, %v1068
    %v1070 = vand.u32 %v1069, 4294901760
    %1071 = vmatpush1.msra.mxu0 %v1070
    %1072 = vmatprep.subr.mxu0 0.0
    %v1073 = vand.u32 %v636, 4294901760
    %v1074 = vsub.f32 %v636, %v1073
    %v1075 = vand.u32 %v1074, 4294901760
    %v1076 = vsub.f32 %v1074, %v1075
    %v1077 = vand.u32 %v1076, 4294901760
    %1078 = vmatpush1.msra.mxu0 %v1077
    %1079 = vmatprep.subr.mxu0 0.0
    %1080 = vmatpush2.msra.mxu0 0.0
    %1081 = vmatprep.subr.mxu0 0.0
    %1082 = vmatpush2.msra.mxu0 0.0
    %1083 = vmatprep.subr.mxu0 0.0
    %1084 = vmatpush2.msra.mxu0 0.0
    %1085 = vmatprep.subr.mxu0 0.0
    %1086 = vmatpush2.msra.mxu0 0.0
    %1087 = vmatprep.subr.mxu0 0.0
    %1088 = vmatpush2.msra.mxu0 0.0
    %1089 = vmatprep.subr.mxu0 0.0
    %1090 = vmatpush2.msra.mxu0 0.0
    %1091 = vmatprep.subr.mxu0 0.0
    %1092 = vmatpush2.msra.mxu0 0.0
    %1093 = vmatprep.subr.mxu0 0.0
    %1094 = vmatpush2.msra.mxu0 0.0
    %1095 = vmatprep.subr.mxu0 0.0
    %1096 = vmatpush2.msra.mxu0 0.0
    %1097 = vmatprep.subr.mxu0 0.0
    %1098 = vmatpush2.msra.mxu0 0.0
    %1099 = vmatprep.subr.mxu0 0.0
    %1100 = vmatpush2.msra.mxu0 0.0
    %1101 = vmatprep.subr.mxu0 0.0
    %1102 = vmatpush2.msra.mxu0 0.0
    %1103 = vmatprep.subr.mxu0 0.0
    %1104 = vmatpush2.msra.mxu0 0.0
    %1105 = vmatprep.subr.mxu0 0.0
    %1106 = vmatpush2.msra.mxu0 0.0
    %1107 = vmatprep.subr.mxu0 0.0
    %1108 = vmatpush2.msra.mxu0 0.0
    %1109 = vmatprep.subr.mxu0 0.0
    %1110 = vmatpush2.msra.mxu0 0.0
    %1111 = vmatprep.mubr.f32.mxu0 0.0
    %v1112 = vand.u32 %v751, 4294901760
    %1113 = vmatmul.mubr.f32.gmra.mxu0 %v1112
    %v1114 = vpop.f32.mrf.mxu0
    %v1115 = vadd.f32 %v874, %v1114
    %v1116 = vpop.f32.mrf.mxu0
    %1117 = vmatprep.mubr.f32.mxu0 0.0
    %v1118 = vand.u32 %v754, 4294901760
    %1119 = vmatmul.mubr.f32.gmra.mxu0 %v1118
    %v1120 = vpop.f32.mrf.mxu0
    %v1121 = vadd.f32 %v884, %v1120
    %v1122 = vpop.f32.mrf.mxu0
    %1123 = vmatprep.mubr.f32.mxu0 0.0
    %v1124 = vand.u32 %v757, 4294901760
    %1125 = vmatmul.mubr.f32.gmra.mxu0 %v1124
    %v1126 = vpop.f32.mrf.mxu0
    %v1127 = vadd.f32 %v894, %v1126
    %v1128 = vpop.f32.mrf.mxu0
    %1129 = vmatprep.mubr.f32.mxu0 0.0
    %v1130 = vand.u32 %v760, 4294901760
    %1131 = vmatmul.mubr.f32.gmra.mxu0 %v1130
    %v1132 = vpop.f32.mrf.mxu0
    %v1133 = vadd.f32 %v904, %v1132
    %v1134 = vpop.f32.mrf.mxu0
    %1135 = vmatprep.mubr.f32.mxu0 0.0
    %v1136 = vand.u32 %v763, 4294901760
    %1137 = vmatmul.mubr.f32.gmra.mxu0 %v1136
    %v1138 = vpop.f32.mrf.mxu0
    %v1139 = vadd.f32 %v914, %v1138
    %v1140 = vpop.f32.mrf.mxu0
    %1141 = vmatprep.mubr.f32.mxu0 0.0
    %v1142 = vand.u32 %v766, 4294901760
    %1143 = vmatmul.mubr.f32.gmra.mxu0 %v1142
    %v1144 = vpop.f32.mrf.mxu0
    %v1145 = vadd.f32 %v924, %v1144
    %v1146 = vpop.f32.mrf.mxu0
    %1147 = vmatprep.mubr.f32.mxu0 0.0
    %v1148 = vand.u32 %v769, 4294901760
    %1149 = vmatmul.mubr.f32.gmra.mxu0 %v1148
    %v1150 = vpop.f32.mrf.mxu0
    %v1151 = vadd.f32 %v934, %v1150
    %v1152 = vpop.f32.mrf.mxu0
    %1153 = vmatprep.mubr.f32.mxu0 0.0
    %v1154 = vand.u32 %v772, 4294901760
    %1155 = vmatmul.mubr.f32.gmra.mxu0 %v1154
    %v1156 = vpop.f32.mrf.mxu0
    %v1157 = vadd.f32 %v944, %v1156
    %v1158 = vpop.f32.mrf.mxu0
    %1159 = vmatprep.mubr.f32.mxu0 0.0
    %v1160 = vand.u32 %v775, 4294901760
    %1161 = vmatmul.mubr.f32.gmra.mxu0 %v1160
    %v1162 = vpop.f32.mrf.mxu0
    %v1163 = vadd.f32 %v954, %v1162
    %v1164 = vpop.f32.mrf.mxu0
    %1165 = vmatprep.mubr.f32.mxu0 0.0
    %v1166 = vand.u32 %v778, 4294901760
    %1167 = vmatmul.mubr.f32.gmra.mxu0 %v1166
    %v1168 = vpop.f32.mrf.mxu0
    %v1169 = vadd.f32 %v964, %v1168
    %v1170 = vpop.f32.mrf.mxu0
    %1171 = vmatprep.mubr.f32.mxu0 0.0
    %v1172 = vand.u32 %v781, 4294901760
    %1173 = vmatmul.mubr.f32.gmra.mxu0 %v1172
    %v1174 = vpop.f32.mrf.mxu0
    %v1175 = vadd.f32 %v974, %v1174
    %v1176 = vpop.f32.mrf.mxu0
    %1177 = vmatprep.mubr.f32.mxu0 0.0
    %v1178 = vand.u32 %v784, 4294901760
    %1179 = vmatmul.mubr.f32.gmra.mxu0 %v1178
    %v1180 = vpop.f32.mrf.mxu0
    %v1181 = vadd.f32 %v984, %v1180
    %v1182 = vpop.f32.mrf.mxu0
    %1183 = vmatprep.mubr.f32.mxu0 0.0
    %v1184 = vand.u32 %v787, 4294901760
    %1185 = vmatmul.mubr.f32.gmra.mxu0 %v1184
    %v1186 = vpop.f32.mrf.mxu0
    %v1187 = vadd.f32 %v994, %v1186
    %v1188 = vpop.f32.mrf.mxu0
    %1189 = vmatprep.mubr.f32.mxu0 0.0
    %v1190 = vand.u32 %v790, 4294901760
    %1191 = vmatmul.mubr.f32.gmra.mxu0 %v1190
    %v1192 = vpop.f32.mrf.mxu0
    %v1193 = vadd.f32 %v1004, %v1192
    %v1194 = vpop.f32.mrf.mxu0
    %1195 = vmatprep.mubr.f32.mxu0 0.0
    %v1196 = vand.u32 %v793, 4294901760
    %1197 = vmatmul.mubr.f32.gmra.mxu0 %v1196
    %v1198 = vpop.f32.mrf.mxu0
    %v1199 = vadd.f32 %v1014, %v1198
    %v1200 = vpop.f32.mrf.mxu0
    %1201 = vmatprep.mubr.f32.mxu0 0.0
    %v1202 = vand.u32 %v796, 4294901760
    %1203 = vmatmul.mubr.f32.gmra.mxu0 %v1202
    %v1204 = vpop.f32.mrf.mxu0
    %v1205 = vadd.f32 %v1024, %v1204
    %v1206 = vpop.f32.mrf.mxu0
    %1207 = vdwg.mxu0
    %1208 = vmatprep.subr.mxu0 0.0
    %1209 = vmatpush1.msra.mxu0 0.0
    %1210 = vmatprep.subr.mxu0 0.0
    %1211 = vmatpush1.msra.mxu0 0.0
    %1212 = vmatprep.subr.mxu0 0.0
    %1213 = vmatpush1.msra.mxu0 0.0
    %1214 = vmatprep.subr.mxu0 0.0
    %1215 = vmatpush1.msra.mxu0 0.0
    %1216 = vmatprep.subr.mxu0 0.0
    %1217 = vmatpush1.msra.mxu0 0.0
    %1218 = vmatprep.subr.mxu0 0.0
    %1219 = vmatpush1.msra.mxu0 0.0
    %1220 = vmatprep.subr.mxu0 0.0
    %1221 = vmatpush1.msra.mxu0 0.0
    %1222 = vmatprep.subr.mxu0 0.0
    %1223 = vmatpush1.msra.mxu0 0.0
    %1224 = vmatprep.subr.mxu0 0.0
    %1225 = vmatpush1.msra.mxu0 0.0
    %1226 = vmatprep.subr.mxu0 0.0
    %1227 = vmatpush1.msra.mxu0 0.0
    %1228 = vmatprep.subr.mxu0 0.0
    %1229 = vmatpush1.msra.mxu0 0.0
    %1230 = vmatprep.subr.mxu0 0.0
    %1231 = vmatpush1.msra.mxu0 0.0
    %1232 = vmatprep.subr.mxu0 0.0
    %v1233 = vand.u32 %v654, 4294901760
    %v1234 = vsub.f32 %v654, %v1233
    %1235 = vmatpush1.msra.mxu0 %v1234
    %1236 = vmatprep.subr.mxu0 0.0
    %v1237 = vand.u32 %v648, 4294901760
    %v1238 = vsub.f32 %v648, %v1237
    %1239 = vmatpush1.msra.mxu0 %v1238
    %1240 = vmatprep.subr.mxu0 0.0
    %v1241 = vand.u32 %v642, 4294901760
    %v1242 = vsub.f32 %v642, %v1241
    %1243 = vmatpush1.msra.mxu0 %v1242
    %1244 = vmatprep.subr.mxu0 0.0
    %v1245 = vand.u32 %v636, 4294901760
    %v1246 = vsub.f32 %v636, %v1245
    %1247 = vmatpush1.msra.mxu0 %v1246
    %1248 = vmatprep.subr.mxu0 0.0
    %1249 = vmatpush2.msra.mxu0 0.0
    %1250 = vmatprep.subr.mxu0 0.0
    %1251 = vmatpush2.msra.mxu0 0.0
    %1252 = vmatprep.subr.mxu0 0.0
    %1253 = vmatpush2.msra.mxu0 0.0
    %1254 = vmatprep.subr.mxu0 0.0
    %1255 = vmatpush2.msra.mxu0 0.0
    %1256 = vmatprep.subr.mxu0 0.0
    %1257 = vmatpush2.msra.mxu0 0.0
    %1258 = vmatprep.subr.mxu0 0.0
    %1259 = vmatpush2.msra.mxu0 0.0
    %1260 = vmatprep.subr.mxu0 0.0
    %1261 = vmatpush2.msra.mxu0 0.0
    %1262 = vmatprep.subr.mxu0 0.0
    %1263 = vmatpush2.msra.mxu0 0.0
    %1264 = vmatprep.subr.mxu0 0.0
    %1265 = vmatpush2.msra.mxu0 0.0
    %1266 = vmatprep.subr.mxu0 0.0
    %1267 = vmatpush2.msra.mxu0 0.0
    %1268 = vmatprep.subr.mxu0 0.0
    %1269 = vmatpush2.msra.mxu0 0.0
    %1270 = vmatprep.subr.mxu0 0.0
    %1271 = vmatpush2.msra.mxu0 0.0
    %1272 = vmatprep.subr.mxu0 0.0
    %1273 = vmatpush2.msra.mxu0 0.0
    %1274 = vmatprep.subr.mxu0 0.0
    %1275 = vmatpush2.msra.mxu0 0.0
    %1276 = vmatprep.subr.mxu0 0.0
    %1277 = vmatpush2.msra.mxu0 0.0
    %1278 = vmatprep.subr.mxu0 0.0
    %1279 = vmatpush2.msra.mxu0 0.0
    %1280 = vmatprep.mubr.f32.mxu0 0.0
    %v1281 = vand.u32 %v751, 4294901760
    %v1282 = vsub.f32 %v751, %v1281
    %1283 = vmatmul.mubr.f32.gmra.mxu0 %v1282
    %v1284 = vpop.f32.mrf.mxu0
    %v1285 = vadd.f32 %v1115, %v1284
    %v1286 = vpop.f32.mrf.mxu0
    %1287 = vmatprep.mubr.f32.mxu0 0.0
    %v1288 = vand.u32 %v754, 4294901760
    %v1289 = vsub.f32 %v754, %v1288
    %1290 = vmatmul.mubr.f32.gmra.mxu0 %v1289
    %v1291 = vpop.f32.mrf.mxu0
    %v1292 = vadd.f32 %v1121, %v1291
    %v1293 = vpop.f32.mrf.mxu0
    %1294 = vmatprep.mubr.f32.mxu0 0.0
    %v1295 = vand.u32 %v757, 4294901760
    %v1296 = vsub.f32 %v757, %v1295
    %1297 = vmatmul.mubr.f32.gmra.mxu0 %v1296
    %v1298 = vpop.f32.mrf.mxu0
    %v1299 = vadd.f32 %v1127, %v1298
    %v1300 = vpop.f32.mrf.mxu0
    %1301 = vmatprep.mubr.f32.mxu0 0.0
    %v1302 = vand.u32 %v760, 4294901760
    %v1303 = vsub.f32 %v760, %v1302
    %1304 = vmatmul.mubr.f32.gmra.mxu0 %v1303
    %v1305 = vpop.f32.mrf.mxu0
    %v1306 = vadd.f32 %v1133, %v1305
    %v1307 = vpop.f32.mrf.mxu0
    %1308 = vmatprep.mubr.f32.mxu0 0.0
    %v1309 = vand.u32 %v763, 4294901760
    %v1310 = vsub.f32 %v763, %v1309
    %1311 = vmatmul.mubr.f32.gmra.mxu0 %v1310
    %v1312 = vpop.f32.mrf.mxu0
    %v1313 = vadd.f32 %v1139, %v1312
    %v1314 = vpop.f32.mrf.mxu0
    %1315 = vmatprep.mubr.f32.mxu0 0.0
    %v1316 = vand.u32 %v766, 4294901760
    %v1317 = vsub.f32 %v766, %v1316
    %1318 = vmatmul.mubr.f32.gmra.mxu0 %v1317
    %v1319 = vpop.f32.mrf.mxu0
    %v1320 = vadd.f32 %v1145, %v1319
    %v1321 = vpop.f32.mrf.mxu0
    %1322 = vmatprep.mubr.f32.mxu0 0.0
    %v1323 = vand.u32 %v769, 4294901760
    %v1324 = vsub.f32 %v769, %v1323
    %1325 = vmatmul.mubr.f32.gmra.mxu0 %v1324
    %v1326 = vpop.f32.mrf.mxu0
    %v1327 = vadd.f32 %v1151, %v1326
    %v1328 = vpop.f32.mrf.mxu0
    %1329 = vmatprep.mubr.f32.mxu0 0.0
    %v1330 = vand.u32 %v772, 4294901760
    %v1331 = vsub.f32 %v772, %v1330
    %1332 = vmatmul.mubr.f32.gmra.mxu0 %v1331
    %v1333 = vpop.f32.mrf.mxu0
    %v1334 = vadd.f32 %v1157, %v1333
    %v1335 = vpop.f32.mrf.mxu0
    %1336 = vmatprep.mubr.f32.mxu0 0.0
    %v1337 = vand.u32 %v775, 4294901760
    %v1338 = vsub.f32 %v775, %v1337
    %1339 = vmatmul.mubr.f32.gmra.mxu0 %v1338
    %v1340 = vpop.f32.mrf.mxu0
    %v1341 = vadd.f32 %v1163, %v1340
    %v1342 = vpop.f32.mrf.mxu0
    %1343 = vmatprep.mubr.f32.mxu0 0.0
    %v1344 = vand.u32 %v778, 4294901760
    %v1345 = vsub.f32 %v778, %v1344
    %1346 = vmatmul.mubr.f32.gmra.mxu0 %v1345
    %v1347 = vpop.f32.mrf.mxu0
    %v1348 = vadd.f32 %v1169, %v1347
    %v1349 = vpop.f32.mrf.mxu0
    %1350 = vmatprep.mubr.f32.mxu0 0.0
    %v1351 = vand.u32 %v781, 4294901760
    %v1352 = vsub.f32 %v781, %v1351
    %1353 = vmatmul.mubr.f32.gmra.mxu0 %v1352
    %v1354 = vpop.f32.mrf.mxu0
    %v1355 = vadd.f32 %v1175, %v1354
    %v1356 = vpop.f32.mrf.mxu0
    %1357 = vmatprep.mubr.f32.mxu0 0.0
    %v1358 = vand.u32 %v784, 4294901760
    %v1359 = vsub.f32 %v784, %v1358
    %1360 = vmatmul.mubr.f32.gmra.mxu0 %v1359
    %v1361 = vpop.f32.mrf.mxu0
    %v1362 = vadd.f32 %v1181, %v1361
    %v1363 = vpop.f32.mrf.mxu0
    %1364 = vmatprep.mubr.f32.mxu0 0.0
    %v1365 = vand.u32 %v787, 4294901760
    %v1366 = vsub.f32 %v787, %v1365
    %1367 = vmatmul.mubr.f32.gmra.mxu0 %v1366
    %v1368 = vpop.f32.mrf.mxu0
    %v1369 = vadd.f32 %v1187, %v1368
    %v1370 = vpop.f32.mrf.mxu0
    %1371 = vmatprep.mubr.f32.mxu0 0.0
    %v1372 = vand.u32 %v790, 4294901760
    %v1373 = vsub.f32 %v790, %v1372
    %1374 = vmatmul.mubr.f32.gmra.mxu0 %v1373
    %v1375 = vpop.f32.mrf.mxu0
    %v1376 = vadd.f32 %v1193, %v1375
    %v1377 = vpop.f32.mrf.mxu0
    %1378 = vmatprep.mubr.f32.mxu0 0.0
    %v1379 = vand.u32 %v793, 4294901760
    %v1380 = vsub.f32 %v793, %v1379
    %1381 = vmatmul.mubr.f32.gmra.mxu0 %v1380
    %v1382 = vpop.f32.mrf.mxu0
    %v1383 = vadd.f32 %v1199, %v1382
    %v1384 = vpop.f32.mrf.mxu0
    %1385 = vmatprep.mubr.f32.mxu0 0.0
    %v1386 = vand.u32 %v796, 4294901760
    %v1387 = vsub.f32 %v796, %v1386
    %1388 = vmatmul.mubr.f32.gmra.mxu0 %v1387
    %v1389 = vpop.f32.mrf.mxu0
    %v1390 = vadd.f32 %v1205, %v1389
    %v1391 = vpop.f32.mrf.mxu0
    %1392 = vdwg.mxu0
    %1393 = vmatprep.subr.mxu0 0.0
    %1394 = vmatpush1.msra.mxu0 0.0
    %1395 = vmatprep.subr.mxu0 0.0
    %1396 = vmatpush1.msra.mxu0 0.0
    %1397 = vmatprep.subr.mxu0 0.0
    %1398 = vmatpush1.msra.mxu0 0.0
    %1399 = vmatprep.subr.mxu0 0.0
    %1400 = vmatpush1.msra.mxu0 0.0
    %1401 = vmatprep.subr.mxu0 0.0
    %1402 = vmatpush1.msra.mxu0 0.0
    %1403 = vmatprep.subr.mxu0 0.0
    %1404 = vmatpush1.msra.mxu0 0.0
    %1405 = vmatprep.subr.mxu0 0.0
    %1406 = vmatpush1.msra.mxu0 0.0
    %1407 = vmatprep.subr.mxu0 0.0
    %1408 = vmatpush1.msra.mxu0 0.0
    %1409 = vmatprep.subr.mxu0 0.0
    %1410 = vmatpush1.msra.mxu0 0.0
    %1411 = vmatprep.subr.mxu0 0.0
    %1412 = vmatpush1.msra.mxu0 0.0
    %1413 = vmatprep.subr.mxu0 0.0
    %1414 = vmatpush1.msra.mxu0 0.0
    %1415 = vmatprep.subr.mxu0 0.0
    %1416 = vmatpush1.msra.mxu0 0.0
    %1417 = vmatprep.subr.mxu0 0.0
    %v1418 = vand.u32 %v654, 4294901760
    %1419 = vmatpush1.msra.mxu0 %v1418
    %1420 = vmatprep.subr.mxu0 0.0
    %v1421 = vand.u32 %v648, 4294901760
    %1422 = vmatpush1.msra.mxu0 %v1421
    %1423 = vmatprep.subr.mxu0 0.0
    %v1424 = vand.u32 %v642, 4294901760
    %1425 = vmatpush1.msra.mxu0 %v1424
    %1426 = vmatprep.subr.mxu0 0.0
    %v1427 = vand.u32 %v636, 4294901760
    %1428 = vmatpush1.msra.mxu0 %v1427
    %1429 = vmatprep.subr.mxu0 0.0
    %1430 = vmatpush2.msra.mxu0 0.0
    %1431 = vmatprep.subr.mxu0 0.0
    %1432 = vmatpush2.msra.mxu0 0.0
    %1433 = vmatprep.subr.mxu0 0.0
    %1434 = vmatpush2.msra.mxu0 0.0
    %1435 = vmatprep.subr.mxu0 0.0
    %1436 = vmatpush2.msra.mxu0 0.0
    %1437 = vmatprep.subr.mxu0 0.0
    %1438 = vmatpush2.msra.mxu0 0.0
    %1439 = vmatprep.subr.mxu0 0.0
    %1440 = vmatpush2.msra.mxu0 0.0
    %1441 = vmatprep.subr.mxu0 0.0
    %1442 = vmatpush2.msra.mxu0 0.0
    %1443 = vmatprep.subr.mxu0 0.0
    %1444 = vmatpush2.msra.mxu0 0.0
    %1445 = vmatprep.subr.mxu0 0.0
    %1446 = vmatpush2.msra.mxu0 0.0
    %1447 = vmatprep.subr.mxu0 0.0
    %1448 = vmatpush2.msra.mxu0 0.0
    %1449 = vmatprep.subr.mxu0 0.0
    %1450 = vmatpush2.msra.mxu0 0.0
    %1451 = vmatprep.subr.mxu0 0.0
    %1452 = vmatpush2.msra.mxu0 0.0
    %1453 = vmatprep.subr.mxu0 0.0
    %1454 = vmatpush2.msra.mxu0 0.0
    %1455 = vmatprep.subr.mxu0 0.0
    %1456 = vmatpush2.msra.mxu0 0.0
    %1457 = vmatprep.subr.mxu0 0.0
    %1458 = vmatpush2.msra.mxu0 0.0
    %1459 = vmatprep.subr.mxu0 0.0
    %1460 = vmatpush2.msra.mxu0 0.0
    %1461 = vmatprep.mubr.f32.mxu0 0.0
    %v1462 = vand.u32 %v751, 4294901760
    %v1463 = vsub.f32 %v751, %v1462
    %v1464 = vand.u32 %v1463, 4294901760
    %1465 = vmatmul.mubr.f32.gmra.mxu0 %v1464
    %v1466 = vpop.f32.mrf.mxu0
    %v1467 = vadd.f32 %v1285, %v1466
    %v1468 = vpop.f32.mrf.mxu0
    %1469 = vmatprep.mubr.f32.mxu0 0.0
    %v1470 = vand.u32 %v754, 4294901760
    %v1471 = vsub.f32 %v754, %v1470
    %v1472 = vand.u32 %v1471, 4294901760
    %1473 = vmatmul.mubr.f32.gmra.mxu0 %v1472
    %v1474 = vpop.f32.mrf.mxu0
    %v1475 = vadd.f32 %v1292, %v1474
    %v1476 = vpop.f32.mrf.mxu0
    %1477 = vmatprep.mubr.f32.mxu0 0.0
    %v1478 = vand.u32 %v757, 4294901760
    %v1479 = vsub.f32 %v757, %v1478
    %v1480 = vand.u32 %v1479, 4294901760
    %1481 = vmatmul.mubr.f32.gmra.mxu0 %v1480
    %v1482 = vpop.f32.mrf.mxu0
    %v1483 = vadd.f32 %v1299, %v1482
    %v1484 = vpop.f32.mrf.mxu0
    %1485 = vmatprep.mubr.f32.mxu0 0.0
    %v1486 = vand.u32 %v760, 4294901760
    %v1487 = vsub.f32 %v760, %v1486
    %v1488 = vand.u32 %v1487, 4294901760
    %1489 = vmatmul.mubr.f32.gmra.mxu0 %v1488
    %v1490 = vpop.f32.mrf.mxu0
    %v1491 = vadd.f32 %v1306, %v1490
    %v1492 = vpop.f32.mrf.mxu0
    %1493 = vmatprep.mubr.f32.mxu0 0.0
    %v1494 = vand.u32 %v763, 4294901760
    %v1495 = vsub.f32 %v763, %v1494
    %v1496 = vand.u32 %v1495, 4294901760
    %1497 = vmatmul.mubr.f32.gmra.mxu0 %v1496
    %v1498 = vpop.f32.mrf.mxu0
    %v1499 = vadd.f32 %v1313, %v1498
    %v1500 = vpop.f32.mrf.mxu0
    %1501 = vmatprep.mubr.f32.mxu0 0.0
    %v1502 = vand.u32 %v766, 4294901760
    %v1503 = vsub.f32 %v766, %v1502
    %v1504 = vand.u32 %v1503, 4294901760
    %1505 = vmatmul.mubr.f32.gmra.mxu0 %v1504
    %v1506 = vpop.f32.mrf.mxu0
    %v1507 = vadd.f32 %v1320, %v1506
    %v1508 = vpop.f32.mrf.mxu0
    %1509 = vmatprep.mubr.f32.mxu0 0.0
    %v1510 = vand.u32 %v769, 4294901760
    %v1511 = vsub.f32 %v769, %v1510
    %v1512 = vand.u32 %v1511, 4294901760
    %1513 = vmatmul.mubr.f32.gmra.mxu0 %v1512
    %v1514 = vpop.f32.mrf.mxu0
    %v1515 = vadd.f32 %v1327, %v1514
    %v1516 = vpop.f32.mrf.mxu0
    %1517 = vmatprep.mubr.f32.mxu0 0.0
    %v1518 = vand.u32 %v772, 4294901760
    %v1519 = vsub.f32 %v772, %v1518
    %v1520 = vand.u32 %v1519, 4294901760
    %1521 = vmatmul.mubr.f32.gmra.mxu0 %v1520
    %v1522 = vpop.f32.mrf.mxu0
    %v1523 = vadd.f32 %v1334, %v1522
    %v1524 = vpop.f32.mrf.mxu0
    %1525 = vmatprep.mubr.f32.mxu0 0.0
    %v1526 = vand.u32 %v775, 4294901760
    %v1527 = vsub.f32 %v775, %v1526
    %v1528 = vand.u32 %v1527, 4294901760
    %1529 = vmatmul.mubr.f32.gmra.mxu0 %v1528
    %v1530 = vpop.f32.mrf.mxu0
    %v1531 = vadd.f32 %v1341, %v1530
    %v1532 = vpop.f32.mrf.mxu0
    %1533 = vmatprep.mubr.f32.mxu0 0.0
    %v1534 = vand.u32 %v778, 4294901760
    %v1535 = vsub.f32 %v778, %v1534
    %v1536 = vand.u32 %v1535, 4294901760
    %1537 = vmatmul.mubr.f32.gmra.mxu0 %v1536
    %v1538 = vpop.f32.mrf.mxu0
    %v1539 = vadd.f32 %v1348, %v1538
    %v1540 = vpop.f32.mrf.mxu0
    %1541 = vmatprep.mubr.f32.mxu0 0.0
    %v1542 = vand.u32 %v781, 4294901760
    %v1543 = vsub.f32 %v781, %v1542
    %v1544 = vand.u32 %v1543, 4294901760
    %1545 = vmatmul.mubr.f32.gmra.mxu0 %v1544
    %v1546 = vpop.f32.mrf.mxu0
    %v1547 = vadd.f32 %v1355, %v1546
    %v1548 = vpop.f32.mrf.mxu0
    %1549 = vmatprep.mubr.f32.mxu0 0.0
    %v1550 = vand.u32 %v784, 4294901760
    %v1551 = vsub.f32 %v784, %v1550
    %v1552 = vand.u32 %v1551, 4294901760
    %1553 = vmatmul.mubr.f32.gmra.mxu0 %v1552
    %v1554 = vpop.f32.mrf.mxu0
    %v1555 = vadd.f32 %v1362, %v1554
    %v1556 = vpop.f32.mrf.mxu0
    %1557 = vmatprep.mubr.f32.mxu0 0.0
    %v1558 = vand.u32 %v787, 4294901760
    %v1559 = vsub.f32 %v787, %v1558
    %v1560 = vand.u32 %v1559, 4294901760
    %1561 = vmatmul.mubr.f32.gmra.mxu0 %v1560
    %v1562 = vpop.f32.mrf.mxu0
    %v1563 = vadd.f32 %v1369, %v1562
    %v1564 = vpop.f32.mrf.mxu0
    %1565 = vmatprep.mubr.f32.mxu0 0.0
    %v1566 = vand.u32 %v790, 4294901760
    %v1567 = vsub.f32 %v790, %v1566
    %v1568 = vand.u32 %v1567, 4294901760
    %1569 = vmatmul.mubr.f32.gmra.mxu0 %v1568
    %v1570 = vpop.f32.mrf.mxu0
    %v1571 = vadd.f32 %v1376, %v1570
    %v1572 = vpop.f32.mrf.mxu0
    %1573 = vmatprep.mubr.f32.mxu0 0.0
    %v1574 = vand.u32 %v793, 4294901760
    %v1575 = vsub.f32 %v793, %v1574
    %v1576 = vand.u32 %v1575, 4294901760
    %1577 = vmatmul.mubr.f32.gmra.mxu0 %v1576
    %v1578 = vpop.f32.mrf.mxu0
    %v1579 = vadd.f32 %v1383, %v1578
    %v1580 = vpop.f32.mrf.mxu0
    %1581 = vmatprep.mubr.f32.mxu0 0.0
    %v1582 = vand.u32 %v796, 4294901760
    %v1583 = vsub.f32 %v796, %v1582
    %v1584 = vand.u32 %v1583, 4294901760
    %1585 = vmatmul.mubr.f32.gmra.mxu0 %v1584
    %v1586 = vpop.f32.mrf.mxu0
    %v1587 = vadd.f32 %v1390, %v1586
    %v1588 = vpop.f32.mrf.mxu0
    %1589 = vdwg.mxu0
    %1590 = vmatprep.subr.mxu0 0.0
    %1591 = vmatpush1.msra.mxu0 0.0
    %1592 = vmatprep.subr.mxu0 0.0
    %1593 = vmatpush1.msra.mxu0 0.0
    %1594 = vmatprep.subr.mxu0 0.0
    %1595 = vmatpush1.msra.mxu0 0.0
    %1596 = vmatprep.subr.mxu0 0.0
    %1597 = vmatpush1.msra.mxu0 0.0
    %1598 = vmatprep.subr.mxu0 0.0
    %1599 = vmatpush1.msra.mxu0 0.0
    %1600 = vmatprep.subr.mxu0 0.0
    %1601 = vmatpush1.msra.mxu0 0.0
    %1602 = vmatprep.subr.mxu0 0.0
    %1603 = vmatpush1.msra.mxu0 0.0
    %1604 = vmatprep.subr.mxu0 0.0
    %1605 = vmatpush1.msra.mxu0 0.0
    %1606 = vmatprep.subr.mxu0 0.0
    %1607 = vmatpush1.msra.mxu0 0.0
    %1608 = vmatprep.subr.mxu0 0.0
    %1609 = vmatpush1.msra.mxu0 0.0
    %1610 = vmatprep.subr.mxu0 0.0
    %1611 = vmatpush1.msra.mxu0 0.0
    %1612 = vmatprep.subr.mxu0 0.0
    %1613 = vmatpush1.msra.mxu0 0.0
    %1614 = vmatprep.subr.mxu0 0.0
    %v1615 = vand.u32 %v654, 4294901760
    %v1616 = vsub.f32 %v654, %v1615
    %v1617 = vand.u32 %v1616, 4294901760
    %1618 = vmatpush1.msra.mxu0 %v1617
    %1619 = vmatprep.subr.mxu0 0.0
    %v1620 = vand.u32 %v648, 4294901760
    %v1621 = vsub.f32 %v648, %v1620
    %v1622 = vand.u32 %v1621, 4294901760
    %1623 = vmatpush1.msra.mxu0 %v1622
    %1624 = vmatprep.subr.mxu0 0.0
    %v1625 = vand.u32 %v642, 4294901760
    %v1626 = vsub.f32 %v642, %v1625
    %v1627 = vand.u32 %v1626, 4294901760
    %1628 = vmatpush1.msra.mxu0 %v1627
    %1629 = vmatprep.subr.mxu0 0.0
    %v1630 = vand.u32 %v636, 4294901760
    %v1631 = vsub.f32 %v636, %v1630
    %v1632 = vand.u32 %v1631, 4294901760
    %1633 = vmatpush1.msra.mxu0 %v1632
    %1634 = vmatprep.subr.mxu0 0.0
    %1635 = vmatpush2.msra.mxu0 0.0
    %1636 = vmatprep.subr.mxu0 0.0
    %1637 = vmatpush2.msra.mxu0 0.0
    %1638 = vmatprep.subr.mxu0 0.0
    %1639 = vmatpush2.msra.mxu0 0.0
    %1640 = vmatprep.subr.mxu0 0.0
    %1641 = vmatpush2.msra.mxu0 0.0
    %1642 = vmatprep.subr.mxu0 0.0
    %1643 = vmatpush2.msra.mxu0 0.0
    %1644 = vmatprep.subr.mxu0 0.0
    %1645 = vmatpush2.msra.mxu0 0.0
    %1646 = vmatprep.subr.mxu0 0.0
    %1647 = vmatpush2.msra.mxu0 0.0
    %1648 = vmatprep.subr.mxu0 0.0
    %1649 = vmatpush2.msra.mxu0 0.0
    %1650 = vmatprep.subr.mxu0 0.0
    %1651 = vmatpush2.msra.mxu0 0.0
    %1652 = vmatprep.subr.mxu0 0.0
    %1653 = vmatpush2.msra.mxu0 0.0
    %1654 = vmatprep.subr.mxu0 0.0
    %1655 = vmatpush2.msra.mxu0 0.0
    %1656 = vmatprep.subr.mxu0 0.0
    %1657 = vmatpush2.msra.mxu0 0.0
    %1658 = vmatprep.subr.mxu0 0.0
    %1659 = vmatpush2.msra.mxu0 0.0
    %1660 = vmatprep.subr.mxu0 0.0
    %1661 = vmatpush2.msra.mxu0 0.0
    %1662 = vmatprep.subr.mxu0 0.0
    %1663 = vmatpush2.msra.mxu0 0.0
    %1664 = vmatprep.subr.mxu0 0.0
    %1665 = vmatpush2.msra.mxu0 0.0
    %1666 = vmatprep.mubr.f32.mxu0 0.0
    %v1667 = vand.u32 %v751, 4294901760
    %1668 = vmatmul.mubr.f32.gmra.mxu0 %v1667
    %v1669 = vpop.f32.mrf.mxu0
    %v1670 = vadd.f32 %v1467, %v1669
    %v1671 = vpop.f32.mrf.mxu0
    %1672 = vmatprep.mubr.f32.mxu0 0.0
    %v1673 = vand.u32 %v754, 4294901760
    %1674 = vmatmul.mubr.f32.gmra.mxu0 %v1673
    %v1675 = vpop.f32.mrf.mxu0
    %v1676 = vadd.f32 %v1475, %v1675
    %v1677 = vpop.f32.mrf.mxu0
    %1678 = vmatprep.mubr.f32.mxu0 0.0
    %v1679 = vand.u32 %v757, 4294901760
    %1680 = vmatmul.mubr.f32.gmra.mxu0 %v1679
    %v1681 = vpop.f32.mrf.mxu0
    %v1682 = vadd.f32 %v1483, %v1681
    %v1683 = vpop.f32.mrf.mxu0
    %1684 = vmatprep.mubr.f32.mxu0 0.0
    %v1685 = vand.u32 %v760, 4294901760
    %1686 = vmatmul.mubr.f32.gmra.mxu0 %v1685
    %v1687 = vpop.f32.mrf.mxu0
    %v1688 = vadd.f32 %v1491, %v1687
    %v1689 = vpop.f32.mrf.mxu0
    %1690 = vmatprep.mubr.f32.mxu0 0.0
    %v1691 = vand.u32 %v763, 4294901760
    %1692 = vmatmul.mubr.f32.gmra.mxu0 %v1691
    %v1693 = vpop.f32.mrf.mxu0
    %v1694 = vadd.f32 %v1499, %v1693
    %v1695 = vpop.f32.mrf.mxu0
    %1696 = vmatprep.mubr.f32.mxu0 0.0
    %v1697 = vand.u32 %v766, 4294901760
    %1698 = vmatmul.mubr.f32.gmra.mxu0 %v1697
    %v1699 = vpop.f32.mrf.mxu0
    %v1700 = vadd.f32 %v1507, %v1699
    %v1701 = vpop.f32.mrf.mxu0
    %1702 = vmatprep.mubr.f32.mxu0 0.0
    %v1703 = vand.u32 %v769, 4294901760
    %1704 = vmatmul.mubr.f32.gmra.mxu0 %v1703
    %v1705 = vpop.f32.mrf.mxu0
    %v1706 = vadd.f32 %v1515, %v1705
    %v1707 = vpop.f32.mrf.mxu0
    %1708 = vmatprep.mubr.f32.mxu0 0.0
    %v1709 = vand.u32 %v772, 4294901760
    %1710 = vmatmul.mubr.f32.gmra.mxu0 %v1709
    %v1711 = vpop.f32.mrf.mxu0
    %v1712 = vadd.f32 %v1523, %v1711
    %v1713 = vpop.f32.mrf.mxu0
    %1714 = vmatprep.mubr.f32.mxu0 0.0
    %v1715 = vand.u32 %v775, 4294901760
    %1716 = vmatmul.mubr.f32.gmra.mxu0 %v1715
    %v1717 = vpop.f32.mrf.mxu0
    %v1718 = vadd.f32 %v1531, %v1717
    %v1719 = vpop.f32.mrf.mxu0
    %1720 = vmatprep.mubr.f32.mxu0 0.0
    %v1721 = vand.u32 %v778, 4294901760
    %1722 = vmatmul.mubr.f32.gmra.mxu0 %v1721
    %v1723 = vpop.f32.mrf.mxu0
    %v1724 = vadd.f32 %v1539, %v1723
    %v1725 = vpop.f32.mrf.mxu0
    %1726 = vmatprep.mubr.f32.mxu0 0.0
    %v1727 = vand.u32 %v781, 4294901760
    %1728 = vmatmul.mubr.f32.gmra.mxu0 %v1727
    %v1729 = vpop.f32.mrf.mxu0
    %v1730 = vadd.f32 %v1547, %v1729
    %v1731 = vpop.f32.mrf.mxu0
    %1732 = vmatprep.mubr.f32.mxu0 0.0
    %v1733 = vand.u32 %v784, 4294901760
    %1734 = vmatmul.mubr.f32.gmra.mxu0 %v1733
    %v1735 = vpop.f32.mrf.mxu0
    %v1736 = vadd.f32 %v1555, %v1735
    %v1737 = vpop.f32.mrf.mxu0
    %1738 = vmatprep.mubr.f32.mxu0 0.0
    %v1739 = vand.u32 %v787, 4294901760
    %1740 = vmatmul.mubr.f32.gmra.mxu0 %v1739
    %v1741 = vpop.f32.mrf.mxu0
    %v1742 = vadd.f32 %v1563, %v1741
    %v1743 = vpop.f32.mrf.mxu0
    %1744 = vmatprep.mubr.f32.mxu0 0.0
    %v1745 = vand.u32 %v790, 4294901760
    %1746 = vmatmul.mubr.f32.gmra.mxu0 %v1745
    %v1747 = vpop.f32.mrf.mxu0
    %v1748 = vadd.f32 %v1571, %v1747
    %v1749 = vpop.f32.mrf.mxu0
    %1750 = vmatprep.mubr.f32.mxu0 0.0
    %v1751 = vand.u32 %v793, 4294901760
    %1752 = vmatmul.mubr.f32.gmra.mxu0 %v1751
    %v1753 = vpop.f32.mrf.mxu0
    %v1754 = vadd.f32 %v1579, %v1753
    %v1755 = vpop.f32.mrf.mxu0
    %1756 = vmatprep.mubr.f32.mxu0 0.0
    %v1757 = vand.u32 %v796, 4294901760
    %1758 = vmatmul.mubr.f32.gmra.mxu0 %v1757
    %v1759 = vpop.f32.mrf.mxu0
    %v1760 = vadd.f32 %v1587, %v1759
    %v1761 = vpop.f32.mrf.mxu0
    %1762 = vdwg.mxu0
    %1763 = vmatprep.subr.mxu0 0.0
    %1764 = vmatpush1.msra.mxu0 0.0
    %1765 = vmatprep.subr.mxu0 0.0
    %1766 = vmatpush1.msra.mxu0 0.0
    %1767 = vmatprep.subr.mxu0 0.0
    %1768 = vmatpush1.msra.mxu0 0.0
    %1769 = vmatprep.subr.mxu0 0.0
    %1770 = vmatpush1.msra.mxu0 0.0
    %1771 = vmatprep.subr.mxu0 0.0
    %1772 = vmatpush1.msra.mxu0 0.0
    %1773 = vmatprep.subr.mxu0 0.0
    %1774 = vmatpush1.msra.mxu0 0.0
    %1775 = vmatprep.subr.mxu0 0.0
    %1776 = vmatpush1.msra.mxu0 0.0
    %1777 = vmatprep.subr.mxu0 0.0
    %1778 = vmatpush1.msra.mxu0 0.0
    %1779 = vmatprep.subr.mxu0 0.0
    %1780 = vmatpush1.msra.mxu0 0.0
    %1781 = vmatprep.subr.mxu0 0.0
    %1782 = vmatpush1.msra.mxu0 0.0
    %1783 = vmatprep.subr.mxu0 0.0
    %1784 = vmatpush1.msra.mxu0 0.0
    %1785 = vmatprep.subr.mxu0 0.0
    %1786 = vmatpush1.msra.mxu0 0.0
    %1787 = vmatprep.subr.mxu0 0.0
    %v1788 = vand.u32 %v654, 4294901760
    %1789 = vmatpush1.msra.mxu0 %v1788
    %1790 = vmatprep.subr.mxu0 0.0
    %v1791 = vand.u32 %v648, 4294901760
    %1792 = vmatpush1.msra.mxu0 %v1791
    %1793 = vmatprep.subr.mxu0 0.0
    %v1794 = vand.u32 %v642, 4294901760
    %1795 = vmatpush1.msra.mxu0 %v1794
    %1796 = vmatprep.subr.mxu0 0.0
    %v1797 = vand.u32 %v636, 4294901760
    %1798 = vmatpush1.msra.mxu0 %v1797
    %1799 = vmatprep.subr.mxu0 0.0
    %1800 = vmatpush2.msra.mxu0 0.0
    %1801 = vmatprep.subr.mxu0 0.0
    %1802 = vmatpush2.msra.mxu0 0.0
    %1803 = vmatprep.subr.mxu0 0.0
    %1804 = vmatpush2.msra.mxu0 0.0
    %1805 = vmatprep.subr.mxu0 0.0
    %1806 = vmatpush2.msra.mxu0 0.0
    %1807 = vmatprep.subr.mxu0 0.0
    %1808 = vmatpush2.msra.mxu0 0.0
    %1809 = vmatprep.subr.mxu0 0.0
    %1810 = vmatpush2.msra.mxu0 0.0
    %1811 = vmatprep.subr.mxu0 0.0
    %1812 = vmatpush2.msra.mxu0 0.0
    %1813 = vmatprep.subr.mxu0 0.0
    %1814 = vmatpush2.msra.mxu0 0.0
    %1815 = vmatprep.subr.mxu0 0.0
    %1816 = vmatpush2.msra.mxu0 0.0
    %1817 = vmatprep.subr.mxu0 0.0
    %1818 = vmatpush2.msra.mxu0 0.0
    %1819 = vmatprep.subr.mxu0 0.0
    %1820 = vmatpush2.msra.mxu0 0.0
    %1821 = vmatprep.subr.mxu0 0.0
    %1822 = vmatpush2.msra.mxu0 0.0
    %1823 = vmatprep.subr.mxu0 0.0
    %1824 = vmatpush2.msra.mxu0 0.0
    %1825 = vmatprep.subr.mxu0 0.0
    %1826 = vmatpush2.msra.mxu0 0.0
    %1827 = vmatprep.subr.mxu0 0.0
    %1828 = vmatpush2.msra.mxu0 0.0
    %1829 = vmatprep.subr.mxu0 0.0
    %1830 = vmatpush2.msra.mxu0 0.0
    %1831 = vmatprep.mubr.f32.mxu0 0.0
    %v1832 = vand.u32 %v751, 4294901760
    %1833 = vmatmul.mubr.f32.gmra.mxu0 %v1832
    %v1834 = vpop.f32.mrf.mxu0
    %v1835 = vadd.f32 %v1670, %v1834
    %v1836 = vpop.f32.mrf.mxu0
    %1837 = vmatprep.mubr.f32.mxu0 0.0
    %v1838 = vand.u32 %v754, 4294901760
    %1839 = vmatmul.mubr.f32.gmra.mxu0 %v1838
    %v1840 = vpop.f32.mrf.mxu0
    %v1841 = vadd.f32 %v1676, %v1840
    %v1842 = vpop.f32.mrf.mxu0
    %1843 = vmatprep.mubr.f32.mxu0 0.0
    %v1844 = vand.u32 %v757, 4294901760
    %1845 = vmatmul.mubr.f32.gmra.mxu0 %v1844
    %v1846 = vpop.f32.mrf.mxu0
    %v1847 = vadd.f32 %v1682, %v1846
    %v1848 = vpop.f32.mrf.mxu0
    %1849 = vmatprep.mubr.f32.mxu0 0.0
    %v1850 = vand.u32 %v760, 4294901760
    %1851 = vmatmul.mubr.f32.gmra.mxu0 %v1850
    %v1852 = vpop.f32.mrf.mxu0
    %v1853 = vadd.f32 %v1688, %v1852
    %v1854 = vpop.f32.mrf.mxu0
    %1855 = vmatprep.mubr.f32.mxu0 0.0
    %v1856 = vand.u32 %v763, 4294901760
    %1857 = vmatmul.mubr.f32.gmra.mxu0 %v1856
    %v1858 = vpop.f32.mrf.mxu0
    %v1859 = vadd.f32 %v1694, %v1858
    %v1860 = vpop.f32.mrf.mxu0
    %1861 = vmatprep.mubr.f32.mxu0 0.0
    %v1862 = vand.u32 %v766, 4294901760
    %1863 = vmatmul.mubr.f32.gmra.mxu0 %v1862
    %v1864 = vpop.f32.mrf.mxu0
    %v1865 = vadd.f32 %v1700, %v1864
    %v1866 = vpop.f32.mrf.mxu0
    %1867 = vmatprep.mubr.f32.mxu0 0.0
    %v1868 = vand.u32 %v769, 4294901760
    %1869 = vmatmul.mubr.f32.gmra.mxu0 %v1868
    %v1870 = vpop.f32.mrf.mxu0
    %v1871 = vadd.f32 %v1706, %v1870
    %v1872 = vpop.f32.mrf.mxu0
    %1873 = vmatprep.mubr.f32.mxu0 0.0
    %v1874 = vand.u32 %v772, 4294901760
    %1875 = vmatmul.mubr.f32.gmra.mxu0 %v1874
    %v1876 = vpop.f32.mrf.mxu0
    %v1877 = vadd.f32 %v1712, %v1876
    %v1878 = vpop.f32.mrf.mxu0
    %1879 = vmatprep.mubr.f32.mxu0 0.0
    %v1880 = vand.u32 %v775, 4294901760
    %1881 = vmatmul.mubr.f32.gmra.mxu0 %v1880
    %v1882 = vpop.f32.mrf.mxu0
    %v1883 = vadd.f32 %v1718, %v1882
    %v1884 = vpop.f32.mrf.mxu0
    %1885 = vmatprep.mubr.f32.mxu0 0.0
    %v1886 = vand.u32 %v778, 4294901760
    %1887 = vmatmul.mubr.f32.gmra.mxu0 %v1886
    %v1888 = vpop.f32.mrf.mxu0
    %v1889 = vadd.f32 %v1724, %v1888
    %v1890 = vpop.f32.mrf.mxu0
    %1891 = vmatprep.mubr.f32.mxu0 0.0
    %v1892 = vand.u32 %v781, 4294901760
    %1893 = vmatmul.mubr.f32.gmra.mxu0 %v1892
    %v1894 = vpop.f32.mrf.mxu0
    %v1895 = vadd.f32 %v1730, %v1894
    %v1896 = vpop.f32.mrf.mxu0
    %1897 = vmatprep.mubr.f32.mxu0 0.0
    %v1898 = vand.u32 %v784, 4294901760
    %1899 = vmatmul.mubr.f32.gmra.mxu0 %v1898
    %v1900 = vpop.f32.mrf.mxu0
    %v1901 = vadd.f32 %v1736, %v1900
    %v1902 = vpop.f32.mrf.mxu0
    %1903 = vmatprep.mubr.f32.mxu0 0.0
    %v1904 = vand.u32 %v787, 4294901760
    %1905 = vmatmul.mubr.f32.gmra.mxu0 %v1904
    %v1906 = vpop.f32.mrf.mxu0
    %v1907 = vadd.f32 %v1742, %v1906
    %v1908 = vpop.f32.mrf.mxu0
    %1909 = vmatprep.mubr.f32.mxu0 0.0
    %v1910 = vand.u32 %v790, 4294901760
    %1911 = vmatmul.mubr.f32.gmra.mxu0 %v1910
    %v1912 = vpop.f32.mrf.mxu0
    %v1913 = vadd.f32 %v1748, %v1912
    %v1914 = vpop.f32.mrf.mxu0
    %1915 = vmatprep.mubr.f32.mxu0 0.0
    %v1916 = vand.u32 %v793, 4294901760
    %1917 = vmatmul.mubr.f32.gmra.mxu0 %v1916
    %v1918 = vpop.f32.mrf.mxu0
    %v1919 = vadd.f32 %v1754, %v1918
    %v1920 = vpop.f32.mrf.mxu0
    %1921 = vmatprep.mubr.f32.mxu0 0.0
    %v1922 = vand.u32 %v796, 4294901760
    %1923 = vmatmul.mubr.f32.gmra.mxu0 %v1922
    %v1924 = vpop.f32.mrf.mxu0
    %v1925 = vadd.f32 %v1760, %v1924
    %v1926 = vpop.f32.mrf.mxu0
    %1927 = vdwg.mxu0
    %v1928 = vtanh.pop %v1835
    %v1929 = vtanh.pop %v1841
    %v1930 = vtanh.pop %v1847
    %v1931 = vtanh.pop %v1853
    %v1932 = vtanh.pop %v1859
    %v1933 = vtanh.pop %v1865
    %v1934 = vtanh.pop %v1871
    %v1935 = vtanh.pop %v1877
    %v1936 = vtanh.pop %v1883
    %v1937 = vtanh.pop %v1889
    %v1938 = vtanh.pop %v1895
    %v1939 = vtanh.pop %v1901
    %v1940 = vtanh.pop %v1907
    %v1941 = vtanh.pop %v1913
    %v1942 = vtanh.pop %v1919
    %v1943 = vtanh.pop %v1925
    %v1944 = vld [vmem:[%s4] sm:$0xff]
    %v1945 = vld [vmem:[%s4 + $0x8] sm:$0xff]
    %v1946 = vld [vmem:[%s4 + $0x10] sm:$0xff]
    %v1947 = vld [vmem:[%s4 + $0x18] sm:$0xff]
    %v1948 = vld [vmem:[%s4 + $0x20] sm:$0xff]
    %v1949 = vld [vmem:[%s4 + $0x28] sm:$0xff]
    %v1950 = vld [vmem:[%s4 + $0x30] sm:$0xff]
    %v1951 = vld [vmem:[%s4 + $0x38] sm:$0xff]
    %v1952 = vld [vmem:[%s4 + $0x40] sm:$0xff]
    %v1953 = vld [vmem:[%s4 + $0x48] sm:$0xff]
    %v1954 = vld [vmem:[%s4 + $0x50] sm:$0xff]
    %v1955 = vld [vmem:[%s4 + $0x58] sm:$0xff]
    %v1956 = vld [vmem:[%s4 + $0x60] sm:$0xff]
    %v1957 = vld [vmem:[%s4 + $0x68] sm:$0xff]
    %v1958 = vld [vmem:[%s4 + $0x70] sm:$0xff]
    %v1959 = vld [vmem:[%s4 + $0x78] sm:$0xff]
    %1960 = vset.pattern.permute.xlu0 2
    %1961 = vperm.xlu0 %1960, %v27
    %v1962 = vpop.permute.xlu0 %1961
    %1964 = vset.pattern.permute.xlu0 2
    %1965 = vperm.xlu0 %1964, %v28
    %v1966 = vpop.permute.xlu0 %1965
    %1968 = vset.pattern.permute.xlu0 2
    %1969 = vperm.xlu0 %1968, %v29
    %v1970 = vpop.permute.xlu0 %1969
    %1972 = vset.pattern.permute.xlu0 2
    %1973 = vperm.xlu0 %1972, %v30
    %v1974 = vpop.permute.xlu0 %1973
    %1976 = vset.pattern.permute.xlu0 2
    %1977 = vperm.xlu0 %1976, %v31
    %v1978 = vpop.permute.xlu0 %1977
    %1980 = vset.pattern.permute.xlu0 2
    %1981 = vperm.xlu0 %1980, %v32
    %v1982 = vpop.permute.xlu0 %1981
    %1984 = vset.pattern.permute.xlu0 2
    %1985 = vperm.xlu0 %1984, %v33
    %v1986 = vpop.permute.xlu0 %1985
    %1988 = vset.pattern.permute.xlu0 2
    %1989 = vperm.xlu0 %1988, %v34
    %v1990 = vpop.permute.xlu0 %1989
    %1992 = vset.pattern.permute.xlu0 2
    %1993 = vperm.xlu0 %1992, %v35
    %v1994 = vpop.permute.xlu0 %1993
    %1996 = vset.pattern.permute.xlu0 2
    %1997 = vperm.xlu0 %1996, %v36
    %v1998 = vpop.permute.xlu0 %1997
    %2000 = vset.pattern.permute.xlu0 2
    %2001 = vperm.xlu0 %2000, %v37
    %v2002 = vpop.permute.xlu0 %2001
    %2004 = vset.pattern.permute.xlu0 2
    %2005 = vperm.xlu0 %2004, %v38
    %v2006 = vpop.permute.xlu0 %2005
    %2008 = vset.pattern.permute.xlu0 2
    %2009 = vperm.xlu0 %2008, %v39
    %v2010 = vpop.permute.xlu0 %2009
    %2012 = vset.pattern.permute.xlu0 2
    %2013 = vperm.xlu0 %2012, %v40
    %v2014 = vpop.permute.xlu0 %2013
    %2016 = vset.pattern.permute.xlu0 2
    %2017 = vperm.xlu0 %2016, %v41
    %v2018 = vpop.permute.xlu0 %2017
    %2020 = vset.pattern.permute.xlu0 2
    %2021 = vperm.xlu0 %2020, %v42
    %v2022 = vpop.permute.xlu0 %2021
    %2024 = vmatprep.subr.mxu0 0.0
    %v2025 = vand.u32 %v1943, 4294901760
    %2026 = vmatpush1.msra.mxu0 %v2025
    %2027 = vmatprep.subr.mxu0 0.0
    %v2028 = vand.u32 %v1942, 4294901760
    %2029 = vmatpush1.msra.mxu0 %v2028
    %2030 = vmatprep.subr.mxu0 0.0
    %v2031 = vand.u32 %v1941, 4294901760
    %2032 = vmatpush1.msra.mxu0 %v2031
    %2033 = vmatprep.subr.mxu0 0.0
    %v2034 = vand.u32 %v1940, 4294901760
    %2035 = vmatpush1.msra.mxu0 %v2034
    %2036 = vmatprep.subr.mxu0 0.0
    %v2037 = vand.u32 %v1939, 4294901760
    %2038 = vmatpush1.msra.mxu0 %v2037
    %2039 = vmatprep.subr.mxu0 0.0
    %v2040 = vand.u32 %v1938, 4294901760
    %2041 = vmatpush1.msra.mxu0 %v2040
    %2042 = vmatprep.subr.mxu0 0.0
    %v2043 = vand.u32 %v1937, 4294901760
    %2044 = vmatpush1.msra.mxu0 %v2043
    %2045 = vmatprep.subr.mxu0 0.0
    %v2046 = vand.u32 %v1936, 4294901760
    %2047 = vmatpush1.msra.mxu0 %v2046
    %2048 = vmatprep.subr.mxu0 0.0
    %v2049 = vand.u32 %v1935, 4294901760
    %2050 = vmatpush1.msra.mxu0 %v2049
    %2051 = vmatprep.subr.mxu0 0.0
    %v2052 = vand.u32 %v1934, 4294901760
    %2053 = vmatpush1.msra.mxu0 %v2052
    %2054 = vmatprep.subr.mxu0 0.0
    %v2055 = vand.u32 %v1933, 4294901760
    %2056 = vmatpush1.msra.mxu0 %v2055
    %2057 = vmatprep.subr.mxu0 0.0
    %v2058 = vand.u32 %v1932, 4294901760
    %2059 = vmatpush1.msra.mxu0 %v2058
    %2060 = vmatprep.subr.mxu0 0.0
    %v2061 = vand.u32 %v1931, 4294901760
    %2062 = vmatpush1.msra.mxu0 %v2061
    %2063 = vmatprep.subr.mxu0 0.0
    %v2064 = vand.u32 %v1930, 4294901760
    %2065 = vmatpush1.msra.mxu0 %v2064
    %2066 = vmatprep.subr.mxu0 0.0
    %v2067 = vand.u32 %v1929, 4294901760
    %2068 = vmatpush1.msra.mxu0 %v2067
    %2069 = vmatprep.subr.mxu0 0.0
    %v2070 = vand.u32 %v1928, 4294901760
    %2071 = vmatpush1.msra.mxu0 %v2070
    %2072 = vmatprep.subr.mxu0 0.0
    %2073 = vmatpush2.msra.mxu0 0.0
    %2074 = vmatprep.subr.mxu0 0.0
    %2075 = vmatpush2.msra.mxu0 0.0
    %2076 = vmatprep.subr.mxu0 0.0
    %2077 = vmatpush2.msra.mxu0 0.0
    %2078 = vmatprep.subr.mxu0 0.0
    %2079 = vmatpush2.msra.mxu0 0.0
    %2080 = vmatprep.subr.mxu0 0.0
    %2081 = vmatpush2.msra.mxu0 0.0
    %2082 = vmatprep.subr.mxu0 0.0
    %2083 = vmatpush2.msra.mxu0 0.0
    %2084 = vmatprep.subr.mxu0 0.0
    %2085 = vmatpush2.msra.mxu0 0.0
    %2086 = vmatprep.subr.mxu0 0.0
    %2087 = vmatpush2.msra.mxu0 0.0
    %2088 = vmatprep.subr.mxu0 0.0
    %2089 = vmatpush2.msra.mxu0 0.0
    %2090 = vmatprep.subr.mxu0 0.0
    %2091 = vmatpush2.msra.mxu0 0.0
    %2092 = vmatprep.subr.mxu0 0.0
    %2093 = vmatpush2.msra.mxu0 0.0
    %2094 = vmatprep.subr.mxu0 0.0
    %2095 = vmatpush2.msra.mxu0 0.0
    %2096 = vmatprep.subr.mxu0 0.0
    %2097 = vmatpush2.msra.mxu0 0.0
    %2098 = vmatprep.subr.mxu0 0.0
    %2099 = vmatpush2.msra.mxu0 0.0
    %2100 = vmatprep.subr.mxu0 0.0
    %2101 = vmatpush2.msra.mxu0 0.0
    %2102 = vmatprep.subr.mxu0 0.0
    %2103 = vmatpush2.msra.mxu0 0.0
    %2104 = vmatprep.mubr.f32.mxu0 0.0
    %v2105 = vand.u32 %v1944, 4294901760
    %v2106 = vsub.f32 %v1944, %v2105
    %v2107 = vand.u32 %v2106, 4294901760
    %v2108 = vsub.f32 %v2106, %v2107
    %v2109 = vand.u32 %v2108, 4294901760
    %2110 = vmatmul.mubr.f32.gmra.mxu0 %v2109
    %v2111 = vpop.f32.mrf.mxu0
    %v2112 = vadd.f32 %v1962, %v2111
    %v2113 = vpop.f32.mrf.mxu0
    %2114 = vmatprep.mubr.f32.mxu0 0.0
    %v2115 = vand.u32 %v1945, 4294901760
    %v2116 = vsub.f32 %v1945, %v2115
    %v2117 = vand.u32 %v2116, 4294901760
    %v2118 = vsub.f32 %v2116, %v2117
    %v2119 = vand.u32 %v2118, 4294901760
    %2120 = vmatmul.mubr.f32.gmra.mxu0 %v2119
    %v2121 = vpop.f32.mrf.mxu0
    %v2122 = vadd.f32 %v1966, %v2121
    %v2123 = vpop.f32.mrf.mxu0
    %2124 = vmatprep.mubr.f32.mxu0 0.0
    %v2125 = vand.u32 %v1946, 4294901760
    %v2126 = vsub.f32 %v1946, %v2125
    %v2127 = vand.u32 %v2126, 4294901760
    %v2128 = vsub.f32 %v2126, %v2127
    %v2129 = vand.u32 %v2128, 4294901760
    %2130 = vmatmul.mubr.f32.gmra.mxu0 %v2129
    %v2131 = vpop.f32.mrf.mxu0
    %v2132 = vadd.f32 %v1970, %v2131
    %v2133 = vpop.f32.mrf.mxu0
    %2134 = vmatprep.mubr.f32.mxu0 0.0
    %v2135 = vand.u32 %v1947, 4294901760
    %v2136 = vsub.f32 %v1947, %v2135
    %v2137 = vand.u32 %v2136, 4294901760
    %v2138 = vsub.f32 %v2136, %v2137
    %v2139 = vand.u32 %v2138, 4294901760
    %2140 = vmatmul.mubr.f32.gmra.mxu0 %v2139
    %v2141 = vpop.f32.mrf.mxu0
    %v2142 = vadd.f32 %v1974, %v2141
    %v2143 = vpop.f32.mrf.mxu0
    %2144 = vmatprep.mubr.f32.mxu0 0.0
    %v2145 = vand.u32 %v1948, 4294901760
    %v2146 = vsub.f32 %v1948, %v2145
    %v2147 = vand.u32 %v2146, 4294901760
    %v2148 = vsub.f32 %v2146, %v2147
    %v2149 = vand.u32 %v2148, 4294901760
    %2150 = vmatmul.mubr.f32.gmra.mxu0 %v2149
    %v2151 = vpop.f32.mrf.mxu0
    %v2152 = vadd.f32 %v1978, %v2151
    %v2153 = vpop.f32.mrf.mxu0
    %2154 = vmatprep.mubr.f32.mxu0 0.0
    %v2155 = vand.u32 %v1949, 4294901760
    %v2156 = vsub.f32 %v1949, %v2155
    %v2157 = vand.u32 %v2156, 4294901760
    %v2158 = vsub.f32 %v2156, %v2157
    %v2159 = vand.u32 %v2158, 4294901760
    %2160 = vmatmul.mubr.f32.gmra.mxu0 %v2159
    %v2161 = vpop.f32.mrf.mxu0
    %v2162 = vadd.f32 %v1982, %v2161
    %v2163 = vpop.f32.mrf.mxu0
    %2164 = vmatprep.mubr.f32.mxu0 0.0
    %v2165 = vand.u32 %v1950, 4294901760
    %v2166 = vsub.f32 %v1950, %v2165
    %v2167 = vand.u32 %v2166, 4294901760
    %v2168 = vsub.f32 %v2166, %v2167
    %v2169 = vand.u32 %v2168, 4294901760
    %2170 = vmatmul.mubr.f32.gmra.mxu0 %v2169
    %v2171 = vpop.f32.mrf.mxu0
    %v2172 = vadd.f32 %v1986, %v2171
    %v2173 = vpop.f32.mrf.mxu0
    %2174 = vmatprep.mubr.f32.mxu0 0.0
    %v2175 = vand.u32 %v1951, 4294901760
    %v2176 = vsub.f32 %v1951, %v2175
    %v2177 = vand.u32 %v2176, 4294901760
    %v2178 = vsub.f32 %v2176, %v2177
    %v2179 = vand.u32 %v2178, 4294901760
    %2180 = vmatmul.mubr.f32.gmra.mxu0 %v2179
    %v2181 = vpop.f32.mrf.mxu0
    %v2182 = vadd.f32 %v1990, %v2181
    %v2183 = vpop.f32.mrf.mxu0
    %2184 = vmatprep.mubr.f32.mxu0 0.0
    %v2185 = vand.u32 %v1952, 4294901760
    %v2186 = vsub.f32 %v1952, %v2185
    %v2187 = vand.u32 %v2186, 4294901760
    %v2188 = vsub.f32 %v2186, %v2187
    %v2189 = vand.u32 %v2188, 4294901760
    %2190 = vmatmul.mubr.f32.gmra.mxu0 %v2189
    %v2191 = vpop.f32.mrf.mxu0
    %v2192 = vadd.f32 %v1994, %v2191
    %v2193 = vpop.f32.mrf.mxu0
    %2194 = vmatprep.mubr.f32.mxu0 0.0
    %v2195 = vand.u32 %v1953, 4294901760
    %v2196 = vsub.f32 %v1953, %v2195
    %v2197 = vand.u32 %v2196, 4294901760
    %v2198 = vsub.f32 %v2196, %v2197
    %v2199 = vand.u32 %v2198, 4294901760
    %2200 = vmatmul.mubr.f32.gmra.mxu0 %v2199
    %v2201 = vpop.f32.mrf.mxu0
    %v2202 = vadd.f32 %v1998, %v2201
    %v2203 = vpop.f32.mrf.mxu0
    %2204 = vmatprep.mubr.f32.mxu0 0.0
    %v2205 = vand.u32 %v1954, 4294901760
    %v2206 = vsub.f32 %v1954, %v2205
    %v2207 = vand.u32 %v2206, 4294901760
    %v2208 = vsub.f32 %v2206, %v2207
    %v2209 = vand.u32 %v2208, 4294901760
    %2210 = vmatmul.mubr.f32.gmra.mxu0 %v2209
    %v2211 = vpop.f32.mrf.mxu0
    %v2212 = vadd.f32 %v2002, %v2211
    %v2213 = vpop.f32.mrf.mxu0
    %2214 = vmatprep.mubr.f32.mxu0 0.0
    %v2215 = vand.u32 %v1955, 4294901760
    %v2216 = vsub.f32 %v1955, %v2215
    %v2217 = vand.u32 %v2216, 4294901760
    %v2218 = vsub.f32 %v2216, %v2217
    %v2219 = vand.u32 %v2218, 4294901760
    %2220 = vmatmul.mubr.f32.gmra.mxu0 %v2219
    %v2221 = vpop.f32.mrf.mxu0
    %v2222 = vadd.f32 %v2006, %v2221
    %v2223 = vpop.f32.mrf.mxu0
    %2224 = vmatprep.mubr.f32.mxu0 0.0
    %v2225 = vand.u32 %v1956, 4294901760
    %v2226 = vsub.f32 %v1956, %v2225
    %v2227 = vand.u32 %v2226, 4294901760
    %v2228 = vsub.f32 %v2226, %v2227
    %v2229 = vand.u32 %v2228, 4294901760
    %2230 = vmatmul.mubr.f32.gmra.mxu0 %v2229
    %v2231 = vpop.f32.mrf.mxu0
    %v2232 = vadd.f32 %v2010, %v2231
    %v2233 = vpop.f32.mrf.mxu0
    %2234 = vmatprep.mubr.f32.mxu0 0.0
    %v2235 = vand.u32 %v1957, 4294901760
    %v2236 = vsub.f32 %v1957, %v2235
    %v2237 = vand.u32 %v2236, 4294901760
    %v2238 = vsub.f32 %v2236, %v2237
    %v2239 = vand.u32 %v2238, 4294901760
    %2240 = vmatmul.mubr.f32.gmra.mxu0 %v2239
    %v2241 = vpop.f32.mrf.mxu0
    %v2242 = vadd.f32 %v2014, %v2241
    %v2243 = vpop.f32.mrf.mxu0
    %2244 = vmatprep.mubr.f32.mxu0 0.0
    %v2245 = vand.u32 %v1958, 4294901760
    %v2246 = vsub.f32 %v1958, %v2245
    %v2247 = vand.u32 %v2246, 4294901760
    %v2248 = vsub.f32 %v2246, %v2247
    %v2249 = vand.u32 %v2248, 4294901760
    %2250 = vmatmul.mubr.f32.gmra.mxu0 %v2249
    %v2251 = vpop.f32.mrf.mxu0
    %v2252 = vadd.f32 %v2018, %v2251
    %v2253 = vpop.f32.mrf.mxu0
    %2254 = vmatprep.mubr.f32.mxu0 0.0
    %v2255 = vand.u32 %v1959, 4294901760
    %v2256 = vsub.f32 %v1959, %v2255
    %v2257 = vand.u32 %v2256, 4294901760
    %v2258 = vsub.f32 %v2256, %v2257
    %v2259 = vand.u32 %v2258, 4294901760
    %2260 = vmatmul.mubr.f32.gmra.mxu0 %v2259
    %v2261 = vpop.f32.mrf.mxu0
    %v2262 = vadd.f32 %v2022, %v2261
    %v2263 = vpop.f32.mrf.mxu0
    %2264 = vdwg.mxu0
    %2265 = vmatprep.subr.mxu0 0.0
    %v2266 = vand.u32 %v1943, 4294901760
    %v2267 = vsub.f32 %v1943, %v2266
    %v2268 = vand.u32 %v2267, 4294901760
    %v2269 = vsub.f32 %v2267, %v2268
    %v2270 = vand.u32 %v2269, 4294901760
    %2271 = vmatpush1.msra.mxu0 %v2270
    %2272 = vmatprep.subr.mxu0 0.0
    %v2273 = vand.u32 %v1942, 4294901760
    %v2274 = vsub.f32 %v1942, %v2273
    %v2275 = vand.u32 %v2274, 4294901760
    %v2276 = vsub.f32 %v2274, %v2275
    %v2277 = vand.u32 %v2276, 4294901760
    %2278 = vmatpush1.msra.mxu0 %v2277
    %2279 = vmatprep.subr.mxu0 0.0
    %v2280 = vand.u32 %v1941, 4294901760
    %v2281 = vsub.f32 %v1941, %v2280
    %v2282 = vand.u32 %v2281, 4294901760
    %v2283 = vsub.f32 %v2281, %v2282
    %v2284 = vand.u32 %v2283, 4294901760
    %2285 = vmatpush1.msra.mxu0 %v2284
    %2286 = vmatprep.subr.mxu0 0.0
    %v2287 = vand.u32 %v1940, 4294901760
    %v2288 = vsub.f32 %v1940, %v2287
    %v2289 = vand.u32 %v2288, 4294901760
    %v2290 = vsub.f32 %v2288, %v2289
    %v2291 = vand.u32 %v2290, 4294901760
    %2292 = vmatpush1.msra.mxu0 %v2291
    %2293 = vmatprep.subr.mxu0 0.0
    %v2294 = vand.u32 %v1939, 4294901760
    %v2295 = vsub.f32 %v1939, %v2294
    %v2296 = vand.u32 %v2295, 4294901760
    %v2297 = vsub.f32 %v2295, %v2296
    %v2298 = vand.u32 %v2297, 4294901760
    %2299 = vmatpush1.msra.mxu0 %v2298
    %2300 = vmatprep.subr.mxu0 0.0
    %v2301 = vand.u32 %v1938, 4294901760
    %v2302 = vsub.f32 %v1938, %v2301
    %v2303 = vand.u32 %v2302, 4294901760
    %v2304 = vsub.f32 %v2302, %v2303
    %v2305 = vand.u32 %v2304, 4294901760
    %2306 = vmatpush1.msra.mxu0 %v2305
    %2307 = vmatprep.subr.mxu0 0.0
    %v2308 = vand.u32 %v1937, 4294901760
    %v2309 = vsub.f32 %v1937, %v2308
    %v2310 = vand.u32 %v2309, 4294901760
    %v2311 = vsub.f32 %v2309, %v2310
    %v2312 = vand.u32 %v2311, 4294901760
    %2313 = vmatpush1.msra.mxu0 %v2312
    %2314 = vmatprep.subr.mxu0 0.0
    %v2315 = vand.u32 %v1936, 4294901760
    %v2316 = vsub.f32 %v1936, %v2315
    %v2317 = vand.u32 %v2316, 4294901760
    %v2318 = vsub.f32 %v2316, %v2317
    %v2319 = vand.u32 %v2318, 4294901760
    %2320 = vmatpush1.msra.mxu0 %v2319
    %2321 = vmatprep.subr.mxu0 0.0
    %v2322 = vand.u32 %v1935, 4294901760
    %v2323 = vsub.f32 %v1935, %v2322
    %v2324 = vand.u32 %v2323, 4294901760
    %v2325 = vsub.f32 %v2323, %v2324
    %v2326 = vand.u32 %v2325, 4294901760
    %2327 = vmatpush1.msra.mxu0 %v2326
    %2328 = vmatprep.subr.mxu0 0.0
    %v2329 = vand.u32 %v1934, 4294901760
    %v2330 = vsub.f32 %v1934, %v2329
    %v2331 = vand.u32 %v2330, 4294901760
    %v2332 = vsub.f32 %v2330, %v2331
    %v2333 = vand.u32 %v2332, 4294901760
    %2334 = vmatpush1.msra.mxu0 %v2333
    %2335 = vmatprep.subr.mxu0 0.0
    %v2336 = vand.u32 %v1933, 4294901760
    %v2337 = vsub.f32 %v1933, %v2336
    %v2338 = vand.u32 %v2337, 4294901760
    %v2339 = vsub.f32 %v2337, %v2338
    %v2340 = vand.u32 %v2339, 4294901760
    %2341 = vmatpush1.msra.mxu0 %v2340
    %2342 = vmatprep.subr.mxu0 0.0
    %v2343 = vand.u32 %v1932, 4294901760
    %v2344 = vsub.f32 %v1932, %v2343
    %v2345 = vand.u32 %v2344, 4294901760
    %v2346 = vsub.f32 %v2344, %v2345
    %v2347 = vand.u32 %v2346, 4294901760
    %2348 = vmatpush1.msra.mxu0 %v2347
    %2349 = vmatprep.subr.mxu0 0.0
    %v2350 = vand.u32 %v1931, 4294901760
    %v2351 = vsub.f32 %v1931, %v2350
    %v2352 = vand.u32 %v2351, 4294901760
    %v2353 = vsub.f32 %v2351, %v2352
    %v2354 = vand.u32 %v2353, 4294901760
    %2355 = vmatpush1.msra.mxu0 %v2354
    %2356 = vmatprep.subr.mxu0 0.0
    %v2357 = vand.u32 %v1930, 4294901760
    %v2358 = vsub.f32 %v1930, %v2357
    %v2359 = vand.u32 %v2358, 4294901760
    %v2360 = vsub.f32 %v2358, %v2359
    %v2361 = vand.u32 %v2360, 4294901760
    %2362 = vmatpush1.msra.mxu0 %v2361
    %2363 = vmatprep.subr.mxu0 0.0
    %v2364 = vand.u32 %v1929, 4294901760
    %v2365 = vsub.f32 %v1929, %v2364
    %v2366 = vand.u32 %v2365, 4294901760
    %v2367 = vsub.f32 %v2365, %v2366
    %v2368 = vand.u32 %v2367, 4294901760
    %2369 = vmatpush1.msra.mxu0 %v2368
    %2370 = vmatprep.subr.mxu0 0.0
    %v2371 = vand.u32 %v1928, 4294901760
    %v2372 = vsub.f32 %v1928, %v2371
    %v2373 = vand.u32 %v2372, 4294901760
    %v2374 = vsub.f32 %v2372, %v2373
    %v2375 = vand.u32 %v2374, 4294901760
    %2376 = vmatpush1.msra.mxu0 %v2375
    %2377 = vmatprep.subr.mxu0 0.0
    %2378 = vmatpush2.msra.mxu0 0.0
    %2379 = vmatprep.subr.mxu0 0.0
    %2380 = vmatpush2.msra.mxu0 0.0
    %2381 = vmatprep.subr.mxu0 0.0
    %2382 = vmatpush2.msra.mxu0 0.0
    %2383 = vmatprep.subr.mxu0 0.0
    %2384 = vmatpush2.msra.mxu0 0.0
    %2385 = vmatprep.subr.mxu0 0.0
    %2386 = vmatpush2.msra.mxu0 0.0
    %2387 = vmatprep.subr.mxu0 0.0
    %2388 = vmatpush2.msra.mxu0 0.0
    %2389 = vmatprep.subr.mxu0 0.0
    %2390 = vmatpush2.msra.mxu0 0.0
    %2391 = vmatprep.subr.mxu0 0.0
    %2392 = vmatpush2.msra.mxu0 0.0
    %2393 = vmatprep.subr.mxu0 0.0
    %2394 = vmatpush2.msra.mxu0 0.0
    %2395 = vmatprep.subr.mxu0 0.0
    %2396 = vmatpush2.msra.mxu0 0.0
    %2397 = vmatprep.subr.mxu0 0.0
    %2398 = vmatpush2.msra.mxu0 0.0
    %2399 = vmatprep.subr.mxu0 0.0
    %2400 = vmatpush2.msra.mxu0 0.0
    %2401 = vmatprep.subr.mxu0 0.0
    %2402 = vmatpush2.msra.mxu0 0.0
    %2403 = vmatprep.subr.mxu0 0.0
    %2404 = vmatpush2.msra.mxu0 0.0
    %2405 = vmatprep.subr.mxu0 0.0
    %2406 = vmatpush2.msra.mxu0 0.0
    %2407 = vmatprep.subr.mxu0 0.0
    %2408 = vmatpush2.msra.mxu0 0.0
    %2409 = vmatprep.mubr.f32.mxu0 0.0
    %v2410 = vand.u32 %v1944, 4294901760
    %2411 = vmatmul.mubr.f32.gmra.mxu0 %v2410
    %v2412 = vpop.f32.mrf.mxu0
    %v2413 = vadd.f32 %v2112, %v2412
    %v2414 = vpop.f32.mrf.mxu0
    %2415 = vmatprep.mubr.f32.mxu0 0.0
    %v2416 = vand.u32 %v1945, 4294901760
    %2417 = vmatmul.mubr.f32.gmra.mxu0 %v2416
    %v2418 = vpop.f32.mrf.mxu0
    %v2419 = vadd.f32 %v2122, %v2418
    %v2420 = vpop.f32.mrf.mxu0
    %2421 = vmatprep.mubr.f32.mxu0 0.0
    %v2422 = vand.u32 %v1946, 4294901760
    %2423 = vmatmul.mubr.f32.gmra.mxu0 %v2422
    %v2424 = vpop.f32.mrf.mxu0
    %v2425 = vadd.f32 %v2132, %v2424
    %v2426 = vpop.f32.mrf.mxu0
    %2427 = vmatprep.mubr.f32.mxu0 0.0
    %v2428 = vand.u32 %v1947, 4294901760
    %2429 = vmatmul.mubr.f32.gmra.mxu0 %v2428
    %v2430 = vpop.f32.mrf.mxu0
    %v2431 = vadd.f32 %v2142, %v2430
    %v2432 = vpop.f32.mrf.mxu0
    %2433 = vmatprep.mubr.f32.mxu0 0.0
    %v2434 = vand.u32 %v1948, 4294901760
    %2435 = vmatmul.mubr.f32.gmra.mxu0 %v2434
    %v2436 = vpop.f32.mrf.mxu0
    %v2437 = vadd.f32 %v2152, %v2436
    %v2438 = vpop.f32.mrf.mxu0
    %2439 = vmatprep.mubr.f32.mxu0 0.0
    %v2440 = vand.u32 %v1949, 4294901760
    %2441 = vmatmul.mubr.f32.gmra.mxu0 %v2440
    %v2442 = vpop.f32.mrf.mxu0
    %v2443 = vadd.f32 %v2162, %v2442
    %v2444 = vpop.f32.mrf.mxu0
    %2445 = vmatprep.mubr.f32.mxu0 0.0
    %v2446 = vand.u32 %v1950, 4294901760
    %2447 = vmatmul.mubr.f32.gmra.mxu0 %v2446
    %v2448 = vpop.f32.mrf.mxu0
    %v2449 = vadd.f32 %v2172, %v2448
    %v2450 = vpop.f32.mrf.mxu0
    %2451 = vmatprep.mubr.f32.mxu0 0.0
    %v2452 = vand.u32 %v1951, 4294901760
    %2453 = vmatmul.mubr.f32.gmra.mxu0 %v2452
    %v2454 = vpop.f32.mrf.mxu0
    %v2455 = vadd.f32 %v2182, %v2454
    %v2456 = vpop.f32.mrf.mxu0
    %2457 = vmatprep.mubr.f32.mxu0 0.0
    %v2458 = vand.u32 %v1952, 4294901760
    %2459 = vmatmul.mubr.f32.gmra.mxu0 %v2458
    %v2460 = vpop.f32.mrf.mxu0
    %v2461 = vadd.f32 %v2192, %v2460
    %v2462 = vpop.f32.mrf.mxu0
    %2463 = vmatprep.mubr.f32.mxu0 0.0
    %v2464 = vand.u32 %v1953, 4294901760
    %2465 = vmatmul.mubr.f32.gmra.mxu0 %v2464
    %v2466 = vpop.f32.mrf.mxu0
    %v2467 = vadd.f32 %v2202, %v2466
    %v2468 = vpop.f32.mrf.mxu0
    %2469 = vmatprep.mubr.f32.mxu0 0.0
    %v2470 = vand.u32 %v1954, 4294901760
    %2471 = vmatmul.mubr.f32.gmra.mxu0 %v2470
    %v2472 = vpop.f32.mrf.mxu0
    %v2473 = vadd.f32 %v2212, %v2472
    %v2474 = vpop.f32.mrf.mxu0
    %2475 = vmatprep.mubr.f32.mxu0 0.0
    %v2476 = vand.u32 %v1955, 4294901760
    %2477 = vmatmul.mubr.f32.gmra.mxu0 %v2476
    %v2478 = vpop.f32.mrf.mxu0
    %v2479 = vadd.f32 %v2222, %v2478
    %v2480 = vpop.f32.mrf.mxu0
    %2481 = vmatprep.mubr.f32.mxu0 0.0
    %v2482 = vand.u32 %v1956, 4294901760
    %2483 = vmatmul.mubr.f32.gmra.mxu0 %v2482
    %v2484 = vpop.f32.mrf.mxu0
    %v2485 = vadd.f32 %v2232, %v2484
    %v2486 = vpop.f32.mrf.mxu0
    %2487 = vmatprep.mubr.f32.mxu0 0.0
    %v2488 = vand.u32 %v1957, 4294901760
    %2489 = vmatmul.mubr.f32.gmra.mxu0 %v2488
    %v2490 = vpop.f32.mrf.mxu0
    %v2491 = vadd.f32 %v2242, %v2490
    %v2492 = vpop.f32.mrf.mxu0
    %2493 = vmatprep.mubr.f32.mxu0 0.0
    %v2494 = vand.u32 %v1958, 4294901760
    %2495 = vmatmul.mubr.f32.gmra.mxu0 %v2494
    %v2496 = vpop.f32.mrf.mxu0
    %v2497 = vadd.f32 %v2252, %v2496
    %v2498 = vpop.f32.mrf.mxu0
    %2499 = vmatprep.mubr.f32.mxu0 0.0
    %v2500 = vand.u32 %v1959, 4294901760
    %2501 = vmatmul.mubr.f32.gmra.mxu0 %v2500
    %v2502 = vpop.f32.mrf.mxu0
    %v2503 = vadd.f32 %v2262, %v2502
    %v2504 = vpop.f32.mrf.mxu0
    %2505 = vdwg.mxu0
    %2506 = vmatprep.subr.mxu0 0.0
    %v2507 = vand.u32 %v1943, 4294901760
    %v2508 = vsub.f32 %v1943, %v2507
    %2509 = vmatpush1.msra.mxu0 %v2508
    %2510 = vmatprep.subr.mxu0 0.0
    %v2511 = vand.u32 %v1942, 4294901760
    %v2512 = vsub.f32 %v1942, %v2511
    %2513 = vmatpush1.msra.mxu0 %v2512
    %2514 = vmatprep.subr.mxu0 0.0
    %v2515 = vand.u32 %v1941, 4294901760
    %v2516 = vsub.f32 %v1941, %v2515
    %2517 = vmatpush1.msra.mxu0 %v2516
    %2518 = vmatprep.subr.mxu0 0.0
    %v2519 = vand.u32 %v1940, 4294901760
    %v2520 = vsub.f32 %v1940, %v2519
    %2521 = vmatpush1.msra.mxu0 %v2520
    %2522 = vmatprep.subr.mxu0 0.0
    %v2523 = vand.u32 %v1939, 4294901760
    %v2524 = vsub.f32 %v1939, %v2523
    %2525 = vmatpush1.msra.mxu0 %v2524
    %2526 = vmatprep.subr.mxu0 0.0
    %v2527 = vand.u32 %v1938, 4294901760
    %v2528 = vsub.f32 %v1938, %v2527
    %2529 = vmatpush1.msra.mxu0 %v2528
    %2530 = vmatprep.subr.mxu0 0.0
    %v2531 = vand.u32 %v1937, 4294901760
    %v2532 = vsub.f32 %v1937, %v2531
    %2533 = vmatpush1.msra.mxu0 %v2532
    %2534 = vmatprep.subr.mxu0 0.0
    %v2535 = vand.u32 %v1936, 4294901760
    %v2536 = vsub.f32 %v1936, %v2535
    %2537 = vmatpush1.msra.mxu0 %v2536
    %2538 = vmatprep.subr.mxu0 0.0
    %v2539 = vand.u32 %v1935, 4294901760
    %v2540 = vsub.f32 %v1935, %v2539
    %2541 = vmatpush1.msra.mxu0 %v2540
    %2542 = vmatprep.subr.mxu0 0.0
    %v2543 = vand.u32 %v1934, 4294901760
    %v2544 = vsub.f32 %v1934, %v2543
    %2545 = vmatpush1.msra.mxu0 %v2544
    %2546 = vmatprep.subr.mxu0 0.0
    %v2547 = vand.u32 %v1933, 4294901760
    %v2548 = vsub.f32 %v1933, %v2547
    %2549 = vmatpush1.msra.mxu0 %v2548
    %2550 = vmatprep.subr.mxu0 0.0
    %v2551 = vand.u32 %v1932, 4294901760
    %v2552 = vsub.f32 %v1932, %v2551
    %2553 = vmatpush1.msra.mxu0 %v2552
    %2554 = vmatprep.subr.mxu0 0.0
    %v2555 = vand.u32 %v1931, 4294901760
    %v2556 = vsub.f32 %v1931, %v2555
    %2557 = vmatpush1.msra.mxu0 %v2556
    %2558 = vmatprep.subr.mxu0 0.0
    %v2559 = vand.u32 %v1930, 4294901760
    %v2560 = vsub.f32 %v1930, %v2559
    %2561 = vmatpush1.msra.mxu0 %v2560
    %2562 = vmatprep.subr.mxu0 0.0
    %v2563 = vand.u32 %v1929, 4294901760
    %v2564 = vsub.f32 %v1929, %v2563
    %2565 = vmatpush1.msra.mxu0 %v2564
    %2566 = vmatprep.subr.mxu0 0.0
    %v2567 = vand.u32 %v1928, 4294901760
    %v2568 = vsub.f32 %v1928, %v2567
    %2569 = vmatpush1.msra.mxu0 %v2568
    %2570 = vmatprep.subr.mxu0 0.0
    %2571 = vmatpush2.msra.mxu0 0.0
    %2572 = vmatprep.subr.mxu0 0.0
    %2573 = vmatpush2.msra.mxu0 0.0
    %2574 = vmatprep.subr.mxu0 0.0
    %2575 = vmatpush2.msra.mxu0 0.0
    %2576 = vmatprep.subr.mxu0 0.0
    %2577 = vmatpush2.msra.mxu0 0.0
    %2578 = vmatprep.subr.mxu0 0.0
    %2579 = vmatpush2.msra.mxu0 0.0
    %2580 = vmatprep.subr.mxu0 0.0
    %2581 = vmatpush2.msra.mxu0 0.0
    %2582 = vmatprep.subr.mxu0 0.0
    %2583 = vmatpush2.msra.mxu0 0.0
    %2584 = vmatprep.subr.mxu0 0.0
    %2585 = vmatpush2.msra.mxu0 0.0
    %2586 = vmatprep.subr.mxu0 0.0
    %2587 = vmatpush2.msra.mxu0 0.0
    %2588 = vmatprep.subr.mxu0 0.0
    %2589 = vmatpush2.msra.mxu0 0.0
    %2590 = vmatprep.subr.mxu0 0.0
    %2591 = vmatpush2.msra.mxu0 0.0
    %2592 = vmatprep.subr.mxu0 0.0
    %2593 = vmatpush2.msra.mxu0 0.0
    %2594 = vmatprep.subr.mxu0 0.0
    %2595 = vmatpush2.msra.mxu0 0.0
    %2596 = vmatprep.subr.mxu0 0.0
    %2597 = vmatpush2.msra.mxu0 0.0
    %2598 = vmatprep.subr.mxu0 0.0
    %2599 = vmatpush2.msra.mxu0 0.0
    %2600 = vmatprep.subr.mxu0 0.0
    %2601 = vmatpush2.msra.mxu0 0.0
    %2602 = vmatprep.mubr.f32.mxu0 0.0
    %v2603 = vand.u32 %v1944, 4294901760
    %v2604 = vsub.f32 %v1944, %v2603
    %2605 = vmatmul.mubr.f32.gmra.mxu0 %v2604
    %v2606 = vpop.f32.mrf.mxu0
    %v2607 = vadd.f32 %v2413, %v2606
    %v2608 = vpop.f32.mrf.mxu0
    %2609 = vmatprep.mubr.f32.mxu0 0.0
    %v2610 = vand.u32 %v1945, 4294901760
    %v2611 = vsub.f32 %v1945, %v2610
    %2612 = vmatmul.mubr.f32.gmra.mxu0 %v2611
    %v2613 = vpop.f32.mrf.mxu0
    %v2614 = vadd.f32 %v2419, %v2613
    %v2615 = vpop.f32.mrf.mxu0
    %2616 = vmatprep.mubr.f32.mxu0 0.0
    %v2617 = vand.u32 %v1946, 4294901760
    %v2618 = vsub.f32 %v1946, %v2617
    %2619 = vmatmul.mubr.f32.gmra.mxu0 %v2618
    %v2620 = vpop.f32.mrf.mxu0
    %v2621 = vadd.f32 %v2425, %v2620
    %v2622 = vpop.f32.mrf.mxu0
    %2623 = vmatprep.mubr.f32.mxu0 0.0
    %v2624 = vand.u32 %v1947, 4294901760
    %v2625 = vsub.f32 %v1947, %v2624
    %2626 = vmatmul.mubr.f32.gmra.mxu0 %v2625
    %v2627 = vpop.f32.mrf.mxu0
    %v2628 = vadd.f32 %v2431, %v2627
    %v2629 = vpop.f32.mrf.mxu0
    %2630 = vmatprep.mubr.f32.mxu0 0.0
    %v2631 = vand.u32 %v1948, 4294901760
    %v2632 = vsub.f32 %v1948, %v2631
    %2633 = vmatmul.mubr.f32.gmra.mxu0 %v2632
    %v2634 = vpop.f32.mrf.mxu0
    %v2635 = vadd.f32 %v2437, %v2634
    %v2636 = vpop.f32.mrf.mxu0
    %2637 = vmatprep.mubr.f32.mxu0 0.0
    %v2638 = vand.u32 %v1949, 4294901760
    %v2639 = vsub.f32 %v1949, %v2638
    %2640 = vmatmul.mubr.f32.gmra.mxu0 %v2639
    %v2641 = vpop.f32.mrf.mxu0
    %v2642 = vadd.f32 %v2443, %v2641
    %v2643 = vpop.f32.mrf.mxu0
    %2644 = vmatprep.mubr.f32.mxu0 0.0
    %v2645 = vand.u32 %v1950, 4294901760
    %v2646 = vsub.f32 %v1950, %v2645
    %2647 = vmatmul.mubr.f32.gmra.mxu0 %v2646
    %v2648 = vpop.f32.mrf.mxu0
    %v2649 = vadd.f32 %v2449, %v2648
    %v2650 = vpop.f32.mrf.mxu0
    %2651 = vmatprep.mubr.f32.mxu0 0.0
    %v2652 = vand.u32 %v1951, 4294901760
    %v2653 = vsub.f32 %v1951, %v2652
    %2654 = vmatmul.mubr.f32.gmra.mxu0 %v2653
    %v2655 = vpop.f32.mrf.mxu0
    %v2656 = vadd.f32 %v2455, %v2655
    %v2657 = vpop.f32.mrf.mxu0
    %2658 = vmatprep.mubr.f32.mxu0 0.0
    %v2659 = vand.u32 %v1952, 4294901760
    %v2660 = vsub.f32 %v1952, %v2659
    %2661 = vmatmul.mubr.f32.gmra.mxu0 %v2660
    %v2662 = vpop.f32.mrf.mxu0
    %v2663 = vadd.f32 %v2461, %v2662
    %v2664 = vpop.f32.mrf.mxu0
    %2665 = vmatprep.mubr.f32.mxu0 0.0
    %v2666 = vand.u32 %v1953, 4294901760
    %v2667 = vsub.f32 %v1953, %v2666
    %2668 = vmatmul.mubr.f32.gmra.mxu0 %v2667
    %v2669 = vpop.f32.mrf.mxu0
    %v2670 = vadd.f32 %v2467, %v2669
    %v2671 = vpop.f32.mrf.mxu0
    %2672 = vmatprep.mubr.f32.mxu0 0.0
    %v2673 = vand.u32 %v1954, 4294901760
    %v2674 = vsub.f32 %v1954, %v2673
    %2675 = vmatmul.mubr.f32.gmra.mxu0 %v2674
    %v2676 = vpop.f32.mrf.mxu0
    %v2677 = vadd.f32 %v2473, %v2676
    %v2678 = vpop.f32.mrf.mxu0
    %2679 = vmatprep.mubr.f32.mxu0 0.0
    %v2680 = vand.u32 %v1955, 4294901760
    %v2681 = vsub.f32 %v1955, %v2680
    %2682 = vmatmul.mubr.f32.gmra.mxu0 %v2681
    %v2683 = vpop.f32.mrf.mxu0
    %v2684 = vadd.f32 %v2479, %v2683
    %v2685 = vpop.f32.mrf.mxu0
    %2686 = vmatprep.mubr.f32.mxu0 0.0
    %v2687 = vand.u32 %v1956, 4294901760
    %v2688 = vsub.f32 %v1956, %v2687
    %2689 = vmatmul.mubr.f32.gmra.mxu0 %v2688
    %v2690 = vpop.f32.mrf.mxu0
    %v2691 = vadd.f32 %v2485, %v2690
    %v2692 = vpop.f32.mrf.mxu0
    %2693 = vmatprep.mubr.f32.mxu0 0.0
    %v2694 = vand.u32 %v1957, 4294901760
    %v2695 = vsub.f32 %v1957, %v2694
    %2696 = vmatmul.mubr.f32.gmra.mxu0 %v2695
    %v2697 = vpop.f32.mrf.mxu0
    %v2698 = vadd.f32 %v2491, %v2697
    %v2699 = vpop.f32.mrf.mxu0
    %2700 = vmatprep.mubr.f32.mxu0 0.0
    %v2701 = vand.u32 %v1958, 4294901760
    %v2702 = vsub.f32 %v1958, %v2701
    %2703 = vmatmul.mubr.f32.gmra.mxu0 %v2702
    %v2704 = vpop.f32.mrf.mxu0
    %v2705 = vadd.f32 %v2497, %v2704
    %v2706 = vpop.f32.mrf.mxu0
    %2707 = vmatprep.mubr.f32.mxu0 0.0
    %v2708 = vand.u32 %v1959, 4294901760
    %v2709 = vsub.f32 %v1959, %v2708
    %2710 = vmatmul.mubr.f32.gmra.mxu0 %v2709
    %v2711 = vpop.f32.mrf.mxu0
    %v2712 = vadd.f32 %v2503, %v2711
    %v2713 = vpop.f32.mrf.mxu0
    %2714 = vdwg.mxu0
    %2715 = vmatprep.subr.mxu0 0.0
    %v2716 = vand.u32 %v1943, 4294901760
    %2717 = vmatpush1.msra.mxu0 %v2716
    %2718 = vmatprep.subr.mxu0 0.0
    %v2719 = vand.u32 %v1942, 4294901760
    %2720 = vmatpush1.msra.mxu0 %v2719
    %2721 = vmatprep.subr.mxu0 0.0
    %v2722 = vand.u32 %v1941, 4294901760
    %2723 = vmatpush1.msra.mxu0 %v2722
    %2724 = vmatprep.subr.mxu0 0.0
    %v2725 = vand.u32 %v1940, 4294901760
    %2726 = vmatpush1.msra.mxu0 %v2725
    %2727 = vmatprep.subr.mxu0 0.0
    %v2728 = vand.u32 %v1939, 4294901760
    %2729 = vmatpush1.msra.mxu0 %v2728
    %2730 = vmatprep.subr.mxu0 0.0
    %v2731 = vand.u32 %v1938, 4294901760
    %2732 = vmatpush1.msra.mxu0 %v2731
    %2733 = vmatprep.subr.mxu0 0.0
    %v2734 = vand.u32 %v1937, 4294901760
    %2735 = vmatpush1.msra.mxu0 %v2734
    %2736 = vmatprep.subr.mxu0 0.0
    %v2737 = vand.u32 %v1936, 4294901760
    %2738 = vmatpush1.msra.mxu0 %v2737
    %2739 = vmatprep.subr.mxu0 0.0
    %v2740 = vand.u32 %v1935, 4294901760
    %2741 = vmatpush1.msra.mxu0 %v2740
    %2742 = vmatprep.subr.mxu0 0.0
    %v2743 = vand.u32 %v1934, 4294901760
    %2744 = vmatpush1.msra.mxu0 %v2743
    %2745 = vmatprep.subr.mxu0 0.0
    %v2746 = vand.u32 %v1933, 4294901760
    %2747 = vmatpush1.msra.mxu0 %v2746
    %2748 = vmatprep.subr.mxu0 0.0
    %v2749 = vand.u32 %v1932, 4294901760
    %2750 = vmatpush1.msra.mxu0 %v2749
    %2751 = vmatprep.subr.mxu0 0.0
    %v2752 = vand.u32 %v1931, 4294901760
    %2753 = vmatpush1.msra.mxu0 %v2752
    %2754 = vmatprep.subr.mxu0 0.0
    %v2755 = vand.u32 %v1930, 4294901760
    %2756 = vmatpush1.msra.mxu0 %v2755
    %2757 = vmatprep.subr.mxu0 0.0
    %v2758 = vand.u32 %v1929, 4294901760
    %2759 = vmatpush1.msra.mxu0 %v2758
    %2760 = vmatprep.subr.mxu0 0.0
    %v2761 = vand.u32 %v1928, 4294901760
    %2762 = vmatpush1.msra.mxu0 %v2761
    %2763 = vmatprep.subr.mxu0 0.0
    %2764 = vmatpush2.msra.mxu0 0.0
    %2765 = vmatprep.subr.mxu0 0.0
    %2766 = vmatpush2.msra.mxu0 0.0
    %2767 = vmatprep.subr.mxu0 0.0
    %2768 = vmatpush2.msra.mxu0 0.0
    %2769 = vmatprep.subr.mxu0 0.0
    %2770 = vmatpush2.msra.mxu0 0.0
    %2771 = vmatprep.subr.mxu0 0.0
    %2772 = vmatpush2.msra.mxu0 0.0
    %2773 = vmatprep.subr.mxu0 0.0
    %2774 = vmatpush2.msra.mxu0 0.0
    %2775 = vmatprep.subr.mxu0 0.0
    %2776 = vmatpush2.msra.mxu0 0.0
    %2777 = vmatprep.subr.mxu0 0.0
    %2778 = vmatpush2.msra.mxu0 0.0
    %2779 = vmatprep.subr.mxu0 0.0
    %2780 = vmatpush2.msra.mxu0 0.0
    %2781 = vmatprep.subr.mxu0 0.0
    %2782 = vmatpush2.msra.mxu0 0.0
    %2783 = vmatprep.subr.mxu0 0.0
    %2784 = vmatpush2.msra.mxu0 0.0
    %2785 = vmatprep.subr.mxu0 0.0
    %2786 = vmatpush2.msra.mxu0 0.0
    %2787 = vmatprep.subr.mxu0 0.0
    %2788 = vmatpush2.msra.mxu0 0.0
    %2789 = vmatprep.subr.mxu0 0.0
    %2790 = vmatpush2.msra.mxu0 0.0
    %2791 = vmatprep.subr.mxu0 0.0
    %2792 = vmatpush2.msra.mxu0 0.0
    %2793 = vmatprep.subr.mxu0 0.0
    %2794 = vmatpush2.msra.mxu0 0.0
    %2795 = vmatprep.mubr.f32.mxu0 0.0
    %v2796 = vand.u32 %v1944, 4294901760
    %v2797 = vsub.f32 %v1944, %v2796
    %v2798 = vand.u32 %v2797, 4294901760
    %2799 = vmatmul.mubr.f32.gmra.mxu0 %v2798
    %v2800 = vpop.f32.mrf.mxu0
    %v2801 = vadd.f32 %v2607, %v2800
    %v2802 = vpop.f32.mrf.mxu0
    %2803 = vmatprep.mubr.f32.mxu0 0.0
    %v2804 = vand.u32 %v1945, 4294901760
    %v2805 = vsub.f32 %v1945, %v2804
    %v2806 = vand.u32 %v2805, 4294901760
    %2807 = vmatmul.mubr.f32.gmra.mxu0 %v2806
    %v2808 = vpop.f32.mrf.mxu0
    %v2809 = vadd.f32 %v2614, %v2808
    %v2810 = vpop.f32.mrf.mxu0
    %2811 = vmatprep.mubr.f32.mxu0 0.0
    %v2812 = vand.u32 %v1946, 4294901760
    %v2813 = vsub.f32 %v1946, %v2812
    %v2814 = vand.u32 %v2813, 4294901760
    %2815 = vmatmul.mubr.f32.gmra.mxu0 %v2814
    %v2816 = vpop.f32.mrf.mxu0
    %v2817 = vadd.f32 %v2621, %v2816
    %v2818 = vpop.f32.mrf.mxu0
    %2819 = vmatprep.mubr.f32.mxu0 0.0
    %v2820 = vand.u32 %v1947, 4294901760
    %v2821 = vsub.f32 %v1947, %v2820
    %v2822 = vand.u32 %v2821, 4294901760
    %2823 = vmatmul.mubr.f32.gmra.mxu0 %v2822
    %v2824 = vpop.f32.mrf.mxu0
    %v2825 = vadd.f32 %v2628, %v2824
    %v2826 = vpop.f32.mrf.mxu0
    %2827 = vmatprep.mubr.f32.mxu0 0.0
    %v2828 = vand.u32 %v1948, 4294901760
    %v2829 = vsub.f32 %v1948, %v2828
    %v2830 = vand.u32 %v2829, 4294901760
    %2831 = vmatmul.mubr.f32.gmra.mxu0 %v2830
    %v2832 = vpop.f32.mrf.mxu0
    %v2833 = vadd.f32 %v2635, %v2832
    %v2834 = vpop.f32.mrf.mxu0
    %2835 = vmatprep.mubr.f32.mxu0 0.0
    %v2836 = vand.u32 %v1949, 4294901760
    %v2837 = vsub.f32 %v1949, %v2836
    %v2838 = vand.u32 %v2837, 4294901760
    %2839 = vmatmul.mubr.f32.gmra.mxu0 %v2838
    %v2840 = vpop.f32.mrf.mxu0
    %v2841 = vadd.f32 %v2642, %v2840
    %v2842 = vpop.f32.mrf.mxu0
    %2843 = vmatprep.mubr.f32.mxu0 0.0
    %v2844 = vand.u32 %v1950, 4294901760
    %v2845 = vsub.f32 %v1950, %v2844
    %v2846 = vand.u32 %v2845, 4294901760
    %2847 = vmatmul.mubr.f32.gmra.mxu0 %v2846
    %v2848 = vpop.f32.mrf.mxu0
    %v2849 = vadd.f32 %v2649, %v2848
    %v2850 = vpop.f32.mrf.mxu0
    %2851 = vmatprep.mubr.f32.mxu0 0.0
    %v2852 = vand.u32 %v1951, 4294901760
    %v2853 = vsub.f32 %v1951, %v2852
    %v2854 = vand.u32 %v2853, 4294901760
    %2855 = vmatmul.mubr.f32.gmra.mxu0 %v2854
    %v2856 = vpop.f32.mrf.mxu0
    %v2857 = vadd.f32 %v2656, %v2856
    %v2858 = vpop.f32.mrf.mxu0
    %2859 = vmatprep.mubr.f32.mxu0 0.0
    %v2860 = vand.u32 %v1952, 4294901760
    %v2861 = vsub.f32 %v1952, %v2860
    %v2862 = vand.u32 %v2861, 4294901760
    %2863 = vmatmul.mubr.f32.gmra.mxu0 %v2862
    %v2864 = vpop.f32.mrf.mxu0
    %v2865 = vadd.f32 %v2663, %v2864
    %v2866 = vpop.f32.mrf.mxu0
    %2867 = vmatprep.mubr.f32.mxu0 0.0
    %v2868 = vand.u32 %v1953, 4294901760
    %v2869 = vsub.f32 %v1953, %v2868
    %v2870 = vand.u32 %v2869, 4294901760
    %2871 = vmatmul.mubr.f32.gmra.mxu0 %v2870
    %v2872 = vpop.f32.mrf.mxu0
    %v2873 = vadd.f32 %v2670, %v2872
    %v2874 = vpop.f32.mrf.mxu0
    %2875 = vmatprep.mubr.f32.mxu0 0.0
    %v2876 = vand.u32 %v1954, 4294901760
    %v2877 = vsub.f32 %v1954, %v2876
    %v2878 = vand.u32 %v2877, 4294901760
    %2879 = vmatmul.mubr.f32.gmra.mxu0 %v2878
    %v2880 = vpop.f32.mrf.mxu0
    %v2881 = vadd.f32 %v2677, %v2880
    %v2882 = vpop.f32.mrf.mxu0
    %2883 = vmatprep.mubr.f32.mxu0 0.0
    %v2884 = vand.u32 %v1955, 4294901760
    %v2885 = vsub.f32 %v1955, %v2884
    %v2886 = vand.u32 %v2885, 4294901760
    %2887 = vmatmul.mubr.f32.gmra.mxu0 %v2886
    %v2888 = vpop.f32.mrf.mxu0
    %v2889 = vadd.f32 %v2684, %v2888
    %v2890 = vpop.f32.mrf.mxu0
    %2891 = vmatprep.mubr.f32.mxu0 0.0
    %v2892 = vand.u32 %v1956, 4294901760
    %v2893 = vsub.f32 %v1956, %v2892
    %v2894 = vand.u32 %v2893, 4294901760
    %2895 = vmatmul.mubr.f32.gmra.mxu0 %v2894
    %v2896 = vpop.f32.mrf.mxu0
    %v2897 = vadd.f32 %v2691, %v2896
    %v2898 = vpop.f32.mrf.mxu0
    %2899 = vmatprep.mubr.f32.mxu0 0.0
    %v2900 = vand.u32 %v1957, 4294901760
    %v2901 = vsub.f32 %v1957, %v2900
    %v2902 = vand.u32 %v2901, 4294901760
    %2903 = vmatmul.mubr.f32.gmra.mxu0 %v2902
    %v2904 = vpop.f32.mrf.mxu0
    %v2905 = vadd.f32 %v2698, %v2904
    %v2906 = vpop.f32.mrf.mxu0
    %2907 = vmatprep.mubr.f32.mxu0 0.0
    %v2908 = vand.u32 %v1958, 4294901760
    %v2909 = vsub.f32 %v1958, %v2908
    %v2910 = vand.u32 %v2909, 4294901760
    %2911 = vmatmul.mubr.f32.gmra.mxu0 %v2910
    %v2912 = vpop.f32.mrf.mxu0
    %v2913 = vadd.f32 %v2705, %v2912
    %v2914 = vpop.f32.mrf.mxu0
    %2915 = vmatprep.mubr.f32.mxu0 0.0
    %v2916 = vand.u32 %v1959, 4294901760
    %v2917 = vsub.f32 %v1959, %v2916
    %v2918 = vand.u32 %v2917, 4294901760
    %2919 = vmatmul.mubr.f32.gmra.mxu0 %v2918
    %v2920 = vpop.f32.mrf.mxu0
    %v2921 = vadd.f32 %v2712, %v2920
    %v2922 = vpop.f32.mrf.mxu0
    %2923 = vdwg.mxu0
    %2924 = vmatprep.subr.mxu0 0.0
    %v2925 = vand.u32 %v1943, 4294901760
    %v2926 = vsub.f32 %v1943, %v2925
    %v2927 = vand.u32 %v2926, 4294901760
    %2928 = vmatpush1.msra.mxu0 %v2927
    %2929 = vmatprep.subr.mxu0 0.0
    %v2930 = vand.u32 %v1942, 4294901760
    %v2931 = vsub.f32 %v1942, %v2930
    %v2932 = vand.u32 %v2931, 4294901760
    %2933 = vmatpush1.msra.mxu0 %v2932
    %2934 = vmatprep.subr.mxu0 0.0
    %v2935 = vand.u32 %v1941, 4294901760
    %v2936 = vsub.f32 %v1941, %v2935
    %v2937 = vand.u32 %v2936, 4294901760
    %2938 = vmatpush1.msra.mxu0 %v2937
    %2939 = vmatprep.subr.mxu0 0.0
    %v2940 = vand.u32 %v1940, 4294901760
    %v2941 = vsub.f32 %v1940, %v2940
    %v2942 = vand.u32 %v2941, 4294901760
    %2943 = vmatpush1.msra.mxu0 %v2942
    %2944 = vmatprep.subr.mxu0 0.0
    %v2945 = vand.u32 %v1939, 4294901760
    %v2946 = vsub.f32 %v1939, %v2945
    %v2947 = vand.u32 %v2946, 4294901760
    %2948 = vmatpush1.msra.mxu0 %v2947
    %2949 = vmatprep.subr.mxu0 0.0
    %v2950 = vand.u32 %v1938, 4294901760
    %v2951 = vsub.f32 %v1938, %v2950
    %v2952 = vand.u32 %v2951, 4294901760
    %2953 = vmatpush1.msra.mxu0 %v2952
    %2954 = vmatprep.subr.mxu0 0.0
    %v2955 = vand.u32 %v1937, 4294901760
    %v2956 = vsub.f32 %v1937, %v2955
    %v2957 = vand.u32 %v2956, 4294901760
    %2958 = vmatpush1.msra.mxu0 %v2957
    %2959 = vmatprep.subr.mxu0 0.0
    %v2960 = vand.u32 %v1936, 4294901760
    %v2961 = vsub.f32 %v1936, %v2960
    %v2962 = vand.u32 %v2961, 4294901760
    %2963 = vmatpush1.msra.mxu0 %v2962
    %2964 = vmatprep.subr.mxu0 0.0
    %v2965 = vand.u32 %v1935, 4294901760
    %v2966 = vsub.f32 %v1935, %v2965
    %v2967 = vand.u32 %v2966, 4294901760
    %2968 = vmatpush1.msra.mxu0 %v2967
    %2969 = vmatprep.subr.mxu0 0.0
    %v2970 = vand.u32 %v1934, 4294901760
    %v2971 = vsub.f32 %v1934, %v2970
    %v2972 = vand.u32 %v2971, 4294901760
    %2973 = vmatpush1.msra.mxu0 %v2972
    %2974 = vmatprep.subr.mxu0 0.0
    %v2975 = vand.u32 %v1933, 4294901760
    %v2976 = vsub.f32 %v1933, %v2975
    %v2977 = vand.u32 %v2976, 4294901760
    %2978 = vmatpush1.msra.mxu0 %v2977
    %2979 = vmatprep.subr.mxu0 0.0
    %v2980 = vand.u32 %v1932, 4294901760
    %v2981 = vsub.f32 %v1932, %v2980
    %v2982 = vand.u32 %v2981, 4294901760
    %2983 = vmatpush1.msra.mxu0 %v2982
    %2984 = vmatprep.subr.mxu0 0.0
    %v2985 = vand.u32 %v1931, 4294901760
    %v2986 = vsub.f32 %v1931, %v2985
    %v2987 = vand.u32 %v2986, 4294901760
    %2988 = vmatpush1.msra.mxu0 %v2987
    %2989 = vmatprep.subr.mxu0 0.0
    %v2990 = vand.u32 %v1930, 4294901760
    %v2991 = vsub.f32 %v1930, %v2990
    %v2992 = vand.u32 %v2991, 4294901760
    %2993 = vmatpush1.msra.mxu0 %v2992
    %2994 = vmatprep.subr.mxu0 0.0
    %v2995 = vand.u32 %v1929, 4294901760
    %v2996 = vsub.f32 %v1929, %v2995
    %v2997 = vand.u32 %v2996, 4294901760
    %2998 = vmatpush1.msra.mxu0 %v2997
    %2999 = vmatprep.subr.mxu0 0.0
    %v3000 = vand.u32 %v1928, 4294901760
    %v3001 = vsub.f32 %v1928, %v3000
    %v3002 = vand.u32 %v3001, 4294901760
    %3003 = vmatpush1.msra.mxu0 %v3002
    %3004 = vmatprep.subr.mxu0 0.0
    %3005 = vmatpush2.msra.mxu0 0.0
    %3006 = vmatprep.subr.mxu0 0.0
    %3007 = vmatpush2.msra.mxu0 0.0
    %3008 = vmatprep.subr.mxu0 0.0
    %3009 = vmatpush2.msra.mxu0 0.0
    %3010 = vmatprep.subr.mxu0 0.0
    %3011 = vmatpush2.msra.mxu0 0.0
    %3012 = vmatprep.subr.mxu0 0.0
    %3013 = vmatpush2.msra.mxu0 0.0
    %3014 = vmatprep.subr.mxu0 0.0
    %3015 = vmatpush2.msra.mxu0 0.0
    %3016 = vmatprep.subr.mxu0 0.0
    %3017 = vmatpush2.msra.mxu0 0.0
    %3018 = vmatprep.subr.mxu0 0.0
    %3019 = vmatpush2.msra.mxu0 0.0
    %3020 = vmatprep.subr.mxu0 0.0
    %3021 = vmatpush2.msra.mxu0 0.0
    %3022 = vmatprep.subr.mxu0 0.0
    %3023 = vmatpush2.msra.mxu0 0.0
    %3024 = vmatprep.subr.mxu0 0.0
    %3025 = vmatpush2.msra.mxu0 0.0
    %3026 = vmatprep.subr.mxu0 0.0
    %3027 = vmatpush2.msra.mxu0 0.0
    %3028 = vmatprep.subr.mxu0 0.0
    %3029 = vmatpush2.msra.mxu0 0.0
    %3030 = vmatprep.subr.mxu0 0.0
    %3031 = vmatpush2.msra.mxu0 0.0
    %3032 = vmatprep.subr.mxu0 0.0
    %3033 = vmatpush2.msra.mxu0 0.0
    %3034 = vmatprep.subr.mxu0 0.0
    %3035 = vmatpush2.msra.mxu0 0.0
    %3036 = vmatprep.mubr.f32.mxu0 0.0
    %v3037 = vand.u32 %v1944, 4294901760
    %3038 = vmatmul.mubr.f32.gmra.mxu0 %v3037
    %v3039 = vpop.f32.mrf.mxu0
    %v3040 = vadd.f32 %v2801, %v3039
    %v3041 = vpop.f32.mrf.mxu0
    %3042 = vmatprep.mubr.f32.mxu0 0.0
    %v3043 = vand.u32 %v1945, 4294901760
    %3044 = vmatmul.mubr.f32.gmra.mxu0 %v3043
    %v3045 = vpop.f32.mrf.mxu0
    %v3046 = vadd.f32 %v2809, %v3045
    %v3047 = vpop.f32.mrf.mxu0
    %3048 = vmatprep.mubr.f32.mxu0 0.0
    %v3049 = vand.u32 %v1946, 4294901760
    %3050 = vmatmul.mubr.f32.gmra.mxu0 %v3049
    %v3051 = vpop.f32.mrf.mxu0
    %v3052 = vadd.f32 %v2817, %v3051
    %v3053 = vpop.f32.mrf.mxu0
    %3054 = vmatprep.mubr.f32.mxu0 0.0
    %v3055 = vand.u32 %v1947, 4294901760
    %3056 = vmatmul.mubr.f32.gmra.mxu0 %v3055
    %v3057 = vpop.f32.mrf.mxu0
    %v3058 = vadd.f32 %v2825, %v3057
    %v3059 = vpop.f32.mrf.mxu0
    %3060 = vmatprep.mubr.f32.mxu0 0.0
    %v3061 = vand.u32 %v1948, 4294901760
    %3062 = vmatmul.mubr.f32.gmra.mxu0 %v3061
    %v3063 = vpop.f32.mrf.mxu0
    %v3064 = vadd.f32 %v2833, %v3063
    %v3065 = vpop.f32.mrf.mxu0
    %3066 = vmatprep.mubr.f32.mxu0 0.0
    %v3067 = vand.u32 %v1949, 4294901760
    %3068 = vmatmul.mubr.f32.gmra.mxu0 %v3067
    %v3069 = vpop.f32.mrf.mxu0
    %v3070 = vadd.f32 %v2841, %v3069
    %v3071 = vpop.f32.mrf.mxu0
    %3072 = vmatprep.mubr.f32.mxu0 0.0
    %v3073 = vand.u32 %v1950, 4294901760
    %3074 = vmatmul.mubr.f32.gmra.mxu0 %v3073
    %v3075 = vpop.f32.mrf.mxu0
    %v3076 = vadd.f32 %v2849, %v3075
    %v3077 = vpop.f32.mrf.mxu0
    %3078 = vmatprep.mubr.f32.mxu0 0.0
    %v3079 = vand.u32 %v1951, 4294901760
    %3080 = vmatmul.mubr.f32.gmra.mxu0 %v3079
    %v3081 = vpop.f32.mrf.mxu0
    %v3082 = vadd.f32 %v2857, %v3081
    %v3083 = vpop.f32.mrf.mxu0
    %3084 = vmatprep.mubr.f32.mxu0 0.0
    %v3085 = vand.u32 %v1952, 4294901760
    %3086 = vmatmul.mubr.f32.gmra.mxu0 %v3085
    %v3087 = vpop.f32.mrf.mxu0
    %v3088 = vadd.f32 %v2865, %v3087
    %v3089 = vpop.f32.mrf.mxu0
    %3090 = vmatprep.mubr.f32.mxu0 0.0
    %v3091 = vand.u32 %v1953, 4294901760
    %3092 = vmatmul.mubr.f32.gmra.mxu0 %v3091
    %v3093 = vpop.f32.mrf.mxu0
    %v3094 = vadd.f32 %v2873, %v3093
    %v3095 = vpop.f32.mrf.mxu0
    %3096 = vmatprep.mubr.f32.mxu0 0.0
    %v3097 = vand.u32 %v1954, 4294901760
    %3098 = vmatmul.mubr.f32.gmra.mxu0 %v3097
    %v3099 = vpop.f32.mrf.mxu0
    %v3100 = vadd.f32 %v2881, %v3099
    %v3101 = vpop.f32.mrf.mxu0
    %3102 = vmatprep.mubr.f32.mxu0 0.0
    %v3103 = vand.u32 %v1955, 4294901760
    %3104 = vmatmul.mubr.f32.gmra.mxu0 %v3103
    %v3105 = vpop.f32.mrf.mxu0
    %v3106 = vadd.f32 %v2889, %v3105
    %v3107 = vpop.f32.mrf.mxu0
    %3108 = vmatprep.mubr.f32.mxu0 0.0
    %v3109 = vand.u32 %v1956, 4294901760
    %3110 = vmatmul.mubr.f32.gmra.mxu0 %v3109
    %v3111 = vpop.f32.mrf.mxu0
    %v3112 = vadd.f32 %v2897, %v3111
    %v3113 = vpop.f32.mrf.mxu0
    %3114 = vmatprep.mubr.f32.mxu0 0.0
    %v3115 = vand.u32 %v1957, 4294901760
    %3116 = vmatmul.mubr.f32.gmra.mxu0 %v3115
    %v3117 = vpop.f32.mrf.mxu0
    %v3118 = vadd.f32 %v2905, %v3117
    %v3119 = vpop.f32.mrf.mxu0
    %3120 = vmatprep.mubr.f32.mxu0 0.0
    %v3121 = vand.u32 %v1958, 4294901760
    %3122 = vmatmul.mubr.f32.gmra.mxu0 %v3121
    %v3123 = vpop.f32.mrf.mxu0
    %v3124 = vadd.f32 %v2913, %v3123
    %v3125 = vpop.f32.mrf.mxu0
    %3126 = vmatprep.mubr.f32.mxu0 0.0
    %v3127 = vand.u32 %v1959, 4294901760
    %3128 = vmatmul.mubr.f32.gmra.mxu0 %v3127
    %v3129 = vpop.f32.mrf.mxu0
    %v3130 = vadd.f32 %v2921, %v3129
    %v3131 = vpop.f32.mrf.mxu0
    %3132 = vdwg.mxu0
    %3133 = vmatprep.subr.mxu0 0.0
    %v3134 = vand.u32 %v1943, 4294901760
    %3135 = vmatpush1.msra.mxu0 %v3134
    %3136 = vmatprep.subr.mxu0 0.0
    %v3137 = vand.u32 %v1942, 4294901760
    %3138 = vmatpush1.msra.mxu0 %v3137
    %3139 = vmatprep.subr.mxu0 0.0
    %v3140 = vand.u32 %v1941, 4294901760
    %3141 = vmatpush1.msra.mxu0 %v3140
    %3142 = vmatprep.subr.mxu0 0.0
    %v3143 = vand.u32 %v1940, 4294901760
    %3144 = vmatpush1.msra.mxu0 %v3143
    %3145 = vmatprep.subr.mxu0 0.0
    %v3146 = vand.u32 %v1939, 4294901760
    %3147 = vmatpush1.msra.mxu0 %v3146
    %3148 = vmatprep.subr.mxu0 0.0
    %v3149 = vand.u32 %v1938, 4294901760
    %3150 = vmatpush1.msra.mxu0 %v3149
    %3151 = vmatprep.subr.mxu0 0.0
    %v3152 = vand.u32 %v1937, 4294901760
    %3153 = vmatpush1.msra.mxu0 %v3152
    %3154 = vmatprep.subr.mxu0 0.0
    %v3155 = vand.u32 %v1936, 4294901760
    %3156 = vmatpush1.msra.mxu0 %v3155
    %3157 = vmatprep.subr.mxu0 0.0
    %v3158 = vand.u32 %v1935, 4294901760
    %3159 = vmatpush1.msra.mxu0 %v3158
    %3160 = vmatprep.subr.mxu0 0.0
    %v3161 = vand.u32 %v1934, 4294901760
    %3162 = vmatpush1.msra.mxu0 %v3161
    %3163 = vmatprep.subr.mxu0 0.0
    %v3164 = vand.u32 %v1933, 4294901760
    %3165 = vmatpush1.msra.mxu0 %v3164
    %3166 = vmatprep.subr.mxu0 0.0
    %v3167 = vand.u32 %v1932, 4294901760
    %3168 = vmatpush1.msra.mxu0 %v3167
    %3169 = vmatprep.subr.mxu0 0.0
    %v3170 = vand.u32 %v1931, 4294901760
    %3171 = vmatpush1.msra.mxu0 %v3170
    %3172 = vmatprep.subr.mxu0 0.0
    %v3173 = vand.u32 %v1930, 4294901760
    %3174 = vmatpush1.msra.mxu0 %v3173
    %3175 = vmatprep.subr.mxu0 0.0
    %v3176 = vand.u32 %v1929, 4294901760
    %3177 = vmatpush1.msra.mxu0 %v3176
    %3178 = vmatprep.subr.mxu0 0.0
    %v3179 = vand.u32 %v1928, 4294901760
    %3180 = vmatpush1.msra.mxu0 %v3179
    %3181 = vmatprep.subr.mxu0 0.0
    %3182 = vmatpush2.msra.mxu0 0.0
    %3183 = vmatprep.subr.mxu0 0.0
    %3184 = vmatpush2.msra.mxu0 0.0
    %3185 = vmatprep.subr.mxu0 0.0
    %3186 = vmatpush2.msra.mxu0 0.0
    %3187 = vmatprep.subr.mxu0 0.0
    %3188 = vmatpush2.msra.mxu0 0.0
    %3189 = vmatprep.subr.mxu0 0.0
    %3190 = vmatpush2.msra.mxu0 0.0
    %3191 = vmatprep.subr.mxu0 0.0
    %3192 = vmatpush2.msra.mxu0 0.0
    %3193 = vmatprep.subr.mxu0 0.0
    %3194 = vmatpush2.msra.mxu0 0.0
    %3195 = vmatprep.subr.mxu0 0.0
    %3196 = vmatpush2.msra.mxu0 0.0
    %3197 = vmatprep.subr.mxu0 0.0
    %3198 = vmatpush2.msra.mxu0 0.0
    %3199 = vmatprep.subr.mxu0 0.0
    %3200 = vmatpush2.msra.mxu0 0.0
    %3201 = vmatprep.subr.mxu0 0.0
    %3202 = vmatpush2.msra.mxu0 0.0
    %3203 = vmatprep.subr.mxu0 0.0
    %3204 = vmatpush2.msra.mxu0 0.0
    %3205 = vmatprep.subr.mxu0 0.0
    %3206 = vmatpush2.msra.mxu0 0.0
    %3207 = vmatprep.subr.mxu0 0.0
    %3208 = vmatpush2.msra.mxu0 0.0
    %3209 = vmatprep.subr.mxu0 0.0
    %3210 = vmatpush2.msra.mxu0 0.0
    %3211 = vmatprep.subr.mxu0 0.0
    %3212 = vmatpush2.msra.mxu0 0.0
    %3213 = vmatprep.mubr.f32.mxu0 0.0
    %v3214 = vand.u32 %v1944, 4294901760
    %3215 = vmatmul.mubr.f32.gmra.mxu0 %v3214
    %v3216 = vpop.f32.mrf.mxu0
    %v3217 = vadd.f32 %v3040, %v3216
    %v3218 = vpop.f32.mrf.mxu0
    %3219 = vmatprep.mubr.f32.mxu0 0.0
    %v3220 = vand.u32 %v1945, 4294901760
    %3221 = vmatmul.mubr.f32.gmra.mxu0 %v3220
    %v3222 = vpop.f32.mrf.mxu0
    %v3223 = vadd.f32 %v3046, %v3222
    %v3224 = vpop.f32.mrf.mxu0
    %3225 = vmatprep.mubr.f32.mxu0 0.0
    %v3226 = vand.u32 %v1946, 4294901760
    %3227 = vmatmul.mubr.f32.gmra.mxu0 %v3226
    %v3228 = vpop.f32.mrf.mxu0
    %v3229 = vadd.f32 %v3052, %v3228
    %v3230 = vpop.f32.mrf.mxu0
    %3231 = vmatprep.mubr.f32.mxu0 0.0
    %v3232 = vand.u32 %v1947, 4294901760
    %3233 = vmatmul.mubr.f32.gmra.mxu0 %v3232
    %v3234 = vpop.f32.mrf.mxu0
    %v3235 = vadd.f32 %v3058, %v3234
    %v3236 = vpop.f32.mrf.mxu0
    %3237 = vmatprep.mubr.f32.mxu0 0.0
    %v3238 = vand.u32 %v1948, 4294901760
    %3239 = vmatmul.mubr.f32.gmra.mxu0 %v3238
    %v3240 = vpop.f32.mrf.mxu0
    %v3241 = vadd.f32 %v3064, %v3240
    %v3242 = vpop.f32.mrf.mxu0
    %3243 = vmatprep.mubr.f32.mxu0 0.0
    %v3244 = vand.u32 %v1949, 4294901760
    %3245 = vmatmul.mubr.f32.gmra.mxu0 %v3244
    %v3246 = vpop.f32.mrf.mxu0
    %v3247 = vadd.f32 %v3070, %v3246
    %v3248 = vpop.f32.mrf.mxu0
    %3249 = vmatprep.mubr.f32.mxu0 0.0
    %v3250 = vand.u32 %v1950, 4294901760
    %3251 = vmatmul.mubr.f32.gmra.mxu0 %v3250
    %v3252 = vpop.f32.mrf.mxu0
    %v3253 = vadd.f32 %v3076, %v3252
    %v3254 = vpop.f32.mrf.mxu0
    %3255 = vmatprep.mubr.f32.mxu0 0.0
    %v3256 = vand.u32 %v1951, 4294901760
    %3257 = vmatmul.mubr.f32.gmra.mxu0 %v3256
    %v3258 = vpop.f32.mrf.mxu0
    %v3259 = vadd.f32 %v3082, %v3258
    %v3260 = vpop.f32.mrf.mxu0
    %3261 = vmatprep.mubr.f32.mxu0 0.0
    %v3262 = vand.u32 %v1952, 4294901760
    %3263 = vmatmul.mubr.f32.gmra.mxu0 %v3262
    %v3264 = vpop.f32.mrf.mxu0
    %v3265 = vadd.f32 %v3088, %v3264
    %v3266 = vpop.f32.mrf.mxu0
    %3267 = vmatprep.mubr.f32.mxu0 0.0
    %v3268 = vand.u32 %v1953, 4294901760
    %3269 = vmatmul.mubr.f32.gmra.mxu0 %v3268
    %v3270 = vpop.f32.mrf.mxu0
    %v3271 = vadd.f32 %v3094, %v3270
    %v3272 = vpop.f32.mrf.mxu0
    %3273 = vmatprep.mubr.f32.mxu0 0.0
    %v3274 = vand.u32 %v1954, 4294901760
    %3275 = vmatmul.mubr.f32.gmra.mxu0 %v3274
    %v3276 = vpop.f32.mrf.mxu0
    %v3277 = vadd.f32 %v3100, %v3276
    %v3278 = vpop.f32.mrf.mxu0
    %3279 = vmatprep.mubr.f32.mxu0 0.0
    %v3280 = vand.u32 %v1955, 4294901760
    %3281 = vmatmul.mubr.f32.gmra.mxu0 %v3280
    %v3282 = vpop.f32.mrf.mxu0
    %v3283 = vadd.f32 %v3106, %v3282
    %v3284 = vpop.f32.mrf.mxu0
    %3285 = vmatprep.mubr.f32.mxu0 0.0
    %v3286 = vand.u32 %v1956, 4294901760
    %3287 = vmatmul.mubr.f32.gmra.mxu0 %v3286
    %v3288 = vpop.f32.mrf.mxu0
    %v3289 = vadd.f32 %v3112, %v3288
    %v3290 = vpop.f32.mrf.mxu0
    %3291 = vmatprep.mubr.f32.mxu0 0.0
    %v3292 = vand.u32 %v1957, 4294901760
    %3293 = vmatmul.mubr.f32.gmra.mxu0 %v3292
    %v3294 = vpop.f32.mrf.mxu0
    %v3295 = vadd.f32 %v3118, %v3294
    %v3296 = vpop.f32.mrf.mxu0
    %3297 = vmatprep.mubr.f32.mxu0 0.0
    %v3298 = vand.u32 %v1958, 4294901760
    %3299 = vmatmul.mubr.f32.gmra.mxu0 %v3298
    %v3300 = vpop.f32.mrf.mxu0
    %v3301 = vadd.f32 %v3124, %v3300
    %v3302 = vpop.f32.mrf.mxu0
    %3303 = vmatprep.mubr.f32.mxu0 0.0
    %v3304 = vand.u32 %v1959, 4294901760
    %3305 = vmatmul.mubr.f32.gmra.mxu0 %v3304
    %v3306 = vpop.f32.mrf.mxu0
    %v3307 = vadd.f32 %v3130, %v3306
    %v3308 = vpop.f32.mrf.mxu0
    %3309 = vdwg.mxu0
    %v3310 = vtanh.pop %v3217
    %v3311 = vtanh.pop %v3223
    %v3312 = vtanh.pop %v3229
    %v3313 = vtanh.pop %v3235
    %v3314 = vtanh.pop %v3241
    %v3315 = vtanh.pop %v3247
    %v3316 = vtanh.pop %v3253
    %v3317 = vtanh.pop %v3259
    %v3318 = vtanh.pop %v3265
    %v3319 = vtanh.pop %v3271
    %v3320 = vtanh.pop %v3277
    %v3321 = vtanh.pop %v3283
    %v3322 = vtanh.pop %v3289
    %v3323 = vtanh.pop %v3295
    %v3324 = vtanh.pop %v3301
    %v3325 = vtanh.pop %v3307
    %v3326 = vld [vmem:[%s5] sm:$0x3f]
    %3328 = vset.pattern.permute.xlu0 3
    %3329 = vperm.xlu0 %3328, %v43
    %v3330 = vpop.permute.xlu0 %3329
    %3332 = vmatprep.subr.mxu0 0.0
    %v3333 = vand.u32 %v3325, 4294901760
    %3334 = vmatpush1.msra.mxu0 %v3333
    %3335 = vmatprep.subr.mxu0 0.0
    %v3336 = vand.u32 %v3324, 4294901760
    %3337 = vmatpush1.msra.mxu0 %v3336
    %3338 = vmatprep.subr.mxu0 0.0
    %v3339 = vand.u32 %v3323, 4294901760
    %3340 = vmatpush1.msra.mxu0 %v3339
    %3341 = vmatprep.subr.mxu0 0.0
    %v3342 = vand.u32 %v3322, 4294901760
    %3343 = vmatpush1.msra.mxu0 %v3342
    %3344 = vmatprep.subr.mxu0 0.0
    %v3345 = vand.u32 %v3321, 4294901760
    %3346 = vmatpush1.msra.mxu0 %v3345
    %3347 = vmatprep.subr.mxu0 0.0
    %v3348 = vand.u32 %v3320, 4294901760
    %3349 = vmatpush1.msra.mxu0 %v3348
    %3350 = vmatprep.subr.mxu0 0.0
    %v3351 = vand.u32 %v3319, 4294901760
    %3352 = vmatpush1.msra.mxu0 %v3351
    %3353 = vmatprep.subr.mxu0 0.0
    %v3354 = vand.u32 %v3318, 4294901760
    %3355 = vmatpush1.msra.mxu0 %v3354
    %3356 = vmatprep.subr.mxu0 0.0
    %v3357 = vand.u32 %v3317, 4294901760
    %3358 = vmatpush1.msra.mxu0 %v3357
    %3359 = vmatprep.subr.mxu0 0.0
    %v3360 = vand.u32 %v3316, 4294901760
    %3361 = vmatpush1.msra.mxu0 %v3360
    %3362 = vmatprep.subr.mxu0 0.0
    %v3363 = vand.u32 %v3315, 4294901760
    %3364 = vmatpush1.msra.mxu0 %v3363
    %3365 = vmatprep.subr.mxu0 0.0
    %v3366 = vand.u32 %v3314, 4294901760
    %3367 = vmatpush1.msra.mxu0 %v3366
    %3368 = vmatprep.subr.mxu0 0.0
    %v3369 = vand.u32 %v3313, 4294901760
    %3370 = vmatpush1.msra.mxu0 %v3369
    %3371 = vmatprep.subr.mxu0 0.0
    %v3372 = vand.u32 %v3312, 4294901760
    %3373 = vmatpush1.msra.mxu0 %v3372
    %3374 = vmatprep.subr.mxu0 0.0
    %v3375 = vand.u32 %v3311, 4294901760
    %3376 = vmatpush1.msra.mxu0 %v3375
    %3377 = vmatprep.subr.mxu0 0.0
    %v3378 = vand.u32 %v3310, 4294901760
    %3379 = vmatpush1.msra.mxu0 %v3378
    %3380 = vmatprep.subr.mxu0 0.0
    %3381 = vmatpush2.msra.mxu0 0.0
    %3382 = vmatprep.subr.mxu0 0.0
    %3383 = vmatpush2.msra.mxu0 0.0
    %3384 = vmatprep.subr.mxu0 0.0
    %3385 = vmatpush2.msra.mxu0 0.0
    %3386 = vmatprep.subr.mxu0 0.0
    %3387 = vmatpush2.msra.mxu0 0.0
    %3388 = vmatprep.subr.mxu0 0.0
    %3389 = vmatpush2.msra.mxu0 0.0
    %3390 = vmatprep.subr.mxu0 0.0
    %3391 = vmatpush2.msra.mxu0 0.0
    %3392 = vmatprep.subr.mxu0 0.0
    %3393 = vmatpush2.msra.mxu0 0.0
    %3394 = vmatprep.subr.mxu0 0.0
    %3395 = vmatpush2.msra.mxu0 0.0
    %3396 = vmatprep.subr.mxu0 0.0
    %3397 = vmatpush2.msra.mxu0 0.0
    %3398 = vmatprep.subr.mxu0 0.0
    %3399 = vmatpush2.msra.mxu0 0.0
    %3400 = vmatprep.subr.mxu0 0.0
    %3401 = vmatpush2.msra.mxu0 0.0
    %3402 = vmatprep.subr.mxu0 0.0
    %3403 = vmatpush2.msra.mxu0 0.0
    %3404 = vmatprep.subr.mxu0 0.0
    %3405 = vmatpush2.msra.mxu0 0.0
    %3406 = vmatprep.subr.mxu0 0.0
    %3407 = vmatpush2.msra.mxu0 0.0
    %3408 = vmatprep.subr.mxu0 0.0
    %3409 = vmatpush2.msra.mxu0 0.0
    %3410 = vmatprep.subr.mxu0 0.0
    %3411 = vmatpush2.msra.mxu0 0.0
    %3412 = vmatprep.mubr.f32.mxu0 0.0
    %v3413 = vand.u32 %v3326, 4294901760
    %v3414 = vsub.f32 %v3326, %v3413
    %v3415 = vand.u32 %v3414, 4294901760
    %v3416 = vsub.f32 %v3414, %v3415
    %v3417 = vand.u32 %v3416, 4294901760
    %3418 = vmatmul.mubr.f32.gmra.mxu0 %v3417
    %v3419 = vpop.f32.mrf.mxu0
    %v3420 = vadd.f32 %v3330, %v3419
    %v3421 = vpop.f32.mrf.mxu0
    %3422 = vdwg.mxu0
    %3423 = vmatprep.subr.mxu0 0.0
    %v3424 = vand.u32 %v3325, 4294901760
    %v3425 = vsub.f32 %v3325, %v3424
    %v3426 = vand.u32 %v3425, 4294901760
    %v3427 = vsub.f32 %v3425, %v3426
    %v3428 = vand.u32 %v3427, 4294901760
    %3429 = vmatpush1.msra.mxu0 %v3428
    %3430 = vmatprep.subr.mxu0 0.0
    %v3431 = vand.u32 %v3324, 4294901760
    %v3432 = vsub.f32 %v3324, %v3431
    %v3433 = vand.u32 %v3432, 4294901760
    %v3434 = vsub.f32 %v3432, %v3433
    %v3435 = vand.u32 %v3434, 4294901760
    %3436 = vmatpush1.msra.mxu0 %v3435
    %3437 = vmatprep.subr.mxu0 0.0
    %v3438 = vand.u32 %v3323, 4294901760
    %v3439 = vsub.f32 %v3323, %v3438
    %v3440 = vand.u32 %v3439, 4294901760
    %v3441 = vsub.f32 %v3439, %v3440
    %v3442 = vand.u32 %v3441, 4294901760
    %3443 = vmatpush1.msra.mxu0 %v3442
    %3444 = vmatprep.subr.mxu0 0.0
    %v3445 = vand.u32 %v3322, 4294901760
    %v3446 = vsub.f32 %v3322, %v3445
    %v3447 = vand.u32 %v3446, 4294901760
    %v3448 = vsub.f32 %v3446, %v3447
    %v3449 = vand.u32 %v3448, 4294901760
    %3450 = vmatpush1.msra.mxu0 %v3449
    %3451 = vmatprep.subr.mxu0 0.0
    %v3452 = vand.u32 %v3321, 4294901760
    %v3453 = vsub.f32 %v3321, %v3452
    %v3454 = vand.u32 %v3453, 4294901760
    %v3455 = vsub.f32 %v3453, %v3454
    %v3456 = vand.u32 %v3455, 4294901760
    %3457 = vmatpush1.msra.mxu0 %v3456
    %3458 = vmatprep.subr.mxu0 0.0
    %v3459 = vand.u32 %v3320, 4294901760
    %v3460 = vsub.f32 %v3320, %v3459
    %v3461 = vand.u32 %v3460, 4294901760
    %v3462 = vsub.f32 %v3460, %v3461
    %v3463 = vand.u32 %v3462, 4294901760
    %3464 = vmatpush1.msra.mxu0 %v3463
    %3465 = vmatprep.subr.mxu0 0.0
    %v3466 = vand.u32 %v3319, 4294901760
    %v3467 = vsub.f32 %v3319, %v3466
    %v3468 = vand.u32 %v3467, 4294901760
    %v3469 = vsub.f32 %v3467, %v3468
    %v3470 = vand.u32 %v3469, 4294901760
    %3471 = vmatpush1.msra.mxu0 %v3470
    %3472 = vmatprep.subr.mxu0 0.0
    %v3473 = vand.u32 %v3318, 4294901760
    %v3474 = vsub.f32 %v3318, %v3473
    %v3475 = vand.u32 %v3474, 4294901760
    %v3476 = vsub.f32 %v3474, %v3475
    %v3477 = vand.u32 %v3476, 4294901760
    %3478 = vmatpush1.msra.mxu0 %v3477
    %3479 = vmatprep.subr.mxu0 0.0
    %v3480 = vand.u32 %v3317, 4294901760
    %v3481 = vsub.f32 %v3317, %v3480
    %v3482 = vand.u32 %v3481, 4294901760
    %v3483 = vsub.f32 %v3481, %v3482
    %v3484 = vand.u32 %v3483, 4294901760
    %3485 = vmatpush1.msra.mxu0 %v3484
    %3486 = vmatprep.subr.mxu0 0.0
    %v3487 = vand.u32 %v3316, 4294901760
    %v3488 = vsub.f32 %v3316, %v3487
    %v3489 = vand.u32 %v3488, 4294901760
    %v3490 = vsub.f32 %v3488, %v3489
    %v3491 = vand.u32 %v3490, 4294901760
    %3492 = vmatpush1.msra.mxu0 %v3491
    %3493 = vmatprep.subr.mxu0 0.0
    %v3494 = vand.u32 %v3315, 4294901760
    %v3495 = vsub.f32 %v3315, %v3494
    %v3496 = vand.u32 %v3495, 4294901760
    %v3497 = vsub.f32 %v3495, %v3496
    %v3498 = vand.u32 %v3497, 4294901760
    %3499 = vmatpush1.msra.mxu0 %v3498
    %3500 = vmatprep.subr.mxu0 0.0
    %v3501 = vand.u32 %v3314, 4294901760
    %v3502 = vsub.f32 %v3314, %v3501
    %v3503 = vand.u32 %v3502, 4294901760
    %v3504 = vsub.f32 %v3502, %v3503
    %v3505 = vand.u32 %v3504, 4294901760
    %3506 = vmatpush1.msra.mxu0 %v3505
    %3507 = vmatprep.subr.mxu0 0.0
    %v3508 = vand.u32 %v3313, 4294901760
    %v3509 = vsub.f32 %v3313, %v3508
    %v3510 = vand.u32 %v3509, 4294901760
    %v3511 = vsub.f32 %v3509, %v3510
    %v3512 = vand.u32 %v3511, 4294901760
    %3513 = vmatpush1.msra.mxu0 %v3512
    %3514 = vmatprep.subr.mxu0 0.0
    %v3515 = vand.u32 %v3312, 4294901760
    %v3516 = vsub.f32 %v3312, %v3515
    %v3517 = vand.u32 %v3516, 4294901760
    %v3518 = vsub.f32 %v3516, %v3517
    %v3519 = vand.u32 %v3518, 4294901760
    %3520 = vmatpush1.msra.mxu0 %v3519
    %3521 = vmatprep.subr.mxu0 0.0
    %v3522 = vand.u32 %v3311, 4294901760
    %v3523 = vsub.f32 %v3311, %v3522
    %v3524 = vand.u32 %v3523, 4294901760
    %v3525 = vsub.f32 %v3523, %v3524
    %v3526 = vand.u32 %v3525, 4294901760
    %3527 = vmatpush1.msra.mxu0 %v3526
    %3528 = vmatprep.subr.mxu0 0.0
    %v3529 = vand.u32 %v3310, 4294901760
    %v3530 = vsub.f32 %v3310, %v3529
    %v3531 = vand.u32 %v3530, 4294901760
    %v3532 = vsub.f32 %v3530, %v3531
    %v3533 = vand.u32 %v3532, 4294901760
    %3534 = vmatpush1.msra.mxu0 %v3533
    %3535 = vmatprep.subr.mxu0 0.0
    %3536 = vmatpush2.msra.mxu0 0.0
    %3537 = vmatprep.subr.mxu0 0.0
    %3538 = vmatpush2.msra.mxu0 0.0
    %3539 = vmatprep.subr.mxu0 0.0
    %3540 = vmatpush2.msra.mxu0 0.0
    %3541 = vmatprep.subr.mxu0 0.0
    %3542 = vmatpush2.msra.mxu0 0.0
    %3543 = vmatprep.subr.mxu0 0.0
    %3544 = vmatpush2.msra.mxu0 0.0
    %3545 = vmatprep.subr.mxu0 0.0
    %3546 = vmatpush2.msra.mxu0 0.0
    %3547 = vmatprep.subr.mxu0 0.0
    %3548 = vmatpush2.msra.mxu0 0.0
    %3549 = vmatprep.subr.mxu0 0.0
    %3550 = vmatpush2.msra.mxu0 0.0
    %3551 = vmatprep.subr.mxu0 0.0
    %3552 = vmatpush2.msra.mxu0 0.0
    %3553 = vmatprep.subr.mxu0 0.0
    %3554 = vmatpush2.msra.mxu0 0.0
    %3555 = vmatprep.subr.mxu0 0.0
    %3556 = vmatpush2.msra.mxu0 0.0
    %3557 = vmatprep.subr.mxu0 0.0
    %3558 = vmatpush2.msra.mxu0 0.0
    %3559 = vmatprep.subr.mxu0 0.0
    %3560 = vmatpush2.msra.mxu0 0.0
    %3561 = vmatprep.subr.mxu0 0.0
    %3562 = vmatpush2.msra.mxu0 0.0
    %3563 = vmatprep.subr.mxu0 0.0
    %3564 = vmatpush2.msra.mxu0 0.0
    %3565 = vmatprep.subr.mxu0 0.0
    %3566 = vmatpush2.msra.mxu0 0.0
    %3567 = vmatprep.mubr.f32.mxu0 0.0
    %v3568 = vand.u32 %v3326, 4294901760
    %3569 = vmatmul.mubr.f32.gmra.mxu0 %v3568
    %v3570 = vpop.f32.mrf.mxu0
    %v3571 = vadd.f32 %v3420, %v3570
    %v3572 = vpop.f32.mrf.mxu0
    %3573 = vdwg.mxu0
    %3574 = vmatprep.subr.mxu0 0.0
    %v3575 = vand.u32 %v3325, 4294901760
    %v3576 = vsub.f32 %v3325, %v3575
    %3577 = vmatpush1.msra.mxu0 %v3576
    %3578 = vmatprep.subr.mxu0 0.0
    %v3579 = vand.u32 %v3324, 4294901760
    %v3580 = vsub.f32 %v3324, %v3579
    %3581 = vmatpush1.msra.mxu0 %v3580
    %3582 = vmatprep.subr.mxu0 0.0
    %v3583 = vand.u32 %v3323, 4294901760
    %v3584 = vsub.f32 %v3323, %v3583
    %3585 = vmatpush1.msra.mxu0 %v3584
    %3586 = vmatprep.subr.mxu0 0.0
    %v3587 = vand.u32 %v3322, 4294901760
    %v3588 = vsub.f32 %v3322, %v3587
    %3589 = vmatpush1.msra.mxu0 %v3588
    %3590 = vmatprep.subr.mxu0 0.0
    %v3591 = vand.u32 %v3321, 4294901760
    %v3592 = vsub.f32 %v3321, %v3591
    %3593 = vmatpush1.msra.mxu0 %v3592
    %3594 = vmatprep.subr.mxu0 0.0
    %v3595 = vand.u32 %v3320, 4294901760
    %v3596 = vsub.f32 %v3320, %v3595
    %3597 = vmatpush1.msra.mxu0 %v3596
    %3598 = vmatprep.subr.mxu0 0.0
    %v3599 = vand.u32 %v3319, 4294901760
    %v3600 = vsub.f32 %v3319, %v3599
    %3601 = vmatpush1.msra.mxu0 %v3600
    %3602 = vmatprep.subr.mxu0 0.0
    %v3603 = vand.u32 %v3318, 4294901760
    %v3604 = vsub.f32 %v3318, %v3603
    %3605 = vmatpush1.msra.mxu0 %v3604
    %3606 = vmatprep.subr.mxu0 0.0
    %v3607 = vand.u32 %v3317, 4294901760
    %v3608 = vsub.f32 %v3317, %v3607
    %3609 = vmatpush1.msra.mxu0 %v3608
    %3610 = vmatprep.subr.mxu0 0.0
    %v3611 = vand.u32 %v3316, 4294901760
    %v3612 = vsub.f32 %v3316, %v3611
    %3613 = vmatpush1.msra.mxu0 %v3612
    %3614 = vmatprep.subr.mxu0 0.0
    %v3615 = vand.u32 %v3315, 4294901760
    %v3616 = vsub.f32 %v3315, %v3615
    %3617 = vmatpush1.msra.mxu0 %v3616
    %3618 = vmatprep.subr.mxu0 0.0
    %v3619 = vand.u32 %v3314, 4294901760
    %v3620 = vsub.f32 %v3314, %v3619
    %3621 = vmatpush1.msra.mxu0 %v3620
    %3622 = vmatprep.subr.mxu0 0.0
    %v3623 = vand.u32 %v3313, 4294901760
    %v3624 = vsub.f32 %v3313, %v3623
    %3625 = vmatpush1.msra.mxu0 %v3624
    %3626 = vmatprep.subr.mxu0 0.0
    %v3627 = vand.u32 %v3312, 4294901760
    %v3628 = vsub.f32 %v3312, %v3627
    %3629 = vmatpush1.msra.mxu0 %v3628
    %3630 = vmatprep.subr.mxu0 0.0
    %v3631 = vand.u32 %v3311, 4294901760
    %v3632 = vsub.f32 %v3311, %v3631
    %3633 = vmatpush1.msra.mxu0 %v3632
    %3634 = vmatprep.subr.mxu0 0.0
    %v3635 = vand.u32 %v3310, 4294901760
    %v3636 = vsub.f32 %v3310, %v3635
    %3637 = vmatpush1.msra.mxu0 %v3636
    %3638 = vmatprep.subr.mxu0 0.0
    %3639 = vmatpush2.msra.mxu0 0.0
    %3640 = vmatprep.subr.mxu0 0.0
    %3641 = vmatpush2.msra.mxu0 0.0
    %3642 = vmatprep.subr.mxu0 0.0
    %3643 = vmatpush2.msra.mxu0 0.0
    %3644 = vmatprep.subr.mxu0 0.0
    %3645 = vmatpush2.msra.mxu0 0.0
    %3646 = vmatprep.subr.mxu0 0.0
    %3647 = vmatpush2.msra.mxu0 0.0
    %3648 = vmatprep.subr.mxu0 0.0
    %3649 = vmatpush2.msra.mxu0 0.0
    %3650 = vmatprep.subr.mxu0 0.0
    %3651 = vmatpush2.msra.mxu0 0.0
    %3652 = vmatprep.subr.mxu0 0.0
    %3653 = vmatpush2.msra.mxu0 0.0
    %3654 = vmatprep.subr.mxu0 0.0
    %3655 = vmatpush2.msra.mxu0 0.0
    %3656 = vmatprep.subr.mxu0 0.0
    %3657 = vmatpush2.msra.mxu0 0.0
    %3658 = vmatprep.subr.mxu0 0.0
    %3659 = vmatpush2.msra.mxu0 0.0
    %3660 = vmatprep.subr.mxu0 0.0
    %3661 = vmatpush2.msra.mxu0 0.0
    %3662 = vmatprep.subr.mxu0 0.0
    %3663 = vmatpush2.msra.mxu0 0.0
    %3664 = vmatprep.subr.mxu0 0.0
    %3665 = vmatpush2.msra.mxu0 0.0
    %3666 = vmatprep.subr.mxu0 0.0
    %3667 = vmatpush2.msra.mxu0 0.0
    %3668 = vmatprep.subr.mxu0 0.0
    %3669 = vmatpush2.msra.mxu0 0.0
    %3670 = vmatprep.mubr.f32.mxu0 0.0
    %v3671 = vand.u32 %v3326, 4294901760
    %v3672 = vsub.f32 %v3326, %v3671
    %3673 = vmatmul.mubr.f32.gmra.mxu0 %v3672
    %v3674 = vpop.f32.mrf.mxu0
    %v3675 = vadd.f32 %v3571, %v3674
    %v3676 = vpop.f32.mrf.mxu0
    %3677 = vdwg.mxu0
    %3678 = vmatprep.subr.mxu0 0.0
    %v3679 = vand.u32 %v3325, 4294901760
    %3680 = vmatpush1.msra.mxu0 %v3679
    %3681 = vmatprep.subr.mxu0 0.0
    %v3682 = vand.u32 %v3324, 4294901760
    %3683 = vmatpush1.msra.mxu0 %v3682
    %3684 = vmatprep.subr.mxu0 0.0
    %v3685 = vand.u32 %v3323, 4294901760
    %3686 = vmatpush1.msra.mxu0 %v3685
    %3687 = vmatprep.subr.mxu0 0.0
    %v3688 = vand.u32 %v3322, 4294901760
    %3689 = vmatpush1.msra.mxu0 %v3688
    %3690 = vmatprep.subr.mxu0 0.0
    %v3691 = vand.u32 %v3321, 4294901760
    %3692 = vmatpush1.msra.mxu0 %v3691
    %3693 = vmatprep.subr.mxu0 0.0
    %v3694 = vand.u32 %v3320, 4294901760
    %3695 = vmatpush1.msra.mxu0 %v3694
    %3696 = vmatprep.subr.mxu0 0.0
    %v3697 = vand.u32 %v3319, 4294901760
    %3698 = vmatpush1.msra.mxu0 %v3697
    %3699 = vmatprep.subr.mxu0 0.0
    %v3700 = vand.u32 %v3318, 4294901760
    %3701 = vmatpush1.msra.mxu0 %v3700
    %3702 = vmatprep.subr.mxu0 0.0
    %v3703 = vand.u32 %v3317, 4294901760
    %3704 = vmatpush1.msra.mxu0 %v3703
    %3705 = vmatprep.subr.mxu0 0.0
    %v3706 = vand.u32 %v3316, 4294901760
    %3707 = vmatpush1.msra.mxu0 %v3706
    %3708 = vmatprep.subr.mxu0 0.0
    %v3709 = vand.u32 %v3315, 4294901760
    %3710 = vmatpush1.msra.mxu0 %v3709
    %3711 = vmatprep.subr.mxu0 0.0
    %v3712 = vand.u32 %v3314, 4294901760
    %3713 = vmatpush1.msra.mxu0 %v3712
    %3714 = vmatprep.subr.mxu0 0.0
    %v3715 = vand.u32 %v3313, 4294901760
    %3716 = vmatpush1.msra.mxu0 %v3715
    %3717 = vmatprep.subr.mxu0 0.0
    %v3718 = vand.u32 %v3312, 4294901760
    %3719 = vmatpush1.msra.mxu0 %v3718
    %3720 = vmatprep.subr.mxu0 0.0
    %v3721 = vand.u32 %v3311, 4294901760
    %3722 = vmatpush1.msra.mxu0 %v3721
    %3723 = vmatprep.subr.mxu0 0.0
    %v3724 = vand.u32 %v3310, 4294901760
    %3725 = vmatpush1.msra.mxu0 %v3724
    %3726 = vmatprep.subr.mxu0 0.0
    %3727 = vmatpush2.msra.mxu0 0.0
    %3728 = vmatprep.subr.mxu0 0.0
    %3729 = vmatpush2.msra.mxu0 0.0
    %3730 = vmatprep.subr.mxu0 0.0
    %3731 = vmatpush2.msra.mxu0 0.0
    %3732 = vmatprep.subr.mxu0 0.0
    %3733 = vmatpush2.msra.mxu0 0.0
    %3734 = vmatprep.subr.mxu0 0.0
    %3735 = vmatpush2.msra.mxu0 0.0
    %3736 = vmatprep.subr.mxu0 0.0
    %3737 = vmatpush2.msra.mxu0 0.0
    %3738 = vmatprep.subr.mxu0 0.0
    %3739 = vmatpush2.msra.mxu0 0.0
    %3740 = vmatprep.subr.mxu0 0.0
    %3741 = vmatpush2.msra.mxu0 0.0
    %3742 = vmatprep.subr.mxu0 0.0
    %3743 = vmatpush2.msra.mxu0 0.0
    %3744 = vmatprep.subr.mxu0 0.0
    %3745 = vmatpush2.msra.mxu0 0.0
    %3746 = vmatprep.subr.mxu0 0.0
    %3747 = vmatpush2.msra.mxu0 0.0
    %3748 = vmatprep.subr.mxu0 0.0
    %3749 = vmatpush2.msra.mxu0 0.0
    %3750 = vmatprep.subr.mxu0 0.0
    %3751 = vmatpush2.msra.mxu0 0.0
    %3752 = vmatprep.subr.mxu0 0.0
    %3753 = vmatpush2.msra.mxu0 0.0
    %3754 = vmatprep.subr.mxu0 0.0
    %3755 = vmatpush2.msra.mxu0 0.0
    %3756 = vmatprep.subr.mxu0 0.0
    %3757 = vmatpush2.msra.mxu0 0.0
    %3758 = vmatprep.mubr.f32.mxu0 0.0
    %v3759 = vand.u32 %v3326, 4294901760
    %v3760 = vsub.f32 %v3326, %v3759
    %v3761 = vand.u32 %v3760, 4294901760
    %3762 = vmatmul.mubr.f32.gmra.mxu0 %v3761
    %v3763 = vpop.f32.mrf.mxu0
    %v3764 = vadd.f32 %v3675, %v3763
    %v3765 = vpop.f32.mrf.mxu0
    %3766 = vdwg.mxu0
    %3767 = vmatprep.subr.mxu0 0.0
    %v3768 = vand.u32 %v3325, 4294901760
    %v3769 = vsub.f32 %v3325, %v3768
    %v3770 = vand.u32 %v3769, 4294901760
    %3771 = vmatpush1.msra.mxu0 %v3770
    %3772 = vmatprep.subr.mxu0 0.0
    %v3773 = vand.u32 %v3324, 4294901760
    %v3774 = vsub.f32 %v3324, %v3773
    %v3775 = vand.u32 %v3774, 4294901760
    %3776 = vmatpush1.msra.mxu0 %v3775
    %3777 = vmatprep.subr.mxu0 0.0
    %v3778 = vand.u32 %v3323, 4294901760
    %v3779 = vsub.f32 %v3323, %v3778
    %v3780 = vand.u32 %v3779, 4294901760
    %3781 = vmatpush1.msra.mxu0 %v3780
    %3782 = vmatprep.subr.mxu0 0.0
    %v3783 = vand.u32 %v3322, 4294901760
    %v3784 = vsub.f32 %v3322, %v3783
    %v3785 = vand.u32 %v3784, 4294901760
    %3786 = vmatpush1.msra.mxu0 %v3785
    %3787 = vmatprep.subr.mxu0 0.0
    %v3788 = vand.u32 %v3321, 4294901760
    %v3789 = vsub.f32 %v3321, %v3788
    %v3790 = vand.u32 %v3789, 4294901760
    %3791 = vmatpush1.msra.mxu0 %v3790
    %3792 = vmatprep.subr.mxu0 0.0
    %v3793 = vand.u32 %v3320, 4294901760
    %v3794 = vsub.f32 %v3320, %v3793
    %v3795 = vand.u32 %v3794, 4294901760
    %3796 = vmatpush1.msra.mxu0 %v3795
    %3797 = vmatprep.subr.mxu0 0.0
    %v3798 = vand.u32 %v3319, 4294901760
    %v3799 = vsub.f32 %v3319, %v3798
    %v3800 = vand.u32 %v3799, 4294901760
    %3801 = vmatpush1.msra.mxu0 %v3800
    %3802 = vmatprep.subr.mxu0 0.0
    %v3803 = vand.u32 %v3318, 4294901760
    %v3804 = vsub.f32 %v3318, %v3803
    %v3805 = vand.u32 %v3804, 4294901760
    %3806 = vmatpush1.msra.mxu0 %v3805
    %3807 = vmatprep.subr.mxu0 0.0
    %v3808 = vand.u32 %v3317, 4294901760
    %v3809 = vsub.f32 %v3317, %v3808
    %v3810 = vand.u32 %v3809, 4294901760
    %3811 = vmatpush1.msra.mxu0 %v3810
    %3812 = vmatprep.subr.mxu0 0.0
    %v3813 = vand.u32 %v3316, 4294901760
    %v3814 = vsub.f32 %v3316, %v3813
    %v3815 = vand.u32 %v3814, 4294901760
    %3816 = vmatpush1.msra.mxu0 %v3815
    %3817 = vmatprep.subr.mxu0 0.0
    %v3818 = vand.u32 %v3315, 4294901760
    %v3819 = vsub.f32 %v3315, %v3818
    %v3820 = vand.u32 %v3819, 4294901760
    %3821 = vmatpush1.msra.mxu0 %v3820
    %3822 = vmatprep.subr.mxu0 0.0
    %v3823 = vand.u32 %v3314, 4294901760
    %v3824 = vsub.f32 %v3314, %v3823
    %v3825 = vand.u32 %v3824, 4294901760
    %3826 = vmatpush1.msra.mxu0 %v3825
    %3827 = vmatprep.subr.mxu0 0.0
    %v3828 = vand.u32 %v3313, 4294901760
    %v3829 = vsub.f32 %v3313, %v3828
    %v3830 = vand.u32 %v3829, 4294901760
    %3831 = vmatpush1.msra.mxu0 %v3830
    %3832 = vmatprep.subr.mxu0 0.0
    %v3833 = vand.u32 %v3312, 4294901760
    %v3834 = vsub.f32 %v3312, %v3833
    %v3835 = vand.u32 %v3834, 4294901760
    %3836 = vmatpush1.msra.mxu0 %v3835
    %3837 = vmatprep.subr.mxu0 0.0
    %v3838 = vand.u32 %v3311, 4294901760
    %v3839 = vsub.f32 %v3311, %v3838
    %v3840 = vand.u32 %v3839, 4294901760
    %3841 = vmatpush1.msra.mxu0 %v3840
    %3842 = vmatprep.subr.mxu0 0.0
    %v3843 = vand.u32 %v3310, 4294901760
    %v3844 = vsub.f32 %v3310, %v3843
    %v3845 = vand.u32 %v3844, 4294901760
    %3846 = vmatpush1.msra.mxu0 %v3845
    %3847 = vmatprep.subr.mxu0 0.0
    %3848 = vmatpush2.msra.mxu0 0.0
    %3849 = vmatprep.subr.mxu0 0.0
    %3850 = vmatpush2.msra.mxu0 0.0
    %3851 = vmatprep.subr.mxu0 0.0
    %3852 = vmatpush2.msra.mxu0 0.0
    %3853 = vmatprep.subr.mxu0 0.0
    %3854 = vmatpush2.msra.mxu0 0.0
    %3855 = vmatprep.subr.mxu0 0.0
    %3856 = vmatpush2.msra.mxu0 0.0
    %3857 = vmatprep.subr.mxu0 0.0
    %3858 = vmatpush2.msra.mxu0 0.0
    %3859 = vmatprep.subr.mxu0 0.0
    %3860 = vmatpush2.msra.mxu0 0.0
    %3861 = vmatprep.subr.mxu0 0.0
    %3862 = vmatpush2.msra.mxu0 0.0
    %3863 = vmatprep.subr.mxu0 0.0
    %3864 = vmatpush2.msra.mxu0 0.0
    %3865 = vmatprep.subr.mxu0 0.0
    %3866 = vmatpush2.msra.mxu0 0.0
    %3867 = vmatprep.subr.mxu0 0.0
    %3868 = vmatpush2.msra.mxu0 0.0
    %3869 = vmatprep.subr.mxu0 0.0
    %3870 = vmatpush2.msra.mxu0 0.0
    %3871 = vmatprep.subr.mxu0 0.0
    %3872 = vmatpush2.msra.mxu0 0.0
    %3873 = vmatprep.subr.mxu0 0.0
    %3874 = vmatpush2.msra.mxu0 0.0
    %3875 = vmatprep.subr.mxu0 0.0
    %3876 = vmatpush2.msra.mxu0 0.0
    %3877 = vmatprep.subr.mxu0 0.0
    %3878 = vmatpush2.msra.mxu0 0.0
    %3879 = vmatprep.mubr.f32.mxu0 0.0
    %v3880 = vand.u32 %v3326, 4294901760
    %3881 = vmatmul.mubr.f32.gmra.mxu0 %v3880
    %v3882 = vpop.f32.mrf.mxu0
    %v3883 = vadd.f32 %v3764, %v3882
    %v3884 = vpop.f32.mrf.mxu0
    %3885 = vdwg.mxu0
    %3886 = vmatprep.subr.mxu0 0.0
    %v3887 = vand.u32 %v3325, 4294901760
    %3888 = vmatpush1.msra.mxu0 %v3887
    %3889 = vmatprep.subr.mxu0 0.0
    %v3890 = vand.u32 %v3324, 4294901760
    %3891 = vmatpush1.msra.mxu0 %v3890
    %3892 = vmatprep.subr.mxu0 0.0
    %v3893 = vand.u32 %v3323, 4294901760
    %3894 = vmatpush1.msra.mxu0 %v3893
    %3895 = vmatprep.subr.mxu0 0.0
    %v3896 = vand.u32 %v3322, 4294901760
    %3897 = vmatpush1.msra.mxu0 %v3896
    %3898 = vmatprep.subr.mxu0 0.0
    %v3899 = vand.u32 %v3321, 4294901760
    %3900 = vmatpush1.msra.mxu0 %v3899
    %3901 = vmatprep.subr.mxu0 0.0
    %v3902 = vand.u32 %v3320, 4294901760
    %3903 = vmatpush1.msra.mxu0 %v3902
    %3904 = vmatprep.subr.mxu0 0.0
    %v3905 = vand.u32 %v3319, 4294901760
    %3906 = vmatpush1.msra.mxu0 %v3905
    %3907 = vmatprep.subr.mxu0 0.0
    %v3908 = vand.u32 %v3318, 4294901760
    %3909 = vmatpush1.msra.mxu0 %v3908
    %3910 = vmatprep.subr.mxu0 0.0
    %v3911 = vand.u32 %v3317, 4294901760
    %3912 = vmatpush1.msra.mxu0 %v3911
    %3913 = vmatprep.subr.mxu0 0.0
    %v3914 = vand.u32 %v3316, 4294901760
    %3915 = vmatpush1.msra.mxu0 %v3914
    %3916 = vmatprep.subr.mxu0 0.0
    %v3917 = vand.u32 %v3315, 4294901760
    %3918 = vmatpush1.msra.mxu0 %v3917
    %3919 = vmatprep.subr.mxu0 0.0
    %v3920 = vand.u32 %v3314, 4294901760
    %3921 = vmatpush1.msra.mxu0 %v3920
    %3922 = vmatprep.subr.mxu0 0.0
    %v3923 = vand.u32 %v3313, 4294901760
    %3924 = vmatpush1.msra.mxu0 %v3923
    %3925 = vmatprep.subr.mxu0 0.0
    %v3926 = vand.u32 %v3312, 4294901760
    %3927 = vmatpush1.msra.mxu0 %v3926
    %3928 = vmatprep.subr.mxu0 0.0
    %v3929 = vand.u32 %v3311, 4294901760
    %3930 = vmatpush1.msra.mxu0 %v3929
    %3931 = vmatprep.subr.mxu0 0.0
    %v3932 = vand.u32 %v3310, 4294901760
    %3933 = vmatpush1.msra.mxu0 %v3932
    %3934 = vmatprep.subr.mxu0 0.0
    %3935 = vmatpush2.msra.mxu0 0.0
    %3936 = vmatprep.subr.mxu0 0.0
    %3937 = vmatpush2.msra.mxu0 0.0
    %3938 = vmatprep.subr.mxu0 0.0
    %3939 = vmatpush2.msra.mxu0 0.0
    %3940 = vmatprep.subr.mxu0 0.0
    %3941 = vmatpush2.msra.mxu0 0.0
    %3942 = vmatprep.subr.mxu0 0.0
    %3943 = vmatpush2.msra.mxu0 0.0
    %3944 = vmatprep.subr.mxu0 0.0
    %3945 = vmatpush2.msra.mxu0 0.0
    %3946 = vmatprep.subr.mxu0 0.0
    %3947 = vmatpush2.msra.mxu0 0.0
    %3948 = vmatprep.subr.mxu0 0.0
    %3949 = vmatpush2.msra.mxu0 0.0
    %3950 = vmatprep.subr.mxu0 0.0
    %3951 = vmatpush2.msra.mxu0 0.0
    %3952 = vmatprep.subr.mxu0 0.0
    %3953 = vmatpush2.msra.mxu0 0.0
    %3954 = vmatprep.subr.mxu0 0.0
    %3955 = vmatpush2.msra.mxu0 0.0
    %3956 = vmatprep.subr.mxu0 0.0
    %3957 = vmatpush2.msra.mxu0 0.0
    %3958 = vmatprep.subr.mxu0 0.0
    %3959 = vmatpush2.msra.mxu0 0.0
    %3960 = vmatprep.subr.mxu0 0.0
    %3961 = vmatpush2.msra.mxu0 0.0
    %3962 = vmatprep.subr.mxu0 0.0
    %3963 = vmatpush2.msra.mxu0 0.0
    %3964 = vmatprep.subr.mxu0 0.0
    %3965 = vmatpush2.msra.mxu0 0.0
    %3966 = vmatprep.mubr.f32.mxu0 0.0
    %v3967 = vand.u32 %v3326, 4294901760
    %3968 = vmatmul.mubr.f32.gmra.mxu0 %v3967
    %v3969 = vpop.f32.mrf.mxu0
    %v3970 = vadd.f32 %v3883, %v3969
    %v3971 = vpop.f32.mrf.mxu0
    %3972 = vdwg.mxu0
    %vm3973 = vcmask 61440
    %v3974 = vsel %vm3973, %v3970, -inf
    %v3975 = vrot.slane %v3974, 4
    %v3976 = vmax.f32 %v3974, %v3975
    %v3977 = vrot.slane %v3976, 2
    %v3978 = vmax.f32 %v3976, %v3977
    %v3979 = vrot.slane %v3978, 1
    %v3980 = vmax.f32 %v3978, %v3979
    %v3981 = vsub.f32 %v3970, %v3980
    %v3982 = vmul.f32 %v3981, 1.442695
    %v3983 = vpow.pop %v3982
    %v3984 = vsel %vm3973, %v3983, 0.0
    %v3985 = vrot.slane %v3984, 4
    %v3986 = vadd.f32 %v3984, %v3985
    %v3987 = vrot.slane %v3986, 2
    %v3988 = vadd.f32 %v3986, %v3987
    %v3989 = vrot.slane %v3988, 1
    %v3990 = vadd.f32 %v3988, %v3989
    %v3991 = vlog2.pop %v3990
    %v3992 = vmul.f32 %v3991, 0.6931472
    %v3993 = vsub.f32 %v3981, %v3992
    %vm3994 = vcmask 1044480
    %v3995 = vsel %vm3994, %v3993, %v3970
    %v3996 = vld [vmem:[%s0] sm:$0x3]
    %v3997 = vlaneseq
    %v3998 = vshrl.u32 %v3997, 7
    %v3999 = vlaneseq
    %v4000 = vshrl.u32 %v3999, 7
    %v4001 = vsub.s32 0, %v4000
    %v4002 = vrot.slane %v3996, %v4001
    %v4003 = vlaneseq
    %v4004 = vshrl.u32 %v4003, 7
    %v4005 = vsub.s32 1, %v4004
    %v4006 = vrot.slane %v3996, %v4005
    %vm4007 = vcmp.eq.s32.totalorder %v3998, %v4002
    %vm4008 = vcmp.eq.s32.totalorder %v3998, %v4006
    %v4009 = vsel %vm4007, 1, 0
    %v4010 = vsel %vm4008, 1, 0
    %v4011 = vcvt.s32.f32 %v4009
    %v4012 = vcvt.s32.f32 %v4010
    %v4014 = vsel %vm69, %v3995, 0
    %4016 = vmatprep.subr.mxu0 0.0
    %4017 = vmatpush1.msra.mxu0 0.0
    %4018 = vmatprep.subr.mxu0 0.0
    %4019 = vmatpush1.msra.mxu0 0.0
    %4020 = vmatprep.subr.mxu0 0.0
    %4021 = vmatpush1.msra.mxu0 0.0
    %4022 = vmatprep.subr.mxu0 0.0
    %4023 = vmatpush1.msra.mxu0 0.0
    %4024 = vmatprep.subr.mxu0 0.0
    %4025 = vmatpush1.msra.mxu0 0.0
    %4026 = vmatprep.subr.mxu0 0.0
    %4027 = vmatpush1.msra.mxu0 0.0
    %4028 = vmatprep.subr.mxu0 0.0
    %4029 = vmatpush1.msra.mxu0 0.0
    %4030 = vmatprep.subr.mxu0 0.0
    %4031 = vmatpush1.msra.mxu0 0.0
    %4032 = vmatprep.subr.mxu0 0.0
    %4033 = vmatpush1.msra.mxu0 0.0
    %4034 = vmatprep.subr.mxu0 0.0
    %4035 = vmatpush1.msra.mxu0 0.0
    %4036 = vmatprep.subr.mxu0 0.0
    %4037 = vmatpush1.msra.mxu0 0.0
    %4038 = vmatprep.subr.mxu0 0.0
    %4039 = vmatpush1.msra.mxu0 0.0
    %4040 = vmatprep.subr.mxu0 0.0
    %4041 = vmatpush1.msra.mxu0 0.0
    %4042 = vmatprep.subr.mxu0 0.0
    %4043 = vmatpush1.msra.mxu0 0.0
    %4044 = vmatprep.subr.mxu0 0.0
    %4045 = vmatpush1.msra.mxu0 0.0
    %v4046 = vand.u32 %v4012, 4294901760
    %4047 = vmatprep.subr.mxu0 %v4046
    %v4048 = vand.u32 %v4011, 4294901760
    %4049 = vmatpush1.msra.mxu0 %v4048
    %4050 = vmatprep.subr.mxu0 0.0
    %4051 = vmatpush2.msra.mxu0 0.0
    %4052 = vmatprep.subr.mxu0 0.0
    %4053 = vmatpush2.msra.mxu0 0.0
    %4054 = vmatprep.subr.mxu0 0.0
    %4055 = vmatpush2.msra.mxu0 0.0
    %4056 = vmatprep.subr.mxu0 0.0
    %4057 = vmatpush2.msra.mxu0 0.0
    %4058 = vmatprep.subr.mxu0 0.0
    %4059 = vmatpush2.msra.mxu0 0.0
    %4060 = vmatprep.subr.mxu0 0.0
    %4061 = vmatpush2.msra.mxu0 0.0
    %4062 = vmatprep.subr.mxu0 0.0
    %4063 = vmatpush2.msra.mxu0 0.0
    %4064 = vmatprep.subr.mxu0 0.0
    %4065 = vmatpush2.msra.mxu0 0.0
    %4066 = vmatprep.subr.mxu0 0.0
    %4067 = vmatpush2.msra.mxu0 0.0
    %4068 = vmatprep.subr.mxu0 0.0
    %4069 = vmatpush2.msra.mxu0 0.0
    %4070 = vmatprep.subr.mxu0 0.0
    %4071 = vmatpush2.msra.mxu0 0.0
    %4072 = vmatprep.subr.mxu0 0.0
    %4073 = vmatpush2.msra.mxu0 0.0
    %4074 = vmatprep.subr.mxu0 0.0
    %4075 = vmatpush2.msra.mxu0 0.0
    %4076 = vmatprep.subr.mxu0 0.0
    %4077 = vmatpush2.msra.mxu0 0.0
    %4078 = vmatprep.subr.mxu0 0.0
    %4079 = vmatpush2.msra.mxu0 0.0
    %4080 = vmatprep.subr.mxu0 0.0
    %4081 = vmatpush2.msra.mxu0 0.0
    %4082 = vmatprep.mubr.f32.mxu0 0.0
    %v4083 = vand.u32 %v4014, 4294901760
    %v4084 = vsub.f32 %v4014, %v4083
    %v4085 = vand.u32 %v4084, 4294901760
    %v4086 = vsub.f32 %v4084, %v4085
    %v4087 = vand.u32 %v4086, 4294901760
    %4088 = vmatmul.mubr.f32.gmra.mxu0 %v4087
    %v4089 = vpop.f32.mrf.mxu0
    %v4090 = vadd.f32 0.0, %v4089
    %v4091 = vpop.f32.mrf.mxu0
    %v4092 = vadd.f32 0.0, %v4091
    %4093 = vdwg.mxu0
    %4094 = vmatprep.subr.mxu0 0.0
    %4095 = vmatpush1.msra.mxu0 0.0
    %4096 = vmatprep.subr.mxu0 0.0
    %4097 = vmatpush1.msra.mxu0 0.0
    %4098 = vmatprep.subr.mxu0 0.0
    %4099 = vmatpush1.msra.mxu0 0.0
    %4100 = vmatprep.subr.mxu0 0.0
    %4101 = vmatpush1.msra.mxu0 0.0
    %4102 = vmatprep.subr.mxu0 0.0
    %4103 = vmatpush1.msra.mxu0 0.0
    %4104 = vmatprep.subr.mxu0 0.0
    %4105 = vmatpush1.msra.mxu0 0.0
    %4106 = vmatprep.subr.mxu0 0.0
    %4107 = vmatpush1.msra.mxu0 0.0
    %4108 = vmatprep.subr.mxu0 0.0
    %4109 = vmatpush1.msra.mxu0 0.0
    %4110 = vmatprep.subr.mxu0 0.0
    %4111 = vmatpush1.msra.mxu0 0.0
    %4112 = vmatprep.subr.mxu0 0.0
    %4113 = vmatpush1.msra.mxu0 0.0
    %4114 = vmatprep.subr.mxu0 0.0
    %4115 = vmatpush1.msra.mxu0 0.0
    %4116 = vmatprep.subr.mxu0 0.0
    %4117 = vmatpush1.msra.mxu0 0.0
    %4118 = vmatprep.subr.mxu0 0.0
    %4119 = vmatpush1.msra.mxu0 0.0
    %4120 = vmatprep.subr.mxu0 0.0
    %4121 = vmatpush1.msra.mxu0 0.0
    %4122 = vmatprep.subr.mxu0 0.0
    %4123 = vmatpush1.msra.mxu0 0.0
    %v4124 = vand.u32 %v4012, 4294901760
    %v4125 = vsub.f32 %v4012, %v4124
    %v4126 = vand.u32 %v4125, 4294901760
    %v4127 = vsub.f32 %v4125, %v4126
    %v4128 = vand.u32 %v4127, 4294901760
    %4129 = vmatprep.subr.mxu0 %v4128
    %v4130 = vand.u32 %v4011, 4294901760
    %v4131 = vsub.f32 %v4011, %v4130
    %v4132 = vand.u32 %v4131, 4294901760
    %v4133 = vsub.f32 %v4131, %v4132
    %v4134 = vand.u32 %v4133, 4294901760
    %4135 = vmatpush1.msra.mxu0 %v4134
    %4136 = vmatprep.subr.mxu0 0.0
    %4137 = vmatpush2.msra.mxu0 0.0
    %4138 = vmatprep.subr.mxu0 0.0
    %4139 = vmatpush2.msra.mxu0 0.0
    %4140 = vmatprep.subr.mxu0 0.0
    %4141 = vmatpush2.msra.mxu0 0.0
    %4142 = vmatprep.subr.mxu0 0.0
    %4143 = vmatpush2.msra.mxu0 0.0
    %4144 = vmatprep.subr.mxu0 0.0
    %4145 = vmatpush2.msra.mxu0 0.0
    %4146 = vmatprep.subr.mxu0 0.0
    %4147 = vmatpush2.msra.mxu0 0.0
    %4148 = vmatprep.subr.mxu0 0.0
    %4149 = vmatpush2.msra.mxu0 0.0
    %4150 = vmatprep.subr.mxu0 0.0
    %4151 = vmatpush2.msra.mxu0 0.0
    %4152 = vmatprep.subr.mxu0 0.0
    %4153 = vmatpush2.msra.mxu0 0.0
    %4154 = vmatprep.subr.mxu0 0.0
    %4155 = vmatpush2.msra.mxu0 0.0
    %4156 = vmatprep.subr.mxu0 0.0
    %4157 = vmatpush2.msra.mxu0 0.0
    %4158 = vmatprep.subr.mxu0 0.0
    %4159 = vmatpush2.msra.mxu0 0.0
    %4160 = vmatprep.subr.mxu0 0.0
    %4161 = vmatpush2.msra.mxu0 0.0
    %4162 = vmatprep.subr.mxu0 0.0
    %4163 = vmatpush2.msra.mxu0 0.0
    %4164 = vmatprep.subr.mxu0 0.0
    %4165 = vmatpush2.msra.mxu0 0.0
    %4166 = vmatprep.subr.mxu0 0.0
    %4167 = vmatpush2.msra.mxu0 0.0
    %4168 = vmatprep.mubr.f32.mxu0 0.0
    %v4169 = vand.u32 %v4014, 4294901760
    %4170 = vmatmul.mubr.f32.gmra.mxu0 %v4169
    %v4171 = vpop.f32.mrf.mxu0
    %v4172 = vadd.f32 %v4090, %v4171
    %v4173 = vpop.f32.mrf.mxu0
    %v4174 = vadd.f32 %v4092, %v4173
    %4175 = vdwg.mxu0
    %4176 = vmatprep.subr.mxu0 0.0
    %4177 = vmatpush1.msra.mxu0 0.0
    %4178 = vmatprep.subr.mxu0 0.0
    %4179 = vmatpush1.msra.mxu0 0.0
    %4180 = vmatprep.subr.mxu0 0.0
    %4181 = vmatpush1.msra.mxu0 0.0
    %4182 = vmatprep.subr.mxu0 0.0
    %4183 = vmatpush1.msra.mxu0 0.0
    %4184 = vmatprep.subr.mxu0 0.0
    %4185 = vmatpush1.msra.mxu0 0.0
    %4186 = vmatprep.subr.mxu0 0.0
    %4187 = vmatpush1.msra.mxu0 0.0
    %4188 = vmatprep.subr.mxu0 0.0
    %4189 = vmatpush1.msra.mxu0 0.0
    %4190 = vmatprep.subr.mxu0 0.0
    %4191 = vmatpush1.msra.mxu0 0.0
    %4192 = vmatprep.subr.mxu0 0.0
    %4193 = vmatpush1.msra.mxu0 0.0
    %4194 = vmatprep.subr.mxu0 0.0
    %4195 = vmatpush1.msra.mxu0 0.0
    %4196 = vmatprep.subr.mxu0 0.0
    %4197 = vmatpush1.msra.mxu0 0.0
    %4198 = vmatprep.subr.mxu0 0.0
    %4199 = vmatpush1.msra.mxu0 0.0
    %4200 = vmatprep.subr.mxu0 0.0
    %4201 = vmatpush1.msra.mxu0 0.0
    %4202 = vmatprep.subr.mxu0 0.0
    %4203 = vmatpush1.msra.mxu0 0.0
    %4204 = vmatprep.subr.mxu0 0.0
    %4205 = vmatpush1.msra.mxu0 0.0
    %v4206 = vand.u32 %v4012, 4294901760
    %v4207 = vsub.f32 %v4012, %v4206
    %4208 = vmatprep.subr.mxu0 %v4207
    %v4209 = vand.u32 %v4011, 4294901760
    %v4210 = vsub.f32 %v4011, %v4209
    %4211 = vmatpush1.msra.mxu0 %v4210
    %4212 = vmatprep.subr.mxu0 0.0
    %4213 = vmatpush2.msra.mxu0 0.0
    %4214 = vmatprep.subr.mxu0 0.0
    %4215 = vmatpush2.msra.mxu0 0.0
    %4216 = vmatprep.subr.mxu0 0.0
    %4217 = vmatpush2.msra.mxu0 0.0
    %4218 = vmatprep.subr.mxu0 0.0
    %4219 = vmatpush2.msra.mxu0 0.0
    %4220 = vmatprep.subr.mxu0 0.0
    %4221 = vmatpush2.msra.mxu0 0.0
    %4222 = vmatprep.subr.mxu0 0.0
    %4223 = vmatpush2.msra.mxu0 0.0
    %4224 = vmatprep.subr.mxu0 0.0
    %4225 = vmatpush2.msra.mxu0 0.0
    %4226 = vmatprep.subr.mxu0 0.0
    %4227 = vmatpush2.msra.mxu0 0.0
    %4228 = vmatprep.subr.mxu0 0.0
    %4229 = vmatpush2.msra.mxu0 0.0
    %4230 = vmatprep.subr.mxu0 0.0
    %4231 = vmatpush2.msra.mxu0 0.0
    %4232 = vmatprep.subr.mxu0 0.0
    %4233 = vmatpush2.msra.mxu0 0.0
    %4234 = vmatprep.subr.mxu0 0.0
    %4235 = vmatpush2.msra.mxu0 0.0
    %4236 = vmatprep.subr.mxu0 0.0
    %4237 = vmatpush2.msra.mxu0 0.0
    %4238 = vmatprep.subr.mxu0 0.0
    %4239 = vmatpush2.msra.mxu0 0.0
    %4240 = vmatprep.subr.mxu0 0.0
    %4241 = vmatpush2.msra.mxu0 0.0
    %4242 = vmatprep.subr.mxu0 0.0
    %4243 = vmatpush2.msra.mxu0 0.0
    %4244 = vmatprep.mubr.f32.mxu0 0.0
    %v4245 = vand.u32 %v4014, 4294901760
    %v4246 = vsub.f32 %v4014, %v4245
    %4247 = vmatmul.mubr.f32.gmra.mxu0 %v4246
    %v4248 = vpop.f32.mrf.mxu0
    %v4249 = vadd.f32 %v4172, %v4248
    %v4250 = vpop.f32.mrf.mxu0
    %v4251 = vadd.f32 %v4174, %v4250
    %4252 = vdwg.mxu0
    %4253 = vmatprep.subr.mxu0 0.0
    %4254 = vmatpush1.msra.mxu0 0.0
    %4255 = vmatprep.subr.mxu0 0.0
    %4256 = vmatpush1.msra.mxu0 0.0
    %4257 = vmatprep.subr.mxu0 0.0
    %4258 = vmatpush1.msra.mxu0 0.0
    %4259 = vmatprep.subr.mxu0 0.0
    %4260 = vmatpush1.msra.mxu0 0.0
    %4261 = vmatprep.subr.mxu0 0.0
    %4262 = vmatpush1.msra.mxu0 0.0
    %4263 = vmatprep.subr.mxu0 0.0
    %4264 = vmatpush1.msra.mxu0 0.0
    %4265 = vmatprep.subr.mxu0 0.0
    %4266 = vmatpush1.msra.mxu0 0.0
    %4267 = vmatprep.subr.mxu0 0.0
    %4268 = vmatpush1.msra.mxu0 0.0
    %4269 = vmatprep.subr.mxu0 0.0
    %4270 = vmatpush1.msra.mxu0 0.0
    %4271 = vmatprep.subr.mxu0 0.0
    %4272 = vmatpush1.msra.mxu0 0.0
    %4273 = vmatprep.subr.mxu0 0.0
    %4274 = vmatpush1.msra.mxu0 0.0
    %4275 = vmatprep.subr.mxu0 0.0
    %4276 = vmatpush1.msra.mxu0 0.0
    %4277 = vmatprep.subr.mxu0 0.0
    %4278 = vmatpush1.msra.mxu0 0.0
    %4279 = vmatprep.subr.mxu0 0.0
    %4280 = vmatpush1.msra.mxu0 0.0
    %4281 = vmatprep.subr.mxu0 0.0
    %4282 = vmatpush1.msra.mxu0 0.0
    %v4283 = vand.u32 %v4012, 4294901760
    %4284 = vmatprep.subr.mxu0 %v4283
    %v4285 = vand.u32 %v4011, 4294901760
    %4286 = vmatpush1.msra.mxu0 %v4285
    %4287 = vmatprep.subr.mxu0 0.0
    %4288 = vmatpush2.msra.mxu0 0.0
    %4289 = vmatprep.subr.mxu0 0.0
    %4290 = vmatpush2.msra.mxu0 0.0
    %4291 = vmatprep.subr.mxu0 0.0
    %4292 = vmatpush2.msra.mxu0 0.0
    %4293 = vmatprep.subr.mxu0 0.0
    %4294 = vmatpush2.msra.mxu0 0.0
    %4295 = vmatprep.subr.mxu0 0.0
    %4296 = vmatpush2.msra.mxu0 0.0
    %4297 = vmatprep.subr.mxu0 0.0
    %4298 = vmatpush2.msra.mxu0 0.0
    %4299 = vmatprep.subr.mxu0 0.0
    %4300 = vmatpush2.msra.mxu0 0.0
    %4301 = vmatprep.subr.mxu0 0.0
    %4302 = vmatpush2.msra.mxu0 0.0
    %4303 = vmatprep.subr.mxu0 0.0
    %4304 = vmatpush2.msra.mxu0 0.0
    %4305 = vmatprep.subr.mxu0 0.0
    %4306 = vmatpush2.msra.mxu0 0.0
    %4307 = vmatprep.subr.mxu0 0.0
    %4308 = vmatpush2.msra.mxu0 0.0
    %4309 = vmatprep.subr.mxu0 0.0
    %4310 = vmatpush2.msra.mxu0 0.0
    %4311 = vmatprep.subr.mxu0 0.0
    %4312 = vmatpush2.msra.mxu0 0.0
    %4313 = vmatprep.subr.mxu0 0.0
    %4314 = vmatpush2.msra.mxu0 0.0
    %4315 = vmatprep.subr.mxu0 0.0
    %4316 = vmatpush2.msra.mxu0 0.0
    %4317 = vmatprep.subr.mxu0 0.0
    %4318 = vmatpush2.msra.mxu0 0.0
    %4319 = vmatprep.mubr.f32.mxu0 0.0
    %v4320 = vand.u32 %v4014, 4294901760
    %v4321 = vsub.f32 %v4014, %v4320
    %v4322 = vand.u32 %v4321, 4294901760
    %4323 = vmatmul.mubr.f32.gmra.mxu0 %v4322
    %v4324 = vpop.f32.mrf.mxu0
    %v4325 = vadd.f32 %v4249, %v4324
    %v4326 = vpop.f32.mrf.mxu0
    %v4327 = vadd.f32 %v4251, %v4326
    %4328 = vdwg.mxu0
    %4329 = vmatprep.subr.mxu0 0.0
    %4330 = vmatpush1.msra.mxu0 0.0
    %4331 = vmatprep.subr.mxu0 0.0
    %4332 = vmatpush1.msra.mxu0 0.0
    %4333 = vmatprep.subr.mxu0 0.0
    %4334 = vmatpush1.msra.mxu0 0.0
    %4335 = vmatprep.subr.mxu0 0.0
    %4336 = vmatpush1.msra.mxu0 0.0
    %4337 = vmatprep.subr.mxu0 0.0
    %4338 = vmatpush1.msra.mxu0 0.0
    %4339 = vmatprep.subr.mxu0 0.0
    %4340 = vmatpush1.msra.mxu0 0.0
    %4341 = vmatprep.subr.mxu0 0.0
    %4342 = vmatpush1.msra.mxu0 0.0
    %4343 = vmatprep.subr.mxu0 0.0
    %4344 = vmatpush1.msra.mxu0 0.0
    %4345 = vmatprep.subr.mxu0 0.0
    %4346 = vmatpush1.msra.mxu0 0.0
    %4347 = vmatprep.subr.mxu0 0.0
    %4348 = vmatpush1.msra.mxu0 0.0
    %4349 = vmatprep.subr.mxu0 0.0
    %4350 = vmatpush1.msra.mxu0 0.0
    %4351 = vmatprep.subr.mxu0 0.0
    %4352 = vmatpush1.msra.mxu0 0.0
    %4353 = vmatprep.subr.mxu0 0.0
    %4354 = vmatpush1.msra.mxu0 0.0
    %4355 = vmatprep.subr.mxu0 0.0
    %4356 = vmatpush1.msra.mxu0 0.0
    %4357 = vmatprep.subr.mxu0 0.0
    %4358 = vmatpush1.msra.mxu0 0.0
    %v4359 = vand.u32 %v4012, 4294901760
    %v4360 = vsub.f32 %v4012, %v4359
    %v4361 = vand.u32 %v4360, 4294901760
    %4362 = vmatprep.subr.mxu0 %v4361
    %v4363 = vand.u32 %v4011, 4294901760
    %v4364 = vsub.f32 %v4011, %v4363
    %v4365 = vand.u32 %v4364, 4294901760
    %4366 = vmatpush1.msra.mxu0 %v4365
    %4367 = vmatprep.subr.mxu0 0.0
    %4368 = vmatpush2.msra.mxu0 0.0
    %4369 = vmatprep.subr.mxu0 0.0
    %4370 = vmatpush2.msra.mxu0 0.0
    %4371 = vmatprep.subr.mxu0 0.0
    %4372 = vmatpush2.msra.mxu0 0.0
    %4373 = vmatprep.subr.mxu0 0.0
    %4374 = vmatpush2.msra.mxu0 0.0
    %4375 = vmatprep.subr.mxu0 0.0
    %4376 = vmatpush2.msra.mxu0 0.0
    %4377 = vmatprep.subr.mxu0 0.0
    %4378 = vmatpush2.msra.mxu0 0.0
    %4379 = vmatprep.subr.mxu0 0.0
    %4380 = vmatpush2.msra.mxu0 0.0
    %4381 = vmatprep.subr.mxu0 0.0
    %4382 = vmatpush2.msra.mxu0 0.0
    %4383 = vmatprep.subr.mxu0 0.0
    %4384 = vmatpush2.msra.mxu0 0.0
    %4385 = vmatprep.subr.mxu0 0.0
    %4386 = vmatpush2.msra.mxu0 0.0
    %4387 = vmatprep.subr.mxu0 0.0
    %4388 = vmatpush2.msra.mxu0 0.0
    %4389 = vmatprep.subr.mxu0 0.0
    %4390 = vmatpush2.msra.mxu0 0.0
    %4391 = vmatprep.subr.mxu0 0.0
    %4392 = vmatpush2.msra.mxu0 0.0
    %4393 = vmatprep.subr.mxu0 0.0
    %4394 = vmatpush2.msra.mxu0 0.0
    %4395 = vmatprep.subr.mxu0 0.0
    %4396 = vmatpush2.msra.mxu0 0.0
    %4397 = vmatprep.subr.mxu0 0.0
    %4398 = vmatpush2.msra.mxu0 0.0
    %4399 = vmatprep.mubr.f32.mxu0 0.0
    %v4400 = vand.u32 %v4014, 4294901760
    %4401 = vmatmul.mubr.f32.gmra.mxu0 %v4400
    %v4402 = vpop.f32.mrf.mxu0
    %v4403 = vadd.f32 %v4325, %v4402
    %v4404 = vpop.f32.mrf.mxu0
    %v4405 = vadd.f32 %v4327, %v4404
    %4406 = vdwg.mxu0
    %4407 = vmatprep.subr.mxu0 0.0
    %4408 = vmatpush1.msra.mxu0 0.0
    %4409 = vmatprep.subr.mxu0 0.0
    %4410 = vmatpush1.msra.mxu0 0.0
    %4411 = vmatprep.subr.mxu0 0.0
    %4412 = vmatpush1.msra.mxu0 0.0
    %4413 = vmatprep.subr.mxu0 0.0
    %4414 = vmatpush1.msra.mxu0 0.0
    %4415 = vmatprep.subr.mxu0 0.0
    %4416 = vmatpush1.msra.mxu0 0.0
    %4417 = vmatprep.subr.mxu0 0.0
    %4418 = vmatpush1.msra.mxu0 0.0
    %4419 = vmatprep.subr.mxu0 0.0
    %4420 = vmatpush1.msra.mxu0 0.0
    %4421 = vmatprep.subr.mxu0 0.0
    %4422 = vmatpush1.msra.mxu0 0.0
    %4423 = vmatprep.subr.mxu0 0.0
    %4424 = vmatpush1.msra.mxu0 0.0
    %4425 = vmatprep.subr.mxu0 0.0
    %4426 = vmatpush1.msra.mxu0 0.0
    %4427 = vmatprep.subr.mxu0 0.0
    %4428 = vmatpush1.msra.mxu0 0.0
    %4429 = vmatprep.subr.mxu0 0.0
    %4430 = vmatpush1.msra.mxu0 0.0
    %4431 = vmatprep.subr.mxu0 0.0
    %4432 = vmatpush1.msra.mxu0 0.0
    %4433 = vmatprep.subr.mxu0 0.0
    %4434 = vmatpush1.msra.mxu0 0.0
    %4435 = vmatprep.subr.mxu0 0.0
    %4436 = vmatpush1.msra.mxu0 0.0
    %v4437 = vand.u32 %v4012, 4294901760
    %4438 = vmatprep.subr.mxu0 %v4437
    %v4439 = vand.u32 %v4011, 4294901760
    %4440 = vmatpush1.msra.mxu0 %v4439
    %4441 = vmatprep.subr.mxu0 0.0
    %4442 = vmatpush2.msra.mxu0 0.0
    %4443 = vmatprep.subr.mxu0 0.0
    %4444 = vmatpush2.msra.mxu0 0.0
    %4445 = vmatprep.subr.mxu0 0.0
    %4446 = vmatpush2.msra.mxu0 0.0
    %4447 = vmatprep.subr.mxu0 0.0
    %4448 = vmatpush2.msra.mxu0 0.0
    %4449 = vmatprep.subr.mxu0 0.0
    %4450 = vmatpush2.msra.mxu0 0.0
    %4451 = vmatprep.subr.mxu0 0.0
    %4452 = vmatpush2.msra.mxu0 0.0
    %4453 = vmatprep.subr.mxu0 0.0
    %4454 = vmatpush2.msra.mxu0 0.0
    %4455 = vmatprep.subr.mxu0 0.0
    %4456 = vmatpush2.msra.mxu0 0.0
    %4457 = vmatprep.subr.mxu0 0.0
    %4458 = vmatpush2.msra.mxu0 0.0
    %4459 = vmatprep.subr.mxu0 0.0
    %4460 = vmatpush2.msra.mxu0 0.0
    %4461 = vmatprep.subr.mxu0 0.0
    %4462 = vmatpush2.msra.mxu0 0.0
    %4463 = vmatprep.subr.mxu0 0.0
    %4464 = vmatpush2.msra.mxu0 0.0
    %4465 = vmatprep.subr.mxu0 0.0
    %4466 = vmatpush2.msra.mxu0 0.0
    %4467 = vmatprep.subr.mxu0 0.0
    %4468 = vmatpush2.msra.mxu0 0.0
    %4469 = vmatprep.subr.mxu0 0.0
    %4470 = vmatpush2.msra.mxu0 0.0
    %4471 = vmatprep.subr.mxu0 0.0
    %4472 = vmatpush2.msra.mxu0 0.0
    %4473 = vmatprep.mubr.f32.mxu0 0.0
    %v4474 = vand.u32 %v4014, 4294901760
    %4475 = vmatmul.mubr.f32.gmra.mxu0 %v4474
    %v4476 = vpop.f32.mrf.mxu0
    %v4477 = vadd.f32 %v4403, %v4476
    %v4478 = vpop.f32.mrf.mxu0
    %v4479 = vadd.f32 %v4405, %v4478
    %4480 = vdwg.mxu0
    %4481 = vst [vmem:[#allocation2] sm:$0x3f] %v4477
    %4482 = vst [vmem:[#allocation2 + $0x8] sm:$0x3f] %v4479
    // Predicated region
    $region30: #{tpu_custom_call.1} parent=1 // pred_check
      _
    $region31: #{tpu_custom_call.1} parent=1 // pred_check_branch
      %4484 = sbr.rel (0) target = $region33
    $region32: #{tpu_custom_call.1} parent=1 // pred_region
      %s4486 = ssub.s32 256, 256
      %4487 = vsyncadd [#allocation3], %s4486
      %s4489 = sshll.u32 [#allocation2], 4
      %s4490 = int_to_ptr.vmem [resolvable:$true] %s4489
      %4492 = dma.vmem_to_hbm [thread:$0]  %s4490, 256, %s7, [#allocation3]
    $region33: #{tpu_custom_call.1} parent=1 // pred_fallthru
      _
    // Predicated region
    $region34: #{tpu_custom_call.1} parent=1 // pred_check
      _
    $region35: #{tpu_custom_call.1} parent=1 // pred_check_branch
      %4494 = sbr.rel (0) target = $region37
    $region36: #{tpu_custom_call.1} parent=1 // pred_region
      %4495 = dma.done [#allocation3], 256
    $region37: #{tpu_custom_call.1} parent=1 // pred_fallthru
      _
    %4496 = vsyncpa [#allocation3], 1

</llo_original>
